<compile_context>
chip_gen: v5e
topology: v5e:2x2
jax: 0.10.0
libtpu: 0.0.40
codegen_flags: <defaults>
</compile_context>

<pallas_src>
import functools

import jax
import jax.numpy as jnp
import numpy as np
from jax import lax
from jax.experimental import pallas as pl
from jax.experimental.pallas import tpu as pltpu

# ---- config (GeoTransformer 3DMatch defaults, hard-coded deterministically) ----
POSITIVE_MARGIN = 0.1
NEGATIVE_MARGIN = 1.4
POSITIVE_OPTIMAL = 0.1
NEGATIVE_OPTIMAL = 1.4
LOG_SCALE = 24.0
POSITIVE_OVERLAP = 0.1
GAMMA = 0.5                 # CoarseMatchingLoss.gamma
POSITIVE_RADIUS = 0.05      # fine_loss.positive_radius
WEIGHT_COARSE = 1.0
WEIGHT_FINE = 1.0

_MASK_OFFSET = 1.0e6        # pushes masked fine pairs far outside positive_radius
_NEG_INF = -1.0e9           # kills padded entries from every logsumexp


def _round_up(x, m):
    return ((x + m - 1) // m) * m


def _softplus(x):
    # numerically-stable softplus using only exp/log/abs/max (EUP-friendly)
    return jnp.maximum(x, 0.0) + jnp.log(1.0 + jnp.exp(-jnp.abs(x)))


# ----------------------------------------------------------------------------
# Fused overall-loss kernel (coarse circle loss + batch-tiled fine loss)
# ----------------------------------------------------------------------------
def _overall_loss_kernel(a_ref, b_ref, gtidx_ref, gtovl_ref,
                         refx_ref, srcx_ref, smain_ref, aux_ref,
                         out_ref, acc_ref, *, n_valid, m_valid):
    g = pl.program_id(0)

    # ------------------- fine matching loss (every grid step) ---------------
    @pl.when(g == 0)
    def _init_acc():
        acc_ref[0] = 0.0
        acc_ref[1] = 0.0

    # Both orientations of the squared distance are produced by two tiny
    # batched MXU contractions so every occupancy reduction is a natural
    # keepdims sum and the lane-dense (Bt,1,K) mask/score slices broadcast
    # without any relayout.  Masked points carry +1e6 in the squared-norm
    # column, so their distances can never fall below positive_radius^2.
    refx = refx_ref[...]                                           # (Bt, K, 8)
    srcx = srcx_ref[...]                                           # (Bt, K, 8)
    dists = jnp.einsum('bkd,bjd->bkj', refx, srcx,
                       preferred_element_type=jnp.float32)         # (Bt, Kr, Ks)
    dists_t = jnp.einsum('bjd,bkd->bjk', srcx, refx,
                         preferred_element_type=jnp.float32)       # (Bt, Ks, Kr)
    r2 = POSITIVE_RADIUS ** 2
    gt_corr = (dists < r2).astype(jnp.float32)
    gt_corr_t = (dists_t < r2).astype(jnp.float32)

    aux = aux_ref[...]                                             # (Bt, 4, K)
    ref_m = aux[:, 0:1, :]                                         # (Bt, 1, K)
    src_m = aux[:, 1:2, :]
    s_row = aux[:, 2:3, :]
    s_col = aux[:, 3:4, :]

    col_sum = jnp.sum(gt_corr, axis=1, keepdims=True)              # (Bt, 1, Ks)
    row_sum = jnp.sum(gt_corr_t, axis=1, keepdims=True)            # (Bt, 1, Kr)
    slack_row = jnp.where(row_sum == 0.0, ref_m, 0.0)
    slack_col = jnp.where(col_sum == 0.0, src_m, 0.0)

    total = (jnp.sum(smain_ref[...] * gt_corr)
             + jnp.sum(s_row * slack_row) + jnp.sum(s_col * slack_col))
    # reuse col_sum instead of a second full (Bt,K,K) reduction
    count = jnp.sum(col_sum) + jnp.sum(slack_row) + jnp.sum(slack_col)
    acc_ref[0] = acc_ref[0] + total
    acc_ref[1] = acc_ref[1] + count

    @pl.when(g == pl.num_programs(0) - 1)
    def _finalize_fine():
        out_ref[0, 1] = -(acc_ref[0] / acc_ref[1])

    # ------------------- coarse weighted-circle loss (step 0 only) ----------
    @pl.when(g == 0)
    def _coarse():
        n_p = a_ref.shape[0]
        m_p = b_ref.shape[0]
        p_p = gtovl_ref.shape[1]

        # feat_dists^2 = 2*(1-gamma) + A_full @ B_full^T  (one fused MXU pass)
        d = lax.dot_general(a_ref[...], b_ref[...], (((1,), (1,)), ((), ())),
                            preferred_element_type=jnp.float32)    # (Np, Mp)
        feat_dists = jnp.sqrt(jnp.maximum(d + 2.0 * (1.0 - GAMMA), 0.0))

        # overlaps built in-kernel from the gt correspondences with a one-hot
        # MXU product -> no XLA scatter, no (N, M) overlap DMA.
        gt_idx = gtidx_ref[...]                                     # (2, Pp) int32
        iota_n = lax.broadcasted_iota(jnp.int32, (n_p, p_p), 0)
        iota_m = lax.broadcasted_iota(jnp.int32, (m_p, p_p), 0)
        oh_ref = jnp.where(iota_n == gt_idx[0:1, :], gtovl_ref[...], 0.0)   # (Np,Pp)
        oh_src = (iota_m == gt_idx[1:2, :]).astype(jnp.float32)             # (Mp,Pp)
        ovl = lax.dot_general(oh_ref, oh_src, (((1,), (1,)), ((), ())),
                              precision=lax.Precision.HIGHEST,
                              preferred_element_type=jnp.float32)   # (Np, Mp)

        # padded rows/cols detected from iota against the static N/M.
        valid = ((lax.broadcasted_iota(jnp.int32, (n_p, m_p), 0) < n_valid)
                 & (lax.broadcasted_iota(jnp.int32, (n_p, m_p), 1) < m_valid))

        pos_b = ovl > POSITIVE_OVERLAP
        neg_b = (ovl == 0.0) & valid
        pos_f = pos_b.astype(jnp.float32)
        neg_f = neg_b.astype(jnp.float32)
        row_m = ((jnp.sum(pos_f, axis=1, keepdims=True) > 0.0)
                 & (jnp.sum(neg_f, axis=1, keepdims=True) > 0.0)).astype(jnp.float32)
        col_m = ((jnp.sum(pos_f, axis=0, keepdims=True) > 0.0)
                 & (jnp.sum(neg_f, axis=0, keepdims=True) > 0.0)).astype(jnp.float32)

        # positive branch: ONE exp matrix shared by the row AND column LSEs
        # (valid logits are bounded; killed -1e9 entries underflow to 0).
        pos_w = pos_f * jnp.maximum(feat_dists - POSITIVE_OPTIMAL, 0.0) \
            * jnp.sqrt(jnp.maximum(ovl, 0.0))
        pos_logits = jnp.where(
            valid, LOG_SCALE * (feat_dists - POSITIVE_MARGIN) * pos_w, _NEG_INF)
        gmax_p = jnp.maximum(jnp.max(pos_logits), 0.0)
        e_p = jnp.exp(pos_logits - gmax_p)
        lse_p_row = gmax_p + jnp.log(jnp.sum(e_p, axis=1, keepdims=True))   # (Np,1)
        lse_p_col = gmax_p + jnp.log(jnp.sum(e_p, axis=0, keepdims=True))   # (1,Mp)

        # negative branch: same trick (temporaries of the pos branch are dead).
        neg_w = neg_f * jnp.maximum(NEGATIVE_OPTIMAL - feat_dists, 0.0)
        neg_logits = jnp.where(
            valid, LOG_SCALE * (NEGATIVE_MARGIN - feat_dists) * neg_w, _NEG_INF)
        gmax_n = jnp.maximum(jnp.max(neg_logits), 0.0)
        e_n = jnp.exp(neg_logits - gmax_n)
        lse_n_row = gmax_n + jnp.log(jnp.sum(e_n, axis=1, keepdims=True))
        lse_n_col = gmax_n + jnp.log(jnp.sum(e_n, axis=0, keepdims=True))

        loss_row = _softplus(lse_p_row + lse_n_row) * (1.0 / LOG_SCALE)
        loss_col = _softplus(lse_p_col + lse_n_col) * (1.0 / LOG_SCALE)
        c_loss = 0.5 * (jnp.sum(loss_row * row_m) / jnp.sum(row_m)
                        + jnp.sum(loss_col * col_m) / jnp.sum(col_m))
        out_ref[0, 0] = c_loss


# ----------------------------------------------------------------------------
# OverallLoss wrapper (light XLA glue + one pallas_call)
# ----------------------------------------------------------------------------
def overall_loss(output_dict, data_dict, *, fine_batch_tile=32):
    ref_feats = output_dict['ref_feats_c'].astype(jnp.float32)     # (N, C) unit-norm
    src_feats = output_dict['src_feats_c'].astype(jnp.float32)     # (M, C)
    ref_equ = output_dict['ref_equ_c'].astype(jnp.float32)         # (N, E)
    src_equ = output_dict['src_equ_c'].astype(jnp.float32)         # (M, E)
    gt_idx = output_dict['gt_node_corr_indices'].astype(jnp.int32)  # (P, 2)
    gt_ovl = output_dict['gt_node_corr_overlaps'].astype(jnp.float32)

    N, C = ref_feats.shape
    M = src_feats.shape[0]
    E = ref_equ.shape[1]
    P = gt_ovl.shape[0]

    # --- coarse branch: fold both distance matmuls into one MXU pass --------
    sf = float(np.sqrt(2.0 * (1.0 - GAMMA)))
    se = float(np.sqrt(0.2 * GAMMA))
    x2e = 0.1 * GAMMA * jnp.sum(ref_equ * ref_equ, axis=1, keepdims=True)   # (N,1)
    y2e = 0.1 * GAMMA * jnp.sum(src_equ * src_equ, axis=1, keepdims=True)   # (M,1)
    a_full = jnp.concatenate([-sf * ref_feats, -se * ref_equ, x2e,
                              jnp.ones((N, 1), jnp.float32)], axis=1)
    b_full = jnp.concatenate([sf * src_feats, se * src_equ,
                              jnp.ones((M, 1), jnp.float32), y2e], axis=1)
    D = C + E + 2
    n_pad = _round_up(N, 8)
    m_pad = _round_up(M, 128)
    d_pad = _round_up(D, 128)          # contracted dim zero-padded -> aligned MXU feed
    a_full = jnp.pad(a_full, ((0, n_pad - N), (0, d_pad - D)))
    b_full = jnp.pad(b_full, ((0, m_pad - M), (0, d_pad - D)))

    p_pad = max(_round_up(P, 128), 128)
    gt_idx2 = jnp.pad(jnp.transpose(gt_idx), ((0, 0), (0, p_pad - P)),
                      constant_values=-1)                           # (2, Pp)
    gt_ovl_row = jnp.pad(gt_ovl, (0, p_pad - P)).reshape(1, p_pad)  # (1, Pp)

    # --- fine branch: rigid transform + masked extended point matrices ------
    ref_p = output_dict['ref_node_corr_knn_points'].astype(jnp.float32)   # (B,K,3)
    src_p = output_dict['src_node_corr_knn_points'].astype(jnp.float32)   # (B,K,3)
    ref_mask = output_dict['ref_node_corr_knn_masks']                     # (B,K) bool
    src_mask = output_dict['src_node_corr_knn_masks']
    scores = output_dict['matching_scores'].astype(jnp.float32)           # (B,K+1,K+1)
    transform = data_dict['transform'].astype(jnp.float32)                # (4,4)

    B, K, _ = ref_p.shape
    rot = transform[:3, :3]
    trans = transform[:3, 3]
    src_t = jnp.einsum('bkd,ed->bke', src_p, rot) + trans                  # apply_transform

    bt = int(min(fine_batch_tile, B))
    b_pad = _round_up(B, bt)
    pad_b = b_pad - B

    ref_m_f = jnp.pad(ref_mask.astype(jnp.float32), ((0, pad_b), (0, 0)))  # (Bp,K)
    src_m_f = jnp.pad(src_mask.astype(jnp.float32), ((0, pad_b), (0, 0)))
    ref_p = jnp.pad(ref_p, ((0, pad_b), (0, 0), (0, 0)))
    src_t = jnp.pad(src_t, ((0, pad_b), (0, 0), (0, 0)))
    s_main = jnp.pad(scores[:, :K, :K], ((0, pad_b), (0, 0), (0, 0)))      # (Bp,K,K)
    s_row = jnp.pad(scores[:, :K, K], ((0, pad_b), (0, 0)))                # (Bp,K)
    s_col = jnp.pad(scores[:, K, :K], ((0, pad_b), (0, 0)))                # (Bp,K)

    # extended point matrices: squared-norm column carries +1e6 for masked
    # points, so the in-kernel distance compare needs no mask tensors at all.
    ones1 = jnp.ones((b_pad, K, 1), jnp.float32)
    zeros3 = jnp.zeros((b_pad, K, 3), jnp.float32)
    ref_ext = jnp.concatenate(
        [ref_p,
         jnp.sum(ref_p * ref_p, axis=-1, keepdims=True)
         + _MASK_OFFSET * (1.0 - ref_m_f)[..., None],
         ones1, zeros3], axis=-1)                                          # (Bp,K,8)
    src_ext = jnp.concatenate(
        [-2.0 * src_t, ones1,
         jnp.sum(src_t * src_t, axis=-1, keepdims=True)
         + _MASK_OFFSET * (1.0 - src_m_f)[..., None],
         zeros3], axis=-1)                                                 # (Bp,K,8)

    # lane-dense packing of the four small per-point vectors -> one DMA,
    # no (B,K,1) tensors (128x lane padding) anywhere.
    aux = jnp.stack([ref_m_f, src_m_f, s_row, s_col], axis=1)              # (Bp,4,K)

    grid = (b_pad // bt,)
    kernel = functools.partial(_overall_loss_kernel, n_valid=N, m_valid=M)

    in_specs = [
        pl.BlockSpec((n_pad, d_pad), lambda g: (0, 0)),      # a_full   (resident)
        pl.BlockSpec((m_pad, d_pad), lambda g: (0, 0)),      # b_full   (resident)
        pl.BlockSpec((2, p_pad), lambda g: (0, 0)),          # gt indices
        pl.BlockSpec((1, p_pad), lambda g: (0, 0)),          # gt overlaps
        pl.BlockSpec((bt, K, 8), lambda g: (g, 0, 0)),       # ref_ext  (batch-tiled)
        pl.BlockSpec((bt, K, 8), lambda g: (g, 0, 0)),       # src_ext
        pl.BlockSpec((bt, K, K), lambda g: (g, 0, 0)),       # matching scores main
        pl.BlockSpec((bt, 4, K), lambda g: (g, 0, 0)),       # packed masks + slack scores
    ]
    out_specs = pl.BlockSpec((1, 2), lambda g: (0, 0),
                             memory_space=pltpu.MemorySpace.SMEM)

    flops = int(2 * n_pad * m_pad * d_pad + 2 * n_pad * m_pad * p_pad
                + 4 * b_pad * K * K * 8 + 40 * n_pad * m_pad)
    transcendentals = int(3 * n_pad * m_pad)
    bytes_accessed = int(4 * (a_full.size + b_full.size + gt_idx2.size
                              + gt_ovl_row.size + ref_ext.size + src_ext.size
                              + s_main.size + aux.size) + 8)

    out = pl.pallas_call(
        kernel,
        out_shape=jax.ShapeDtypeStruct((1, 2), jnp.float32),
        grid=grid,
        in_specs=in_specs,
        out_specs=out_specs,
        scratch_shapes=[pltpu.SMEM((2,), jnp.float32)],      # fine total/count acc
        compiler_params=pltpu.CompilerParams(
            dimension_semantics=("arbitrary",),              # sequential accumulation
            vmem_limit_bytes=64 * 1024 * 1024),
        cost_estimate=pl.CostEstimate(flops=flops,
                                      transcendentals=transcendentals,
                                      bytes_accessed=bytes_accessed),
    )(a_full, b_full, gt_idx2, gt_ovl_row, ref_ext, src_ext, s_main, aux)

    c_loss = out[0, 0]
    f_loss = out[0, 1]
    loss = WEIGHT_COARSE * c_loss + WEIGHT_FINE * f_loss
    return {'loss': loss, 'c_loss': c_loss, 'f_loss': f_loss}


# ----------------------------------------------------------------------------
# Pure-JAX reference (mirrors the PyTorch semantics, unpadded) for sanity check
# ----------------------------------------------------------------------------
def _coarse_ref(ref_f, src_f, ref_e, src_e, ovl):
    hp = jax.lax.Precision.HIGHEST
    xy = jnp.matmul(ref_f, src_f.T, precision=hp)
    d1 = jnp.maximum(2.0 - 2.0 * xy, 0.0)
    xy_e = jnp.matmul(ref_e, src_e.T, precision=hp)
    d2 = jnp.maximum(jnp.sum(ref_e ** 2, 1)[:, None] - 2.0 * xy_e
                     + jnp.sum(src_e ** 2, 1)[None, :], 0.0) * 0.1
    fd = jnp.sqrt((1.0 - GAMMA) * d1 + GAMMA * d2)
    pos = ovl > POSITIVE_OVERLAP
    neg = ovl == 0.0
    ps = jnp.sqrt(ovl * pos.astype(jnp.float32))
    row_m = (pos.sum(1) > 0) & (neg.sum(1) > 0)
    col_m = (pos.sum(0) > 0) & (neg.sum(0) > 0)
    pw = jnp.maximum(fd - 1e5 * (~pos).astype(jnp.float32) - POSITIVE_OPTIMAL, 0.0) * ps
    nw = jnp.maximum(NEGATIVE_OPTIMAL - (fd + 1e5 * (~neg).astype(jnp.float32)), 0.0)
    lpr = jax.nn.logsumexp(LOG_SCALE * (fd - POSITIVE_MARGIN) * pw, axis=1)
    lpc = jax.nn.logsumexp(LOG_SCALE * (fd - POSITIVE_MARGIN) * pw, axis=0)
    lnr = jax.nn.logsumexp(LOG_SCALE * (NEGATIVE_MARGIN - fd) * nw, axis=1)
    lnc = jax.nn.logsumexp(LOG_SCALE * (NEGATIVE_MARGIN - fd) * nw, axis=0)
    lr = jax.nn.softplus(lpr + lnr) / LOG_SCALE
    lc = jax.nn.softplus(lpc + lnc) / LOG_SCALE
    return 0.5 * (lr[row_m].mean() + lc[col_m].mean())


def _fine_ref(ref_p, src_p, ref_m, src_m, scores, transform):
    rot = transform[:3, :3]
    trans = transform[:3, 3]
    src_t = jnp.einsum('bkd,ed->bke', src_p, rot) + trans
    x2 = jnp.sum(ref_p ** 2, -1)[:, :, None]
    y2 = jnp.sum(src_t ** 2, -1)[:, None, :]
    xy = jnp.einsum('bkd,bjd->bkj', ref_p, src_t)
    dists = jnp.maximum(x2 - 2.0 * xy + y2, 0.0)
    gt_masks = ref_m[:, :, None] & src_m[:, None, :]
    gt_corr = (dists < POSITIVE_RADIUS ** 2) & gt_masks
    slack_row = (gt_corr.sum(2) == 0) & ref_m
    slack_col = (gt_corr.sum(1) == 0) & src_m
    K = ref_p.shape[1]
    labels = jnp.zeros(scores.shape, bool)
    labels = labels.at[:, :K, :K].set(gt_corr)
    labels = labels.at[:, :K, K].set(slack_row)
    labels = labels.at[:, K, :K].set(slack_col)
    lf = labels.astype(jnp.float32)
    return -(jnp.sum(scores * lf) / jnp.sum(lf))


if __name__ == "__main__":
    key = jax.random.PRNGKey(0)
    ks = jax.random.split(key, 12)

    # coarse shapes
    N, M, C, E = 64, 48, 32, 16
    ref_feats = jax.random.normal(ks[0], (N, C), jnp.float32)
    ref_feats = ref_feats / jnp.linalg.norm(ref_feats, axis=1, keepdims=True)
    src_feats = jax.random.normal(ks[1], (M, C), jnp.float32)
    src_feats = src_feats / jnp.linalg.norm(src_feats, axis=1, keepdims=True)
    ref_equ = 0.5 * jax.random.normal(ks[2], (N, E), jnp.float32)
    src_equ = 0.5 * jax.random.normal(ks[3], (M, E), jnp.float32)

    n_corr = 24
    ref_idx = jax.random.permutation(ks[4], N)[:n_corr]
    src_idx = jax.random.permutation(ks[5], M)[:n_corr]
    gt_node_corr_indices = jnp.stack([ref_idx, src_idx], axis=1).astype(jnp.int32)
    gt_node_corr_overlaps = jax.random.uniform(ks[6], (n_corr,), jnp.float32,
                                               minval=0.05, maxval=0.9)

    # fine shapes
    B, K = 4, 8
    ref_knn_pts = 0.3 * jax.random.normal(ks[7], (B, K, 3), jnp.float32)
    src_knn_pts = 0.3 * jax.random.normal(ks[8], (B, K, 3), jnp.float32)
    ref_knn_masks = jax.random.uniform(ks[9], (B, K)) > 0.2
    src_knn_masks = jax.random.uniform(ks[10], (B, K)) > 0.2
    matching_scores = jax.random.normal(ks[11], (B, K + 1, K + 1), jnp.float32)

    theta = 0.3
    rot = jnp.array([[jnp.cos(theta), -jnp.sin(theta), 0.0],
                     [jnp.sin(theta), jnp.cos(theta), 0.0],
                     [0.0, 0.0, 1.0]], jnp.float32)
    transform = jnp.eye(4, dtype=jnp.float32).at[:3, :3].set(rot)
    transform = transform.at[:3, 3].set(jnp.array([0.1, -0.05, 0.2], jnp.float32))

    output_dict = {
        'ref_feats_c': ref_feats, 'src_feats_c': src_feats,
        'ref_equ_c': ref_equ, 'src_equ_c': src_equ,
        'gt_node_corr_indices': gt_node_corr_indices,
        'gt_node_corr_overlaps': gt_node_corr_overlaps,
        'ref_node_corr_knn_points': ref_knn_pts,
        'src_node_corr_knn_points': src_knn_pts,
        'ref_node_corr_knn_masks': ref_knn_masks,
        'src_node_corr_knn_masks': src_knn_masks,
        'matching_scores': matching_scores,
    }
    data_dict = {'transform': transform}

    # fine_batch_tile=2 exercises the batch-tiled grid + SMEM accumulation path
    result = overall_loss(output_dict, data_dict, fine_batch_tile=2)
    jax.block_until_ready(result['loss'])

    # sanity-check against a plain-JAX (unpadded) reference of the same math
    overlaps = jnp.zeros((N, M), jnp.float32).at[ref_idx, src_idx].set(gt_node_corr_overlaps)
    c_ref = _coarse_ref(ref_feats, src_feats, ref_equ, src_equ, overlaps)
    f_ref = _fine_ref(ref_knn_pts, src_knn_pts, ref_knn_masks, src_knn_masks,
                      matching_scores, transform)
    np.testing.assert_allclose(np.asarray(result['c_loss']), np.asarray(c_ref),
                               rtol=1e-2, atol=1e-2)
    np.testing.assert_allclose(np.asarray(result['f_loss']), np.asarray(f_ref),
                               rtol=1e-2, atol=1e-2)
    np.testing.assert_allclose(
        np.asarray(result['loss']),
        np.asarray(WEIGHT_COARSE * c_ref + WEIGHT_FINE * f_ref),
        rtol=1e-2, atol=1e-2)

    print("KERNEL_OK")
</pallas_src>

<mosaic_0001>
module attributes {stable_mosaic.version = 11 : i64} {
  func.func @_overall_loss_kernel(%arg0: i32, %arg1: memref<64x128xf32, #tpu.memory_space<vmem>>, %arg2: memref<128x128xf32, #tpu.memory_space<vmem>>, %arg3: memref<2x128xi32, #tpu.memory_space<vmem>>, %arg4: memref<1x128xf32, #tpu.memory_space<vmem>>, %arg5: memref<2x8x8xf32, #tpu.memory_space<vmem>>, %arg6: memref<2x8x8xf32, #tpu.memory_space<vmem>>, %arg7: memref<2x8x8xf32, #tpu.memory_space<vmem>>, %arg8: memref<2x4x8xf32, #tpu.memory_space<vmem>>, %arg9: memref<1x2xf32, #tpu.memory_space<smem>>, %arg10: memref<2xf32, #tpu.memory_space<smem>>) attributes {dimension_semantics = [#tpu.dimension_semantics<arbitrary>], iteration_bounds = array<i64: 2>, scalar_prefetch = 0 : i64, scratch_operands = 1 : i64, tpu.core_type = #tpu.core_type<tc>, window_params = [{pipeline_mode = #tpu.pipeline_mode<synchronous>, transform_indices = @transform_0, window_bounds = array<i64: 64, 128>}, {pipeline_mode = #tpu.pipeline_mode<synchronous>, transform_indices = @transform_1, window_bounds = array<i64: 128, 128>}, {pipeline_mode = #tpu.pipeline_mode<synchronous>, transform_indices = @transform_2, window_bounds = array<i64: 2, 128>}, {pipeline_mode = #tpu.pipeline_mode<synchronous>, transform_indices = @transform_3, window_bounds = array<i64: 1, 128>}, {transform_indices = @transform_4, window_bounds = array<i64: 2, 8, 8>}, {transform_indices = @transform_5, window_bounds = array<i64: 2, 8, 8>}, {transform_indices = @transform_6, window_bounds = array<i64: 2, 8, 8>}, {transform_indices = @transform_7, window_bounds = array<i64: 2, 4, 8>}, {transform_indices = @transform_8, window_bounds = array<i64: 1, 2>}]} {
    %c0_i32 = arith.constant 0 : i32
    %0 = arith.cmpi eq, %arg0, %c0_i32 : i32
    %1 = arith.extui %0 : i1 to i32
    %c0_i32_0 = arith.constant 0 : i32
    %2 = arith.cmpi ne, %1, %c0_i32_0 : i32
    scf.if %2 {
      %cst_33 = arith.constant 0.000000e+00 : f32
      %c0_34 = arith.constant 0 : index
      %76 = memref.load %arg10[%c0_34] : memref<2xf32, #tpu.memory_space<smem>>
      memref.store %cst_33, %arg10[%c0_34] : memref<2xf32, #tpu.memory_space<smem>>
      %cst_35 = arith.constant 0.000000e+00 : f32
      %c1_36 = arith.constant 1 : index
      %77 = memref.load %arg10[%c1_36] : memref<2xf32, #tpu.memory_space<smem>>
      memref.store %cst_35, %arg10[%c1_36] : memref<2xf32, #tpu.memory_space<smem>>
    } else {
    }
    %c0 = arith.constant 0 : index
    %c0_1 = arith.constant 0 : index
    %c0_2 = arith.constant 0 : index
    %3 = vector.load %arg5[%c0, %c0_1, %c0_2] : memref<2x8x8xf32, #tpu.memory_space<vmem>>, vector<2x8x8xf32>
    %c0_3 = arith.constant 0 : index
    %c0_4 = arith.constant 0 : index
    %c0_5 = arith.constant 0 : index
    %4 = vector.load %arg6[%c0_3, %c0_4, %c0_5] : memref<2x8x8xf32, #tpu.memory_space<vmem>>, vector<2x8x8xf32>
    "tpu.trace_start"() <{level = 10 : i32, message = "bkd,bjd->bkj"}> : () -> ()
    %cst = arith.constant dense<0.000000e+00> : vector<2x8x8xf32>
    %5 = tpu.matmul %3, %4, %cst {dimension_numbers = #tpu.dot_dimension_numbers<[2], [2], [1], [1], [0, 0, 0, 1, 1, 1], [0], [0]>} : vector<2x8x8xf32>, vector<2x8x8xf32>, vector<2x8x8xf32> -> vector<2x8x8xf32>
    "tpu.trace_stop"() : () -> ()
    "tpu.trace_start"() <{level = 10 : i32, message = "bjd,bkd->bjk"}> : () -> ()
    %cst_6 = arith.constant dense<0.000000e+00> : vector<2x8x8xf32>
    %6 = tpu.matmul %4, %3, %cst_6 {dimension_numbers = #tpu.dot_dimension_numbers<[2], [2], [1], [1], [0, 0, 0, 1, 1, 1], [0], [0]>} : vector<2x8x8xf32>, vector<2x8x8xf32>, vector<2x8x8xf32> -> vector<2x8x8xf32>
    %cst_7 = arith.constant 2.500000e-03 : f32
    "tpu.trace_stop"() : () -> ()
    %7 = vector.broadcast %cst_7 : f32 to vector<2x8x8xf32>
    %8 = arith.cmpf olt, %5, %7 : vector<2x8x8xf32>
    %9 = arith.extui %8 : vector<2x8x8xi1> to vector<2x8x8xi32>
    %10 = arith.sitofp %9 : vector<2x8x8xi32> to vector<2x8x8xf32>
    %cst_8 = arith.constant 2.500000e-03 : f32
    %11 = vector.broadcast %cst_8 : f32 to vector<2x8x8xf32>
    %12 = arith.cmpf olt, %6, %11 : vector<2x8x8xf32>
    %13 = arith.extui %12 : vector<2x8x8xi1> to vector<2x8x8xi32>
    %14 = arith.sitofp %13 : vector<2x8x8xi32> to vector<2x8x8xf32>
    %c0_9 = arith.constant 0 : index
    %c0_10 = arith.constant 0 : index
    %c0_11 = arith.constant 0 : index
    %15 = vector.load %arg8[%c0_9, %c0_10, %c0_11] : memref<2x4x8xf32, #tpu.memory_space<vmem>>, vector<2x4x8xf32>
    %16 = vector.extract_strided_slice %15 {offsets = [0, 0, 0], sizes = [2, 1, 8], strides = [1, 1, 1]} : vector<2x4x8xf32> to vector<2x1x8xf32>
    %17 = vector.extract_strided_slice %15 {offsets = [0, 1, 0], sizes = [2, 1, 8], strides = [1, 1, 1]} : vector<2x4x8xf32> to vector<2x1x8xf32>
    %18 = vector.extract_strided_slice %15 {offsets = [0, 2, 0], sizes = [2, 1, 8], strides = [1, 1, 1]} : vector<2x4x8xf32> to vector<2x1x8xf32>
    %19 = vector.extract_strided_slice %15 {offsets = [0, 3, 0], sizes = [2, 1, 8], strides = [1, 1, 1]} : vector<2x4x8xf32> to vector<2x1x8xf32>
    %cst_12 = arith.constant dense<0.000000e+00> : vector<2x8xf32>
    %20 = vector.multi_reduction <add>, %10, %cst_12 [1] : vector<2x8x8xf32> to vector<2x8xf32>
    %21 = vector.shape_cast %20 : vector<2x8xf32> to vector<2x1x8xf32>
    %cst_13 = arith.constant dense<0.000000e+00> : vector<2x8xf32>
    %22 = vector.multi_reduction <add>, %14, %cst_13 [1] : vector<2x8x8xf32> to vector<2x8xf32>
    %23 = vector.shape_cast %22 : vector<2x8xf32> to vector<2x1x8xf32>
    %cst_14 = arith.constant 0.000000e+00 : f32
    %24 = vector.broadcast %cst_14 : f32 to vector<2x1x8xf32>
    %25 = arith.cmpf oeq, %23, %24 : vector<2x1x8xf32>
    %cst_15 = arith.constant 0.000000e+00 : f32
    %26 = vector.broadcast %cst_15 : f32 to vector<2x1x8xf32>
    %27 = arith.select %25, %16, %26 : vector<2x1x8xi1>, vector<2x1x8xf32>
    %cst_16 = arith.constant 0.000000e+00 : f32
    %28 = vector.broadcast %cst_16 : f32 to vector<2x1x8xf32>
    %29 = arith.cmpf oeq, %21, %28 : vector<2x1x8xf32>
    %cst_17 = arith.constant 0.000000e+00 : f32
    %30 = vector.broadcast %cst_17 : f32 to vector<2x1x8xf32>
    %31 = arith.select %29, %17, %30 : vector<2x1x8xi1>, vector<2x1x8xf32>
    %c0_18 = arith.constant 0 : index
    %c0_19 = arith.constant 0 : index
    %c0_20 = arith.constant 0 : index
    %32 = vector.load %arg7[%c0_18, %c0_19, %c0_20] : memref<2x8x8xf32, #tpu.memory_space<vmem>>, vector<2x8x8xf32>
    %33 = arith.mulf %32, %10 : vector<2x8x8xf32>
    %34 = vector.shape_cast %33 : vector<2x8x8xf32> to vector<1x2x8x8xf32>
    %cst_21 = arith.constant dense<0.000000e+00> : vector<1xf32>
    %35 = vector.multi_reduction <add>, %34, %cst_21 [1, 2, 3] : vector<1x2x8x8xf32> to vector<1xf32>
    %36 = vector.shape_cast %35 : vector<1xf32> to vector<1x1x1x1xf32>
    %37 = vector.extract %36[0, 0, 0, 0] : f32 from vector<1x1x1x1xf32>
    %38 = arith.mulf %18, %27 : vector<2x1x8xf32>
    %39 = vector.shape_cast %38 : vector<2x1x8xf32> to vector<1x2x1x8xf32>
    %cst_22 = arith.constant dense<0.000000e+00> : vector<1xf32>
    %40 = vector.multi_reduction <add>, %39, %cst_22 [1, 2, 3] : vector<1x2x1x8xf32> to vector<1xf32>
    %41 = vector.shape_cast %40 : vector<1xf32> to vector<1x1x1x1xf32>
    %42 = vector.extract %41[0, 0, 0, 0] : f32 from vector<1x1x1x1xf32>
    %43 = arith.addf %37, %42 : f32
    %44 = arith.mulf %19, %31 : vector<2x1x8xf32>
    %45 = vector.shape_cast %44 : vector<2x1x8xf32> to vector<1x2x1x8xf32>
    %cst_23 = arith.constant dense<0.000000e+00> : vector<1xf32>
    %46 = vector.multi_reduction <add>, %45, %cst_23 [1, 2, 3] : vector<1x2x1x8xf32> to vector<1xf32>
    %47 = vector.shape_cast %46 : vector<1xf32> to vector<1x1x1x1xf32>
    %48 = vector.extract %47[0, 0, 0, 0] : f32 from vector<1x1x1x1xf32>
    %49 = arith.addf %43, %48 : f32
    %50 = vector.shape_cast %21 : vector<2x1x8xf32> to vector<1x2x1x8xf32>
    %cst_24 = arith.constant dense<0.000000e+00> : vector<1xf32>
    %51 = vector.multi_reduction <add>, %50, %cst_24 [1, 2, 3] : vector<1x2x1x8xf32> to vector<1xf32>
    %52 = vector.shape_cast %51 : vector<1xf32> to vector<1x1x1x1xf32>
    %53 = vector.extract %52[0, 0, 0, 0] : f32 from vector<1x1x1x1xf32>
    %54 = vector.shape_cast %27 : vector<2x1x8xf32> to vector<1x2x1x8xf32>
    %cst_25 = arith.constant dense<0.000000e+00> : vector<1xf32>
    %55 = vector.multi_reduction <add>, %54, %cst_25 [1, 2, 3] : vector<1x2x1x8xf32> to vector<1xf32>
    %56 = vector.shape_cast %55 : vector<1xf32> to vector<1x1x1x1xf32>
    %57 = vector.extract %56[0, 0, 0, 0] : f32 from vector<1x1x1x1xf32>
    %58 = arith.addf %53, %57 : f32
    %59 = vector.shape_cast %31 : vector<2x1x8xf32> to vector<1x2x1x8xf32>
    %cst_26 = arith.constant dense<0.000000e+00> : vector<1xf32>
    %60 = vector.multi_reduction <add>, %59, %cst_26 [1, 2, 3] : vector<1x2x1x8xf32> to vector<1xf32>
    %61 = vector.shape_cast %60 : vector<1xf32> to vector<1x1x1x1xf32>
    %62 = vector.extract %61[0, 0, 0, 0] : f32 from vector<1x1x1x1xf32>
    %63 = arith.addf %58, %62 : f32
    %c0_27 = arith.constant 0 : index
    %64 = memref.load %arg10[%c0_27] : memref<2xf32, #tpu.memory_space<smem>>
    %65 = arith.addf %64, %49 : f32
    %c0_28 = arith.constant 0 : index
    %66 = memref.load %arg10[%c0_28] : memref<2xf32, #tpu.memory_space<smem>>
    memref.store %65, %arg10[%c0_28] : memref<2xf32, #tpu.memory_space<smem>>
    %c1 = arith.constant 1 : index
    %67 = memref.load %arg10[%c1] : memref<2xf32, #tpu.memory_space<smem>>
    %68 = arith.addf %67, %63 : f32
    %c1_29 = arith.constant 1 : index
    %69 = memref.load %arg10[%c1_29] : memref<2xf32, #tpu.memory_space<smem>>
    memref.store %68, %arg10[%c1_29] : memref<2xf32, #tpu.memory_space<smem>>
    %c1_i32 = arith.constant 1 : i32
    %70 = arith.cmpi eq, %arg0, %c1_i32 : i32
    %71 = arith.extui %70 : i1 to i32
    %c0_i32_30 = arith.constant 0 : i32
    %72 = arith.cmpi ne, %71, %c0_i32_30 : i32
    scf.if %72 {
      %c0_33 = arith.constant 0 : index
      %76 = memref.load %arg10[%c0_33] : memref<2xf32, #tpu.memory_space<smem>>
      %c1_34 = arith.constant 1 : index
      %77 = memref.load %arg10[%c1_34] : memref<2xf32, #tpu.memory_space<smem>>
      %78 = arith.divf %76, %77 : f32
      %cst_35 = arith.constant 0.000000e+00 : f32
      %79 = arith.subf %cst_35, %78 : f32
      %c0_36 = arith.constant 0 : index
      %c1_37 = arith.constant 1 : index
      %80 = memref.load %arg9[%c0_36, %c1_37] : memref<1x2xf32, #tpu.memory_space<smem>>
      memref.store %79, %arg9[%c0_36, %c1_37] : memref<1x2xf32, #tpu.memory_space<smem>>
    } else {
    }
    %c0_i32_31 = arith.constant 0 : i32
    %73 = arith.cmpi eq, %arg0, %c0_i32_31 : i32
    %74 = arith.extui %73 : i1 to i32
    %c0_i32_32 = arith.constant 0 : i32
    %75 = arith.cmpi ne, %74, %c0_i32_32 : i32
    scf.if %75 {
      %c0_33 = arith.constant 0 : index
      %c0_34 = arith.constant 0 : index
      %76 = vector.load %arg1[%c0_33, %c0_34] : memref<64x128xf32, #tpu.memory_space<vmem>>, vector<64x128xf32>
      %c0_35 = arith.constant 0 : index
      %c0_36 = arith.constant 0 : index
      %77 = vector.load %arg2[%c0_35, %c0_36] : memref<128x128xf32, #tpu.memory_space<vmem>>, vector<128x128xf32>
      %cst_37 = arith.constant dense<0.000000e+00> : vector<64x128xf32>
      %78 = tpu.matmul %76, %77, %cst_37 {dimension_numbers = #tpu.dot_dimension_numbers<[1], [1], [0], [0], [0, 0, 1, 0], [], []>} : vector<64x128xf32>, vector<128x128xf32>, vector<64x128xf32> -> vector<64x128xf32>
      %cst_38 = arith.constant 1.000000e+00 : f32
      %79 = vector.broadcast %cst_38 : f32 to vector<64x128xf32>
      %80 = arith.addf %78, %79 : vector<64x128xf32>
      %cst_39 = arith.constant 0.000000e+00 : f32
      %81 = vector.broadcast %cst_39 : f32 to vector<64x128xf32>
      %82 = arith.maximumf %80, %81 : vector<64x128xf32>
      %83 = math.sqrt %82 : vector<64x128xf32>
      %c0_40 = arith.constant 0 : index
      %c0_41 = arith.constant 0 : index
      %84 = vector.load %arg3[%c0_40, %c0_41] : memref<2x128xi32, #tpu.memory_space<vmem>>, vector<2x128xi32>
      %85 = tpu.iota {dimensions = array<i32: 0>} : vector<64x128xi32>
      %86 = tpu.iota {dimensions = array<i32: 0>} : vector<128x128xi32>
      %87 = vector.extract_strided_slice %84 {offsets = [0, 0], sizes = [1, 128], strides = [1, 1]} : vector<2x128xi32> to vector<1x128xi32>
      %88 = vector.broadcast %87 : vector<1x128xi32> to vector<64x128xi32>
      %89 = arith.cmpi eq, %85, %88 : vector<64x128xi32>
      %c0_42 = arith.constant 0 : index
      %c0_43 = arith.constant 0 : index
      %90 = vector.load %arg4[%c0_42, %c0_43] : memref<1x128xf32, #tpu.memory_space<vmem>>, vector<1x128xf32>
      %cst_44 = arith.constant 0.000000e+00 : f32
      %91 = vector.shape_cast %90 : vector<1x128xf32> to vector<1x128xf32>
      %92 = vector.broadcast %91 : vector<1x128xf32> to vector<64x128xf32>
      %93 = vector.broadcast %cst_44 : f32 to vector<64x128xf32>
      %94 = arith.select %89, %92, %93 : vector<64x128xi1>, vector<64x128xf32>
      %95 = vector.extract_strided_slice %84 {offsets = [1, 0], sizes = [1, 128], strides = [1, 1]} : vector<2x128xi32> to vector<1x128xi32>
      %96 = vector.broadcast %95 : vector<1x128xi32> to vector<128x128xi32>
      %97 = arith.cmpi eq, %86, %96 : vector<128x128xi32>
      %98 = arith.extui %97 : vector<128x128xi1> to vector<128x128xi32>
      %99 = arith.sitofp %98 : vector<128x128xi32> to vector<128x128xf32>
      %cst_45 = arith.constant dense<0.000000e+00> : vector<64x128xf32>
      %100 = tpu.matmul %94, %99, %cst_45 {dimension_numbers = #tpu.dot_dimension_numbers<[1], [1], [0], [0], [0, 0, 1, 0], [], []>, precision = #tpu.contract_precision<fp32>} : vector<64x128xf32>, vector<128x128xf32>, vector<64x128xf32> -> vector<64x128xf32>
      %101 = tpu.iota {dimensions = array<i32: 0>} : vector<64x128xi32>
      %c64_i32 = arith.constant 64 : i32
      %102 = vector.broadcast %c64_i32 : i32 to vector<64x128xi32>
      %103 = arith.cmpi slt, %101, %102 : vector<64x128xi32>
      %104 = tpu.iota {dimensions = array<i32: 1>} : vector<64x128xi32>
      %c48_i32 = arith.constant 48 : i32
      %105 = vector.broadcast %c48_i32 : i32 to vector<64x128xi32>
      %106 = arith.cmpi slt, %104, %105 : vector<64x128xi32>
      %107 = arith.andi %103, %106 : vector<64x128xi1>
      %cst_46 = arith.constant 1.000000e-01 : f32
      %108 = vector.broadcast %cst_46 : f32 to vector<64x128xf32>
      %109 = arith.cmpf ogt, %100, %108 : vector<64x128xf32>
      %cst_47 = arith.constant 0.000000e+00 : f32
      %110 = vector.broadcast %cst_47 : f32 to vector<64x128xf32>
      %111 = arith.cmpf oeq, %100, %110 : vector<64x128xf32>
      %112 = arith.andi %111, %107 : vector<64x128xi1>
      %113 = arith.extui %109 : vector<64x128xi1> to vector<64x128xi32>
      %114 = arith.sitofp %113 : vector<64x128xi32> to vector<64x128xf32>
      %115 = arith.extui %112 : vector<64x128xi1> to vector<64x128xi32>
      %116 = arith.sitofp %115 : vector<64x128xi32> to vector<64x128xf32>
      %cst_48 = arith.constant dense<0.000000e+00> : vector<64xf32>
      %117 = vector.multi_reduction <add>, %114, %cst_48 [1] : vector<64x128xf32> to vector<64xf32>
      %118 = vector.shape_cast %117 : vector<64xf32> to vector<64x1xf32>
      %cst_49 = arith.constant 0.000000e+00 : f32
      %119 = vector.broadcast %cst_49 : f32 to vector<64x1xf32>
      %120 = arith.cmpf ogt, %118, %119 : vector<64x1xf32>
      %cst_50 = arith.constant dense<0.000000e+00> : vector<64xf32>
      %121 = vector.multi_reduction <add>, %116, %cst_50 [1] : vector<64x128xf32> to vector<64xf32>
      %122 = vector.shape_cast %121 : vector<64xf32> to vector<64x1xf32>
      %cst_51 = arith.constant 0.000000e+00 : f32
      %123 = vector.broadcast %cst_51 : f32 to vector<64x1xf32>
      %124 = arith.cmpf ogt, %122, %123 : vector<64x1xf32>
      %125 = arith.andi %120, %124 : vector<64x1xi1>
      %126 = arith.extui %125 : vector<64x1xi1> to vector<64x1xi32>
      %127 = arith.sitofp %126 : vector<64x1xi32> to vector<64x1xf32>
      %cst_52 = arith.constant dense<0.000000e+00> : vector<128xf32>
      %128 = vector.multi_reduction <add>, %114, %cst_52 [0] : vector<64x128xf32> to vector<128xf32>
      %129 = vector.shape_cast %128 : vector<128xf32> to vector<1x128xf32>
      %cst_53 = arith.constant 0.000000e+00 : f32
      %130 = vector.broadcast %cst_53 : f32 to vector<1x128xf32>
      %131 = arith.cmpf ogt, %129, %130 : vector<1x128xf32>
      %cst_54 = arith.constant dense<0.000000e+00> : vector<128xf32>
      %132 = vector.multi_reduction <add>, %116, %cst_54 [0] : vector<64x128xf32> to vector<128xf32>
      %133 = vector.shape_cast %132 : vector<128xf32> to vector<1x128xf32>
      %cst_55 = arith.constant 0.000000e+00 : f32
      %134 = vector.broadcast %cst_55 : f32 to vector<1x128xf32>
      %135 = arith.cmpf ogt, %133, %134 : vector<1x128xf32>
      %136 = arith.andi %131, %135 : vector<1x128xi1>
      %137 = arith.extui %136 : vector<1x128xi1> to vector<1x128xi32>
      %138 = arith.sitofp %137 : vector<1x128xi32> to vector<1x128xf32>
      %cst_56 = arith.constant 1.000000e-01 : f32
      %139 = vector.broadcast %cst_56 : f32 to vector<64x128xf32>
      %140 = arith.subf %83, %139 : vector<64x128xf32>
      %cst_57 = arith.constant 0.000000e+00 : f32
      %141 = vector.broadcast %cst_57 : f32 to vector<64x128xf32>
      %142 = arith.maximumf %140, %141 : vector<64x128xf32>
      %143 = arith.mulf %114, %142 : vector<64x128xf32>
      %cst_58 = arith.constant 0.000000e+00 : f32
      %144 = vector.broadcast %cst_58 : f32 to vector<64x128xf32>
      %145 = arith.maximumf %100, %144 : vector<64x128xf32>
      %146 = math.sqrt %145 : vector<64x128xf32>
      %147 = arith.mulf %143, %146 : vector<64x128xf32>
      %cst_59 = arith.constant 1.000000e-01 : f32
      %148 = vector.broadcast %cst_59 : f32 to vector<64x128xf32>
      %149 = arith.subf %83, %148 : vector<64x128xf32>
      %cst_60 = arith.constant 2.400000e+01 : f32
      %150 = vector.broadcast %cst_60 : f32 to vector<64x128xf32>
      %151 = arith.mulf %150, %149 : vector<64x128xf32>
      %152 = arith.mulf %151, %147 : vector<64x128xf32>
      %cst_61 = arith.constant -1.000000e+09 : f32
      %153 = vector.broadcast %cst_61 : f32 to vector<64x128xf32>
      %154 = arith.select %107, %152, %153 : vector<64x128xi1>, vector<64x128xf32>
      %155 = vector.shape_cast %154 : vector<64x128xf32> to vector<1x64x128xf32>
      %cst_62 = arith.constant dense<0xFF800000> : vector<1xf32>
      %156 = vector.multi_reduction <maximumf>, %155, %cst_62 [1, 2] : vector<1x64x128xf32> to vector<1xf32>
      %157 = vector.shape_cast %156 : vector<1xf32> to vector<1x1x1xf32>
      %158 = vector.extract %157[0, 0, 0] : f32 from vector<1x1x1xf32>
      %cst_63 = arith.constant 0.000000e+00 : f32
      %159 = arith.maximumf %158, %cst_63 : f32
      %160 = vector.broadcast %159 : f32 to vector<64x128xf32>
      %161 = arith.subf %154, %160 : vector<64x128xf32>
      %162 = math.exp %161 : vector<64x128xf32>
      %cst_64 = arith.constant dense<0.000000e+00> : vector<64xf32>
      %163 = vector.multi_reduction <add>, %162, %cst_64 [1] : vector<64x128xf32> to vector<64xf32>
      %164 = vector.shape_cast %163 : vector<64xf32> to vector<64x1xf32>
      %165 = math.log %164 : vector<64x1xf32>
      %166 = vector.broadcast %159 : f32 to vector<64x1xf32>
      %167 = arith.addf %166, %165 : vector<64x1xf32>
      %cst_65 = arith.constant dense<0.000000e+00> : vector<128xf32>
      %168 = vector.multi_reduction <add>, %162, %cst_65 [0] : vector<64x128xf32> to vector<128xf32>
      %169 = vector.shape_cast %168 : vector<128xf32> to vector<1x128xf32>
      %170 = math.log %169 : vector<1x128xf32>
      %171 = vector.broadcast %159 : f32 to vector<1x128xf32>
      %172 = arith.addf %171, %170 : vector<1x128xf32>
      %cst_66 = arith.constant 1.400000e+00 : f32
      %173 = vector.broadcast %cst_66 : f32 to vector<64x128xf32>
      %174 = arith.subf %173, %83 : vector<64x128xf32>
      %cst_67 = arith.constant 0.000000e+00 : f32
      %175 = vector.broadcast %cst_67 : f32 to vector<64x128xf32>
      %176 = arith.maximumf %174, %175 : vector<64x128xf32>
      %177 = arith.mulf %116, %176 : vector<64x128xf32>
      %cst_68 = arith.constant 1.400000e+00 : f32
      %178 = vector.broadcast %cst_68 : f32 to vector<64x128xf32>
      %179 = arith.subf %178, %83 : vector<64x128xf32>
      %cst_69 = arith.constant 2.400000e+01 : f32
      %180 = vector.broadcast %cst_69 : f32 to vector<64x128xf32>
      %181 = arith.mulf %180, %179 : vector<64x128xf32>
      %182 = arith.mulf %181, %177 : vector<64x128xf32>
      %cst_70 = arith.constant -1.000000e+09 : f32
      %183 = vector.broadcast %cst_70 : f32 to vector<64x128xf32>
      %184 = arith.select %107, %182, %183 : vector<64x128xi1>, vector<64x128xf32>
      %185 = vector.shape_cast %184 : vector<64x128xf32> to vector<1x64x128xf32>
      %cst_71 = arith.constant dense<0xFF800000> : vector<1xf32>
      %186 = vector.multi_reduction <maximumf>, %185, %cst_71 [1, 2] : vector<1x64x128xf32> to vector<1xf32>
      %187 = vector.shape_cast %186 : vector<1xf32> to vector<1x1x1xf32>
      %188 = vector.extract %187[0, 0, 0] : f32 from vector<1x1x1xf32>
      %cst_72 = arith.constant 0.000000e+00 : f32
      %189 = arith.maximumf %188, %cst_72 : f32
      %190 = vector.broadcast %189 : f32 to vector<64x128xf32>
      %191 = arith.subf %184, %190 : vector<64x128xf32>
      %192 = math.exp %191 : vector<64x128xf32>
      %cst_73 = arith.constant dense<0.000000e+00> : vector<64xf32>
      %193 = vector.multi_reduction <add>, %192, %cst_73 [1] : vector<64x128xf32> to vector<64xf32>
      %194 = vector.shape_cast %193 : vector<64xf32> to vector<64x1xf32>
      %195 = math.log %194 : vector<64x1xf32>
      %196 = vector.broadcast %189 : f32 to vector<64x1xf32>
      %197 = arith.addf %196, %195 : vector<64x1xf32>
      %cst_74 = arith.constant dense<0.000000e+00> : vector<128xf32>
      %198 = vector.multi_reduction <add>, %192, %cst_74 [0] : vector<64x128xf32> to vector<128xf32>
      %199 = vector.shape_cast %198 : vector<128xf32> to vector<1x128xf32>
      %200 = math.log %199 : vector<1x128xf32>
      %201 = vector.broadcast %189 : f32 to vector<1x128xf32>
      %202 = arith.addf %201, %200 : vector<1x128xf32>
      %203 = arith.addf %167, %197 : vector<64x1xf32>
      %cst_75 = arith.constant 0.000000e+00 : f32
      %204 = vector.broadcast %cst_75 : f32 to vector<64x1xf32>
      %205 = arith.maximumf %203, %204 : vector<64x1xf32>
      %206 = math.absf %203 : vector<64x1xf32>
      %cst_76 = arith.constant 0.000000e+00 : f32
      %207 = vector.broadcast %cst_76 : f32 to vector<64x1xf32>
      %208 = arith.subf %207, %206 : vector<64x1xf32>
      %209 = math.exp %208 : vector<64x1xf32>
      %cst_77 = arith.constant 1.000000e+00 : f32
      %210 = vector.broadcast %cst_77 : f32 to vector<64x1xf32>
      %211 = arith.addf %210, %209 : vector<64x1xf32>
      %212 = math.log %211 : vector<64x1xf32>
      %213 = arith.addf %205, %212 : vector<64x1xf32>
      %cst_78 = arith.constant 0.0416666679 : f32
      %214 = vector.broadcast %cst_78 : f32 to vector<64x1xf32>
      %215 = arith.mulf %213, %214 : vector<64x1xf32>
      %216 = arith.addf %172, %202 : vector<1x128xf32>
      %cst_79 = arith.constant 0.000000e+00 : f32
      %217 = vector.broadcast %cst_79 : f32 to vector<1x128xf32>
      %218 = arith.maximumf %216, %217 : vector<1x128xf32>
      %219 = math.absf %216 : vector<1x128xf32>
      %cst_80 = arith.constant 0.000000e+00 : f32
      %220 = vector.broadcast %cst_80 : f32 to vector<1x128xf32>
      %221 = arith.subf %220, %219 : vector<1x128xf32>
      %222 = math.exp %221 : vector<1x128xf32>
      %cst_81 = arith.constant 1.000000e+00 : f32
      %223 = vector.broadcast %cst_81 : f32 to vector<1x128xf32>
      %224 = arith.addf %223, %222 : vector<1x128xf32>
      %225 = math.log %224 : vector<1x128xf32>
      %226 = arith.addf %218, %225 : vector<1x128xf32>
      %cst_82 = arith.constant 0.0416666679 : f32
      %227 = vector.broadcast %cst_82 : f32 to vector<1x128xf32>
      %228 = arith.mulf %226, %227 : vector<1x128xf32>
      %229 = arith.mulf %215, %127 : vector<64x1xf32>
      %230 = vector.shape_cast %229 : vector<64x1xf32> to vector<1x64x1xf32>
      %cst_83 = arith.constant dense<0.000000e+00> : vector<1xf32>
      %231 = vector.multi_reduction <add>, %230, %cst_83 [1, 2] : vector<1x64x1xf32> to vector<1xf32>
      %232 = vector.shape_cast %231 : vector<1xf32> to vector<1x1x1xf32>
      %233 = vector.extract %232[0, 0, 0] : f32 from vector<1x1x1xf32>
      %234 = vector.shape_cast %127 : vector<64x1xf32> to vector<1x64x1xf32>
      %cst_84 = arith.constant dense<0.000000e+00> : vector<1xf32>
      %235 = vector.multi_reduction <add>, %234, %cst_84 [1, 2] : vector<1x64x1xf32> to vector<1xf32>
      %236 = vector.shape_cast %235 : vector<1xf32> to vector<1x1x1xf32>
      %237 = vector.extract %236[0, 0, 0] : f32 from vector<1x1x1xf32>
      %238 = arith.divf %233, %237 : f32
      %239 = arith.mulf %228, %138 : vector<1x128xf32>
      %240 = vector.shape_cast %239 : vector<1x128xf32> to vector<1x1x128xf32>
      %cst_85 = arith.constant dense<0.000000e+00> : vector<1xf32>
      %241 = vector.multi_reduction <add>, %240, %cst_85 [1, 2] : vector<1x1x128xf32> to vector<1xf32>
      %242 = vector.shape_cast %241 : vector<1xf32> to vector<1x1x1xf32>
      %243 = vector.extract %242[0, 0, 0] : f32 from vector<1x1x1xf32>
      %244 = vector.shape_cast %138 : vector<1x128xf32> to vector<1x1x128xf32>
      %cst_86 = arith.constant dense<0.000000e+00> : vector<1xf32>
      %245 = vector.multi_reduction <add>, %244, %cst_86 [1, 2] : vector<1x1x128xf32> to vector<1xf32>
      %246 = vector.shape_cast %245 : vector<1xf32> to vector<1x1x1xf32>
      %247 = vector.extract %246[0, 0, 0] : f32 from vector<1x1x1xf32>
      %248 = arith.divf %243, %247 : f32
      %249 = arith.addf %238, %248 : f32
      %cst_87 = arith.constant 5.000000e-01 : f32
      %250 = arith.mulf %cst_87, %249 : f32
      %c0_88 = arith.constant 0 : index
      %c0_89 = arith.constant 0 : index
      %251 = memref.load %arg9[%c0_88, %c0_89] : memref<1x2xf32, #tpu.memory_space<smem>>
      memref.store %250, %arg9[%c0_88, %c0_89] : memref<1x2xf32, #tpu.memory_space<smem>>
    } else {
    }
    return
  }
  func.func @transform_0(%arg0: i32) -> (i32, i32) {
    %c0_i32 = arith.constant 0 : i32
    %c0_i32_0 = arith.constant 0 : i32
    %c0_i32_1 = arith.constant 0 : i32
    return %c0_i32, %c0_i32_0 : i32, i32
  }
  func.func @transform_1(%arg0: i32) -> (i32, i32) {
    %c0_i32 = arith.constant 0 : i32
    %c0_i32_0 = arith.constant 0 : i32
    %c0_i32_1 = arith.constant 0 : i32
    return %c0_i32, %c0_i32_0 : i32, i32
  }
  func.func @transform_2(%arg0: i32) -> (i32, i32) {
    %c0_i32 = arith.constant 0 : i32
    %c0_i32_0 = arith.constant 0 : i32
    %c0_i32_1 = arith.constant 0 : i32
    return %c0_i32, %c0_i32_0 : i32, i32
  }
  func.func @transform_3(%arg0: i32) -> (i32, i32) {
    %c0_i32 = arith.constant 0 : i32
    %c0_i32_0 = arith.constant 0 : i32
    %c0_i32_1 = arith.constant 0 : i32
    return %c0_i32, %c0_i32_0 : i32, i32
  }
  func.func @transform_4(%arg0: i32) -> (i32, i32, i32) {
    %c0_i32 = arith.constant 0 : i32
    %c0_i32_0 = arith.constant 0 : i32
    %c0_i32_1 = arith.constant 0 : i32
    return %arg0, %c0_i32, %c0_i32_0 : i32, i32, i32
  }
  func.func @transform_5(%arg0: i32) -> (i32, i32, i32) {
    %c0_i32 = arith.constant 0 : i32
    %c0_i32_0 = arith.constant 0 : i32
    %c0_i32_1 = arith.constant 0 : i32
    return %arg0, %c0_i32, %c0_i32_0 : i32, i32, i32
  }
  func.func @transform_6(%arg0: i32) -> (i32, i32, i32) {
    %c0_i32 = arith.constant 0 : i32
    %c0_i32_0 = arith.constant 0 : i32
    %c0_i32_1 = arith.constant 0 : i32
    return %arg0, %c0_i32, %c0_i32_0 : i32, i32, i32
  }
  func.func @transform_7(%arg0: i32) -> (i32, i32, i32) {
    %c0_i32 = arith.constant 0 : i32
    %c0_i32_0 = arith.constant 0 : i32
    %c0_i32_1 = arith.constant 0 : i32
    return %arg0, %c0_i32, %c0_i32_0 : i32, i32, i32
  }
  func.func @transform_8(%arg0: i32) -> (i32, i32) {
    %c0_i32 = arith.constant 0 : i32
    %c0_i32_0 = arith.constant 0 : i32
    %c0_i32_1 = arith.constant 0 : i32
    return %c0_i32, %c0_i32_0 : i32, i32
  }
}

</mosaic_0001>

<llo_original>
// kernel: tpu_custom_call.1
$region0: #{tpu_custom_call.1}
  #allocation0 [shape = 'u32[]', space=smem, size = 0x4, offset = 0x4, fixed_abs, tag = 'smem constant byte address 0x4 - core index']
  #allocation1 [shape = 'u32[72,128]{1,0:T(1,128)}', space=vmem, size = 0x9000, scoped, tag = 'internal scratch']
  #allocation2 [shape = 'f32[2]{0:T(128)}', space=smem, size = 0x200, scoped, tag = 'scratch operand']
  %s0 = inlined_call_operand.hbm [shape: f32[64,128], index: 0, kind: input, shape index: {}]
  %s1 = inlined_call_operand.hbm [shape: f32[128,128], index: 1, kind: input, shape index: {}]
  %s2 = inlined_call_operand.hbm [shape: s32[2,128], index: 2, kind: input, shape index: {}]
  %s3 = inlined_call_operand.vmem [shape: f32[1,128], index: 3, kind: input, shape index: {}]
  %s4 = inlined_call_operand.hbm [shape: f32[4,8,8], index: 4, kind: input, shape index: {}]
  %s5 = inlined_call_operand.hbm [shape: f32[4,8,8], index: 5, kind: input, shape index: {}]
  %s6 = inlined_call_operand.hbm [shape: f32[4,8,8], index: 6, kind: input, shape index: {}]
  %s7 = inlined_call_operand.hbm [shape: f32[4,4,8], index: 7, kind: input, shape index: {}]
  %s8 = inlined_call_operand.hbm [shape: f32[1,2], index: 8, kind: output, shape index: {}]
  %s9 = sld [smem:[#allocation0]]
  $region105: #{tpu_custom_call.1} parent=0
    _
  %s11 = ssub.s32 1, %s9
  %s12 = scalar_select 0, %s11, %s9
  $region1: #{tpu_custom_call.1} parent=0
    #allocation3 [shape = 'u8[32768]{0}', space=vmem, size = 0x8000, scoped, tag = 'input window, operand 0, single buffered']
    #allocation4 [shape = 's32[2]{0}', space=sflag, size = 0x8, scoped, tag = 'scoped memory for tpu_custom_call.1']
    #allocation5 [shape = 's32[2]{0}', space=sflag, size = 0x8, scoped, tag = 'scoped memory for tpu_custom_call.1']
    #allocation6 [shape = 'u8[65536]{0}', space=vmem, size = 0x10000, scoped, tag = 'input window, operand 1, single buffered']
    #allocation7 [shape = 's32[1]{0}', space=sflag, size = 0x4, scoped, tag = 'scoped memory for tpu_custom_call.1']
    #allocation8 [shape = 'u8[1024]{0}', space=vmem, size = 0x400, scoped, tag = 'input window, operand 2, single buffered']
    #allocation9 [shape = 'u8[16384]{0}', space=vmem, size = 0x4000, scoped, tag = 'input window, operand 4']
    #allocation10 [shape = 's32[2]{0}', space=sflag, size = 0x8, scoped, tag = 'scoped memory for tpu_custom_call.1']
    #allocation11 [shape = 'u8[16384]{0}', space=vmem, size = 0x4000, scoped, tag = 'input window, operand 5']
    #allocation12 [shape = 'u8[16384]{0}', space=vmem, size = 0x4000, scoped, tag = 'input window, operand 6']
    #allocation13 [shape = 's32[2]{0}', space=sflag, size = 0x8, scoped, tag = 'scoped memory for tpu_custom_call.1']
    #allocation14 [shape = 'u8[8192]{0}', space=vmem, size = 0x2000, scoped, tag = 'input window, operand 7']
    #allocation15 [shape = 'u8[512]{0}', space=smem, size = 0x200, scoped, tag = 'output window, operand 0, single buffered']
    %13 = vsyncpa [#allocation4], 0
    %14 = vsyncpa [#allocation7], 0
    %15 = vsyncpa [#allocation10], 0
    %s16 = scalar_lea.sflag [#allocation10], 1
    %17 = vsyncpa %s16, 0
    %18 = vsyncpa [#allocation13], 0
    %s19 = scalar_lea.sflag [#allocation13], 1
    %20 = vsyncpa %s19, 0
    %21 = vsyncpa [#allocation5], 0
    loop: start=0, step=1, limit=4
    $region2: #{tpu_custom_call.1} parent=1 // loop_pre_header
      _
    $region3: #{tpu_custom_call.1} parent=1 // loop_header
      %s23 = sphi 0, %s27
      %p24 = scmp.ge.s32.totalorder %s23, 4
      %s31 = sphi 0, %s31
      %s33 = sphi 0, %s31
      %s34 = sphi 0, %s33
      %s48 = sphi 0, %s34
      %s52 = sphi 0, %s52
      %s54 = sphi 0, %s52
      %s55 = sphi 0, %s54
      %s69 = sphi 0, %s55
      %s73 = sphi 0, %s73
      %s75 = sphi 0, %s73
      %s76 = sphi 0, %s75
      %s90 = sphi 0, %s76
      %s94 = sphi 0, %s94
      %s96 = sphi 0, %s94
      %s97 = sphi 0, %s96
      %s111 = sphi 0, %s97
      %s117 = sphi 0, %s119
      %s120 = sphi 0, %s117
      %s121 = sphi 0, %s120
      %s137 = sphi 0, %s121
      %s143 = sphi 0, %s145
      %s146 = sphi 0, %s143
      %s147 = sphi 0, %s146
      %s163 = sphi 0, %s147
      %s169 = sphi 0, %s171
      %s172 = sphi 0, %s169
      %s173 = sphi 0, %s172
      %s189 = sphi 0, %s173
      %s195 = sphi 0, %s197
      %s198 = sphi 0, %s195
      %s199 = sphi 0, %s198
      %s215 = sphi 0, %s199
      %s219 = sphi 0, %s219
      %s221 = sphi 0, %s219
      %s222 = sphi 0, %s221
      %s236 = sphi 0, %s222
    $region4: #{tpu_custom_call.1} parent=1 // loop_header_branch
      %26 = sbr.rel (%p24) target = $region8
    $region5: #{tpu_custom_call.1} parent=1 // loop_body
      %s28 = ssub.s32 %s23, 1
      %s29 = ssub.s32 %s23, 2
      %s30 = sadd.s32 %s23, 1
      %s32 = sadd.s32 %s31, 1
      %p35 = scmp.eq.s32.totalorder %s23, 1
      %p36 = scmp.ne.s32.totalorder %s31, %s33
      %p37 = scmp.eq.s32.totalorder %s23, 0
      %p38 = por %p36, %p37
      %p39 = scmp.ne.s32.totalorder %s31, %s33
      %p40 = scmp.eq.s32.totalorder %s28, 1
      %p41 = por %p39, %p40
      %p42 = scmp.ne.s32.totalorder %s33, %s34
      %p43 = scmp.eq.s32.totalorder %s28, 0
      %p44 = por %p42, %p43
      %p45 = scmp.ne.s32.totalorder %s33, %s34
      %p46 = scmp.eq.s32.totalorder %s29, 1
      %p47 = por %p45, %p46
      %p49 = scmp.ne.s32.totalorder %s34, %s48
      %p50 = scmp.eq.s32.totalorder %s29, 0
      %p51 = por %p49, %p50
      %s53 = sadd.s32 %s52, 1
      %p56 = scmp.eq.s32.totalorder %s23, 1
      %p57 = scmp.ne.s32.totalorder %s52, %s54
      %p58 = scmp.eq.s32.totalorder %s23, 0
      %p59 = por %p57, %p58
      %p60 = scmp.ne.s32.totalorder %s52, %s54
      %p61 = scmp.eq.s32.totalorder %s28, 1
      %p62 = por %p60, %p61
      %p63 = scmp.ne.s32.totalorder %s54, %s55
      %p64 = scmp.eq.s32.totalorder %s28, 0
      %p65 = por %p63, %p64
      %p66 = scmp.ne.s32.totalorder %s54, %s55
      %p67 = scmp.eq.s32.totalorder %s29, 1
      %p68 = por %p66, %p67
      %p70 = scmp.ne.s32.totalorder %s55, %s69
      %p71 = scmp.eq.s32.totalorder %s29, 0
      %p72 = por %p70, %p71
      %s74 = sadd.s32 %s73, 1
      %p77 = scmp.eq.s32.totalorder %s23, 1
      %p78 = scmp.ne.s32.totalorder %s73, %s75
      %p79 = scmp.eq.s32.totalorder %s23, 0
      %p80 = por %p78, %p79
      %p81 = scmp.ne.s32.totalorder %s73, %s75
      %p82 = scmp.eq.s32.totalorder %s28, 1
      %p83 = por %p81, %p82
      %p84 = scmp.ne.s32.totalorder %s75, %s76
      %p85 = scmp.eq.s32.totalorder %s28, 0
      %p86 = por %p84, %p85
      %p87 = scmp.ne.s32.totalorder %s75, %s76
      %p88 = scmp.eq.s32.totalorder %s29, 1
      %p89 = por %p87, %p88
      %p91 = scmp.ne.s32.totalorder %s76, %s90
      %p92 = scmp.eq.s32.totalorder %s29, 0
      %p93 = por %p91, %p92
      %s95 = sadd.s32 %s94, 1
      %p98 = scmp.eq.s32.totalorder %s23, 1
      %p99 = scmp.ne.s32.totalorder %s94, %s96
      %p100 = scmp.eq.s32.totalorder %s23, 0
      %p101 = por %p99, %p100
      %p102 = scmp.ne.s32.totalorder %s94, %s96
      %p103 = scmp.eq.s32.totalorder %s28, 1
      %p104 = por %p102, %p103
      %p105 = scmp.ne.s32.totalorder %s96, %s97
      %p106 = scmp.eq.s32.totalorder %s28, 0
      %p107 = por %p105, %p106
      %p108 = scmp.ne.s32.totalorder %s96, %s97
      %p109 = scmp.eq.s32.totalorder %s29, 1
      %p110 = por %p108, %p109
      %p112 = scmp.ne.s32.totalorder %s97, %s111
      %p113 = scmp.eq.s32.totalorder %s29, 0
      %p114 = por %p112, %p113
      %s115 = ssub.s32 %s23, %s30
      %p116 = scmp.eq.s32.totalorder %s115, 0
      %s118 = sadd.s32 %s117, 1
      %s119 = scalar_select %p116, %s117, %s118
      %p122 = pneg %p116
      %p123 = scmp.eq.s32.totalorder %s23, 1
      %p124 = por %p122, %p123
      %p125 = scmp.ne.s32.totalorder %s117, %s120
      %p126 = scmp.eq.s32.totalorder %s23, 0
      %p127 = por %p125, %p126
      %p128 = scmp.ne.s32.totalorder %s117, %s120
      %p129 = scmp.eq.s32.totalorder %s28, 1
      %p130 = por %p128, %p129
      %p131 = scmp.ne.s32.totalorder %s120, %s121
      %p132 = scmp.eq.s32.totalorder %s28, 0
      %p133 = por %p131, %p132
      %p134 = scmp.ne.s32.totalorder %s120, %s121
      %p135 = scmp.eq.s32.totalorder %s29, 1
      %p136 = por %p134, %p135
      %p138 = scmp.ne.s32.totalorder %s121, %s137
      %p139 = scmp.eq.s32.totalorder %s29, 0
      %p140 = por %p138, %p139
      %s141 = ssub.s32 %s23, %s30
      %p142 = scmp.eq.s32.totalorder %s141, 0
      %s144 = sadd.s32 %s143, 1
      %s145 = scalar_select %p142, %s143, %s144
      %p148 = pneg %p142
      %p149 = scmp.eq.s32.totalorder %s23, 1
      %p150 = por %p148, %p149
      %p151 = scmp.ne.s32.totalorder %s143, %s146
      %p152 = scmp.eq.s32.totalorder %s23, 0
      %p153 = por %p151, %p152
      %p154 = scmp.ne.s32.totalorder %s143, %s146
      %p155 = scmp.eq.s32.totalorder %s28, 1
      %p156 = por %p154, %p155
      %p157 = scmp.ne.s32.totalorder %s146, %s147
      %p158 = scmp.eq.s32.totalorder %s28, 0
      %p159 = por %p157, %p158
      %p160 = scmp.ne.s32.totalorder %s146, %s147
      %p161 = scmp.eq.s32.totalorder %s29, 1
      %p162 = por %p160, %p161
      %p164 = scmp.ne.s32.totalorder %s147, %s163
      %p165 = scmp.eq.s32.totalorder %s29, 0
      %p166 = por %p164, %p165
      %s167 = ssub.s32 %s23, %s30
      %p168 = scmp.eq.s32.totalorder %s167, 0
      %s170 = sadd.s32 %s169, 1
      %s171 = scalar_select %p168, %s169, %s170
      %p174 = pneg %p168
      %p175 = scmp.eq.s32.totalorder %s23, 1
      %p176 = por %p174, %p175
      %p177 = scmp.ne.s32.totalorder %s169, %s172
      %p178 = scmp.eq.s32.totalorder %s23, 0
      %p179 = por %p177, %p178
      %p180 = scmp.ne.s32.totalorder %s169, %s172
      %p181 = scmp.eq.s32.totalorder %s28, 1
      %p182 = por %p180, %p181
      %p183 = scmp.ne.s32.totalorder %s172, %s173
      %p184 = scmp.eq.s32.totalorder %s28, 0
      %p185 = por %p183, %p184
      %p186 = scmp.ne.s32.totalorder %s172, %s173
      %p187 = scmp.eq.s32.totalorder %s29, 1
      %p188 = por %p186, %p187
      %p190 = scmp.ne.s32.totalorder %s173, %s189
      %p191 = scmp.eq.s32.totalorder %s29, 0
      %p192 = por %p190, %p191
      %s193 = ssub.s32 %s23, %s30
      %p194 = scmp.eq.s32.totalorder %s193, 0
      %s196 = sadd.s32 %s195, 1
      %s197 = scalar_select %p194, %s195, %s196
      %p200 = pneg %p194
      %p201 = scmp.eq.s32.totalorder %s23, 1
      %p202 = por %p200, %p201
      %p203 = scmp.ne.s32.totalorder %s195, %s198
      %p204 = scmp.eq.s32.totalorder %s23, 0
      %p205 = por %p203, %p204
      %p206 = scmp.ne.s32.totalorder %s195, %s198
      %p207 = scmp.eq.s32.totalorder %s28, 1
      %p208 = por %p206, %p207
      %p209 = scmp.ne.s32.totalorder %s198, %s199
      %p210 = scmp.eq.s32.totalorder %s28, 0
      %p211 = por %p209, %p210
      %p212 = scmp.ne.s32.totalorder %s198, %s199
      %p213 = scmp.eq.s32.totalorder %s29, 1
      %p214 = por %p212, %p213
      %p216 = scmp.ne.s32.totalorder %s199, %s215
      %p217 = scmp.eq.s32.totalorder %s29, 0
      %p218 = por %p216, %p217
      %s220 = sadd.s32 %s219, 1
      %p223 = scmp.eq.s32.totalorder %s23, 1
      %p224 = scmp.ne.s32.totalorder %s219, %s221
      %p225 = scmp.eq.s32.totalorder %s23, 0
      %p226 = por %p224, %p225
      %p227 = scmp.ne.s32.totalorder %s219, %s221
      %p228 = scmp.eq.s32.totalorder %s28, 1
      %p229 = por %p227, %p228
      %p230 = scmp.ne.s32.totalorder %s221, %s222
      %p231 = scmp.eq.s32.totalorder %s28, 0
      %p232 = por %p230, %p231
      %p233 = scmp.ne.s32.totalorder %s221, %s222
      %p234 = scmp.eq.s32.totalorder %s29, 1
      %p235 = por %p233, %p234
      %p237 = scmp.ne.s32.totalorder %s222, %s236
      %p238 = scmp.eq.s32.totalorder %s29, 0
      %p239 = por %p237, %p238
      %p240 = scmp.le.s32.totalorder 1, %s23
      %p241 = scmp.lt.s32.totalorder %s23, 3
      %p242 = pnand %p240, %p241
      %p243 = pneg %p242
      // Predicated region
      $region9: #{tpu_custom_call.1} parent=5 // pred_check
        _
      $region10: #{tpu_custom_call.1} parent=5 // pred_check_branch
        %245 = sbr.rel (%p242) target = $region12
      $region11: #{tpu_custom_call.1} parent=5 // pred_region
        %s246 = ssub.s32 %s23, 1
        // Predicated region
        $region13: #{tpu_custom_call.1} parent=11 // pred_check
          %p247 = pneg %p44
        $region14: #{tpu_custom_call.1} parent=11 // pred_check_branch
          %249 = sbr.rel (%p247) target = $region16
        $region15: #{tpu_custom_call.1} parent=11 // pred_region
          %251 = vsyncadd [#allocation4], 0
          %s252 = sshll.u32 %s0, 4
          %s253 = int_to_ptr.hbm [resolvable:$true] %s252
          %s254 = sshll.u32 [#allocation3], 4
          %s255 = int_to_ptr.vmem [resolvable:$true] %s254
          %260 = dma.hbm_to_vmem [thread:$0]  %s253, 1024, %s255, [#allocation4], 128, 128, 8
        $region16: #{tpu_custom_call.1} parent=11 // pred_fallthru
          _
        // Predicated region
        $region17: #{tpu_custom_call.1} parent=11 // pred_check
          %p261 = pneg %p65
        $region18: #{tpu_custom_call.1} parent=11 // pred_check_branch
          %263 = sbr.rel (%p261) target = $region20
        $region19: #{tpu_custom_call.1} parent=11 // pred_region
          %265 = vsyncadd [#allocation7], 0
          %s266 = sshll.u32 %s1, 4
          %s267 = int_to_ptr.hbm [resolvable:$true] %s266
          %s268 = sshll.u32 [#allocation6], 4
          %s269 = int_to_ptr.vmem [resolvable:$true] %s268
          %274 = dma.hbm_to_vmem [thread:$0]  %s267, 2048, %s269, [#allocation7], 128, 128, 8
        $region20: #{tpu_custom_call.1} parent=11 // pred_fallthru
          _
        // Predicated region
        $region21: #{tpu_custom_call.1} parent=11 // pred_check
          %p275 = pneg %p86
        $region22: #{tpu_custom_call.1} parent=11 // pred_check_branch
          %277 = sbr.rel (%p275) target = $region24
        $region23: #{tpu_custom_call.1} parent=11 // pred_region
          %279 = vsyncadd [#allocation7], 0
          %s281 = sshll.u32 %s2, 4
          %s282 = int_to_ptr.hbm [resolvable:$true] %s281
          %s283 = sshll.u32 [#allocation8], 4
          %s284 = int_to_ptr.vmem [resolvable:$true] %s283
          %286 = dma.hbm_to_vmem [thread:$0]  %s282, 32, %s284, [#allocation7]
        $region24: #{tpu_custom_call.1} parent=11 // pred_fallthru
          _
        // Predicated region
        $region25: #{tpu_custom_call.1} parent=11 // pred_check
          %p287 = pneg %p107
        $region26: #{tpu_custom_call.1} parent=11 // pred_check_branch
          %289 = sbr.rel (%p287) target = $region28
        $region27: #{tpu_custom_call.1} parent=11 // pred_region
          _
        $region28: #{tpu_custom_call.1} parent=11 // pred_fallthru
          _
      $region12: #{tpu_custom_call.1} parent=5 // pred_fallthru
        _
      %p290 = scmp.lt.s32.totalorder %s23, 2
      // Predicated region
      $region29: #{tpu_custom_call.1} parent=5 // pred_check
        %p291 = pneg %p290
      $region30: #{tpu_custom_call.1} parent=5 // pred_check_branch
        %293 = sbr.rel (%p291) target = $region32
      $region31: #{tpu_custom_call.1} parent=5 // pred_region
        // Predicated region
        $region33: #{tpu_custom_call.1} parent=31 // pred_check
          %p294 = pneg %p127
        $region34: #{tpu_custom_call.1} parent=31 // pred_check_branch
          %296 = sbr.rel (%p294) target = $region36
        $region35: #{tpu_custom_call.1} parent=31 // pred_region
          %s297 = sand.u32 %s23, 1
          %s298 = scalar_lea.sflag [#allocation10], %s297
          %s299 = sand.u32 %s117, 1
          %s300 = smul.addr %s299, 16
          %s301 = scalar_lea.vmem [#allocation9], %s300
          %s302 = smul.u32 2, %s23
          %304 = vsyncadd %s298, 0
          %s305 = smul.addr %s302, 8
          %s306 = scalar_lea.hbm %s4, %s305
          %s307 = sshll.u32 %s306, 4
          %s308 = int_to_ptr.hbm [resolvable:$true] %s307
          %s309 = sshll.u32 %s301, 4
          %s310 = int_to_ptr.vmem [resolvable:$true] %s309
          %315 = dma.hbm_to_vmem [thread:$0]  %s308, 256, %s310, %s298, 128, 128, 8
        $region36: #{tpu_custom_call.1} parent=31 // pred_fallthru
          _
        // Predicated region
        $region37: #{tpu_custom_call.1} parent=31 // pred_check
          %p316 = pneg %p153
        $region38: #{tpu_custom_call.1} parent=31 // pred_check_branch
          %318 = sbr.rel (%p316) target = $region40
        $region39: #{tpu_custom_call.1} parent=31 // pred_region
          %s319 = sand.u32 %s23, 1
          %s320 = scalar_lea.sflag [#allocation10], %s319
          %s321 = sand.u32 %s143, 1
          %s322 = smul.addr %s321, 16
          %s323 = scalar_lea.vmem [#allocation11], %s322
          %s324 = smul.u32 2, %s23
          %326 = vsyncadd %s320, 0
          %s327 = smul.addr %s324, 8
          %s328 = scalar_lea.hbm %s5, %s327
          %s329 = sshll.u32 %s328, 4
          %s330 = int_to_ptr.hbm [resolvable:$true] %s329
          %s331 = sshll.u32 %s323, 4
          %s332 = int_to_ptr.vmem [resolvable:$true] %s331
          %337 = dma.hbm_to_vmem [thread:$0]  %s330, 256, %s332, %s320, 128, 128, 8
        $region40: #{tpu_custom_call.1} parent=31 // pred_fallthru
          _
        // Predicated region
        $region41: #{tpu_custom_call.1} parent=31 // pred_check
          %p338 = pneg %p179
        $region42: #{tpu_custom_call.1} parent=31 // pred_check_branch
          %340 = sbr.rel (%p338) target = $region44
        $region43: #{tpu_custom_call.1} parent=31 // pred_region
          %s341 = sand.u32 %s23, 1
          %s342 = scalar_lea.sflag [#allocation13], %s341
          %s343 = sand.u32 %s169, 1
          %s344 = smul.addr %s343, 16
          %s345 = scalar_lea.vmem [#allocation12], %s344
          %s346 = smul.u32 2, %s23
          %348 = vsyncadd %s342, 0
          %s349 = smul.addr %s346, 8
          %s350 = scalar_lea.hbm %s6, %s349
          %s351 = sshll.u32 %s350, 4
          %s352 = int_to_ptr.hbm [resolvable:$true] %s351
          %s353 = sshll.u32 %s345, 4
          %s354 = int_to_ptr.vmem [resolvable:$true] %s353
          %359 = dma.hbm_to_vmem [thread:$0]  %s352, 256, %s354, %s342, 128, 128, 8
        $region44: #{tpu_custom_call.1} parent=31 // pred_fallthru
          _
        // Predicated region
        $region45: #{tpu_custom_call.1} parent=31 // pred_check
          %p360 = pneg %p205
        $region46: #{tpu_custom_call.1} parent=31 // pred_check_branch
          %362 = sbr.rel (%p360) target = $region48
        $region47: #{tpu_custom_call.1} parent=31 // pred_region
          %s363 = sand.u32 %s23, 1
          %s364 = scalar_lea.sflag [#allocation13], %s363
          %s365 = sand.u32 %s195, 1
          %s366 = smul.addr %s365, 8
          %s367 = scalar_lea.vmem [#allocation14], %s366
          %s368 = smul.u32 2, %s23
          %370 = vsyncadd %s364, 0
          %s371 = smul.addr %s368, 4
          %s372 = scalar_lea.hbm %s7, %s371
          %s373 = sshll.u32 %s372, 4
          %s374 = int_to_ptr.hbm [resolvable:$true] %s373
          %s375 = sshll.u32 %s367, 4
          %s376 = int_to_ptr.vmem [resolvable:$true] %s375
          %381 = dma.hbm_to_vmem [thread:$0]  %s374, 128, %s376, %s364, 64, 64, 4
        $region48: #{tpu_custom_call.1} parent=31 // pred_fallthru
          _
      $region32: #{tpu_custom_call.1} parent=5 // pred_fallthru
        _
      %p382 = scmp.le.s32.totalorder 1, %s23
      %p383 = scmp.lt.s32.totalorder %s23, 3
      %p384 = pnand %p382, %p383
      %p385 = pneg %p384
      // Predicated region
      $region49: #{tpu_custom_call.1} parent=5 // pred_check
        _
      $region50: #{tpu_custom_call.1} parent=5 // pred_check_branch
        %387 = sbr.rel (%p384) target = $region52
      $region51: #{tpu_custom_call.1} parent=5 // pred_region
        %s388 = ssub.s32 %s23, 1
        // Predicated region
        $region53: #{tpu_custom_call.1} parent=51 // pred_check
          %p389 = pneg %p44
        $region54: #{tpu_custom_call.1} parent=51 // pred_check_branch
          %391 = sbr.rel (%p389) target = $region56
        $region55: #{tpu_custom_call.1} parent=51 // pred_region
          %393 = dma.done [#allocation4], 1024
        $region56: #{tpu_custom_call.1} parent=51 // pred_fallthru
          _
        // Predicated region
        $region57: #{tpu_custom_call.1} parent=51 // pred_check
          %p394 = pneg %p65
        $region58: #{tpu_custom_call.1} parent=51 // pred_check_branch
          %396 = sbr.rel (%p394) target = $region60
        $region59: #{tpu_custom_call.1} parent=51 // pred_region
          %398 = dma.done [#allocation7], 2048
        $region60: #{tpu_custom_call.1} parent=51 // pred_fallthru
          _
        // Predicated region
        $region61: #{tpu_custom_call.1} parent=51 // pred_check
          %p399 = pneg %p86
        $region62: #{tpu_custom_call.1} parent=51 // pred_check_branch
          %401 = sbr.rel (%p399) target = $region64
        $region63: #{tpu_custom_call.1} parent=51 // pred_region
          %403 = dma.done [#allocation7], 32
        $region64: #{tpu_custom_call.1} parent=51 // pred_fallthru
          _
        %s404 = sand.u32 %s28, 1
        %s405 = scalar_lea.sflag [#allocation10], %s404
        %s406 = sand.u32 %s120, 1
        %s407 = smul.addr %s406, 16
        %s408 = scalar_lea.vmem [#allocation9], %s407
        // Predicated region
        $region65: #{tpu_custom_call.1} parent=51 // pred_check
          %p409 = pneg %p133
        $region66: #{tpu_custom_call.1} parent=51 // pred_check_branch
          %411 = sbr.rel (%p409) target = $region68
        $region67: #{tpu_custom_call.1} parent=51 // pred_region
          %413 = dma.done %s405, 256
        $region68: #{tpu_custom_call.1} parent=51 // pred_fallthru
          _
        %s414 = sand.u32 %s28, 1
        %s415 = scalar_lea.sflag [#allocation10], %s414
        %s416 = sand.u32 %s146, 1
        %s417 = smul.addr %s416, 16
        %s418 = scalar_lea.vmem [#allocation11], %s417
        // Predicated region
        $region69: #{tpu_custom_call.1} parent=51 // pred_check
          %p419 = pneg %p159
        $region70: #{tpu_custom_call.1} parent=51 // pred_check_branch
          %421 = sbr.rel (%p419) target = $region72
        $region71: #{tpu_custom_call.1} parent=51 // pred_region
          %423 = dma.done %s415, 256
        $region72: #{tpu_custom_call.1} parent=51 // pred_fallthru
          _
        %s424 = sand.u32 %s28, 1
        %s425 = scalar_lea.sflag [#allocation13], %s424
        %s426 = sand.u32 %s172, 1
        %s427 = smul.addr %s426, 16
        %s428 = scalar_lea.vmem [#allocation12], %s427
        // Predicated region
        $region73: #{tpu_custom_call.1} parent=51 // pred_check
          %p429 = pneg %p185
        $region74: #{tpu_custom_call.1} parent=51 // pred_check_branch
          %431 = sbr.rel (%p429) target = $region76
        $region75: #{tpu_custom_call.1} parent=51 // pred_region
          %433 = dma.done %s425, 256
        $region76: #{tpu_custom_call.1} parent=51 // pred_fallthru
          _
        %s434 = sand.u32 %s28, 1
        %s435 = scalar_lea.sflag [#allocation13], %s434
        %s436 = sand.u32 %s198, 1
        %s437 = smul.addr %s436, 8
        %s438 = scalar_lea.vmem [#allocation14], %s437
        // Predicated region
        $region77: #{tpu_custom_call.1} parent=51 // pred_check
          %p439 = pneg %p211
        $region78: #{tpu_custom_call.1} parent=51 // pred_check_branch
          %441 = sbr.rel (%p439) target = $region80
        $region79: #{tpu_custom_call.1} parent=51 // pred_region
          %443 = dma.done %s435, 128
        $region80: #{tpu_custom_call.1} parent=51 // pred_fallthru
          _
        %p444 = pneg %p44
        %p445 = pneg %p41
        %p446 = pneg %p65
        %p447 = pneg %p62
        %p448 = pneg %p86
        %p449 = pneg %p83
        %p450 = pneg %p107
        %p451 = pneg %p104
        %s452 = sand.u32 %s28, 1
        %s453 = scalar_lea.sflag [#allocation10], %s452
        %s454 = sand.u32 %s120, 1
        %s455 = smul.addr %s454, 16
        %s456 = scalar_lea.vmem [#allocation9], %s455
        %p457 = pneg %p133
        %p458 = pneg %p130
        %s459 = sand.u32 %s28, 1
        %s460 = scalar_lea.sflag [#allocation10], %s459
        %s461 = sand.u32 %s146, 1
        %s462 = smul.addr %s461, 16
        %s463 = scalar_lea.vmem [#allocation11], %s462
        %p464 = pneg %p159
        %p465 = pneg %p156
        %s466 = sand.u32 %s28, 1
        %s467 = scalar_lea.sflag [#allocation13], %s466
        %s468 = sand.u32 %s172, 1
        %s469 = smul.addr %s468, 16
        %s470 = scalar_lea.vmem [#allocation12], %s469
        %p471 = pneg %p185
        %p472 = pneg %p182
        %s473 = sand.u32 %s28, 1
        %s474 = scalar_lea.sflag [#allocation13], %s473
        %s475 = sand.u32 %s198, 1
        %s476 = smul.addr %s475, 8
        %s477 = scalar_lea.vmem [#allocation14], %s476
        %p478 = pneg %p211
        %p479 = pneg %p208
        %p480 = pneg %p232
        %p481 = pneg %p229
        %s482 = smul.u32 2, %s28
        %s483 = smul.u32 2, %s28
        %s484 = smul.u32 2, %s28
        %s485 = smul.u32 2, %s28
        %p486 = scmp.eq.s32.totalorder %s28, 0
        // Predicated region
        $region81: #{tpu_custom_call.1} parent=51 // pred_check
          %p487 = pneg %p486
        $region82: #{tpu_custom_call.1} parent=51 // pred_check_branch
          %489 = sbr.rel (%p487) target = $region84
        $region83: #{tpu_custom_call.1} parent=51 // pred_region
          %s490 = scalar_lea.smem [#allocation2], 0
          %491 = sst [smem:[%s490]] 0.0
          %s492 = scalar_lea.smem [#allocation2], 1
          %493 = sst [smem:[%s492]] 0.0
        $region84: #{tpu_custom_call.1} parent=51 // pred_fallthru
          _
        %v494 = vld [vmem:[%s408] sm:$0xff]
        %v495 = vld [vmem:[%s408 + $0x8] sm:$0xff]
        %v496 = vld [vmem:[%s418] sm:$0xff]
        %v497 = vld [vmem:[%s418 + $0x8] sm:$0xff]
        %vm498 = vcmask 64512
        %v500 = vsel %vm498, %v494, 0
        %v503 = vsel %vm498, %v496, 0
        %505 = vmatpush.xpose.msra.mxu0 0.0
        %506 = vmatpush.xpose.msra.mxu0 0.0
        %507 = vmatpush.xpose.msra.mxu0 0.0
        %508 = vmatpush.xpose.msra.mxu0 0.0
        %509 = vmatpush.xpose.msra.mxu0 0.0
        %510 = vmatpush.xpose.msra.mxu0 0.0
        %511 = vmatpush.xpose.msra.mxu0 0.0
        %512 = vmatpush.xpose.msra.mxu0 0.0
        %513 = vmatpush.xpose.msra.mxu0 0.0
        %514 = vmatpush.xpose.msra.mxu0 0.0
        %515 = vmatpush.xpose.msra.mxu0 0.0
        %516 = vmatpush.xpose.msra.mxu0 0.0
        %517 = vmatpush.xpose.msra.mxu0 0.0
        %518 = vmatpush.xpose.msra.mxu0 0.0
        %519 = vmatpush.xpose.msra.mxu0 0.0
        %520 = vmatpush.xpose.msra.mxu0 %v503
        %521 = vmatmul.f32.gmra.mxu0 %v500
        %v522 = vpop.f32.mrf.mxu0
        %v523 = vadd.f32 0.0, %v522
        %524 = vdwg.mxu0
        %v526 = vsel %vm498, %v495, 0
        %v529 = vsel %vm498, %v497, 0
        %531 = vmatpush.xpose.msra.mxu0 0.0
        %532 = vmatpush.xpose.msra.mxu0 0.0
        %533 = vmatpush.xpose.msra.mxu0 0.0
        %534 = vmatpush.xpose.msra.mxu0 0.0
        %535 = vmatpush.xpose.msra.mxu0 0.0
        %536 = vmatpush.xpose.msra.mxu0 0.0
        %537 = vmatpush.xpose.msra.mxu0 0.0
        %538 = vmatpush.xpose.msra.mxu0 0.0
        %539 = vmatpush.xpose.msra.mxu0 0.0
        %540 = vmatpush.xpose.msra.mxu0 0.0
        %541 = vmatpush.xpose.msra.mxu0 0.0
        %542 = vmatpush.xpose.msra.mxu0 0.0
        %543 = vmatpush.xpose.msra.mxu0 0.0
        %544 = vmatpush.xpose.msra.mxu0 0.0
        %545 = vmatpush.xpose.msra.mxu0 0.0
        %546 = vmatpush.xpose.msra.mxu0 %v529
        %547 = vmatmul.f32.gmra.mxu0 %v526
        %v548 = vpop.f32.mrf.mxu0
        %v549 = vadd.f32 0.0, %v548
        %550 = vdwg.mxu0
        %551 = vmatpush.xpose.msra.mxu0 0.0
        %552 = vmatpush.xpose.msra.mxu0 0.0
        %553 = vmatpush.xpose.msra.mxu0 0.0
        %554 = vmatpush.xpose.msra.mxu0 0.0
        %555 = vmatpush.xpose.msra.mxu0 0.0
        %556 = vmatpush.xpose.msra.mxu0 0.0
        %557 = vmatpush.xpose.msra.mxu0 0.0
        %558 = vmatpush.xpose.msra.mxu0 0.0
        %559 = vmatpush.xpose.msra.mxu0 0.0
        %560 = vmatpush.xpose.msra.mxu0 0.0
        %561 = vmatpush.xpose.msra.mxu0 0.0
        %562 = vmatpush.xpose.msra.mxu0 0.0
        %563 = vmatpush.xpose.msra.mxu0 0.0
        %564 = vmatpush.xpose.msra.mxu0 0.0
        %565 = vmatpush.xpose.msra.mxu0 0.0
        %566 = vmatpush.xpose.msra.mxu0 %v500
        %567 = vmatmul.f32.gmra.mxu0 %v503
        %v568 = vpop.f32.mrf.mxu0
        %v569 = vadd.f32 0.0, %v568
        %570 = vdwg.mxu0
        %571 = vmatpush.xpose.msra.mxu0 0.0
        %572 = vmatpush.xpose.msra.mxu0 0.0
        %573 = vmatpush.xpose.msra.mxu0 0.0
        %574 = vmatpush.xpose.msra.mxu0 0.0
        %575 = vmatpush.xpose.msra.mxu0 0.0
        %576 = vmatpush.xpose.msra.mxu0 0.0
        %577 = vmatpush.xpose.msra.mxu0 0.0
        %578 = vmatpush.xpose.msra.mxu0 0.0
        %579 = vmatpush.xpose.msra.mxu0 0.0
        %580 = vmatpush.xpose.msra.mxu0 0.0
        %581 = vmatpush.xpose.msra.mxu0 0.0
        %582 = vmatpush.xpose.msra.mxu0 0.0
        %583 = vmatpush.xpose.msra.mxu0 0.0
        %584 = vmatpush.xpose.msra.mxu0 0.0
        %585 = vmatpush.xpose.msra.mxu0 0.0
        %586 = vmatpush.xpose.msra.mxu0 %v526
        %587 = vmatmul.f32.gmra.mxu0 %v529
        %v588 = vpop.f32.mrf.mxu0
        %v589 = vadd.f32 0.0, %v588
        %590 = vdwg.mxu0
        %vm591 = vcmp.lt.f32.partialorder %v523, 0.0025
        %vm592 = vcmp.lt.f32.partialorder %v549, 0.0025
        %v593 = vsel %vm591, 1, 0
        %v594 = vsel %vm592, 1, 0
        %v595 = vcvt.s32.f32 %v593
        %v596 = vcvt.s32.f32 %v594
        %vm597 = vcmp.lt.f32.partialorder %v569, 0.0025
        %vm598 = vcmp.lt.f32.partialorder %v589, 0.0025
        %v599 = vsel %vm597, 1, 0
        %v600 = vsel %vm598, 1, 0
        %v601 = vcvt.s32.f32 %v599
        %v602 = vcvt.s32.f32 %v600
        %v603 = vld [vmem:[%s438] sm:$0xf]
        %v604 = vld [vmem:[%s438 + $0x4] sm:$0xf]
        %v605 = vsel %vm498, %v595, 0.0
        %v606 = vrot.slane %v605, 4
        %v607 = vadd.f32 %v605, %v606
        %v608 = vrot.slane %v607, 2
        %v609 = vadd.f32 %v607, %v608
        %v610 = vrot.slane %v609, 1
        %v611 = vadd.f32 %v609, %v610
        %v612 = vsel %vm498, %v596, 0.0
        %v613 = vrot.slane %v612, 4
        %v614 = vadd.f32 %v612, %v613
        %v615 = vrot.slane %v614, 2
        %v616 = vadd.f32 %v614, %v615
        %v617 = vrot.slane %v616, 1
        %v618 = vadd.f32 %v616, %v617
        %v619 = vsel %vm498, %v601, 0.0
        %v620 = vrot.slane %v619, 4
        %v621 = vadd.f32 %v619, %v620
        %v622 = vrot.slane %v621, 2
        %v623 = vadd.f32 %v621, %v622
        %v624 = vrot.slane %v623, 1
        %v625 = vadd.f32 %v623, %v624
        %v626 = vsel %vm498, %v602, 0.0
        %v627 = vrot.slane %v626, 4
        %v628 = vadd.f32 %v626, %v627
        %v629 = vrot.slane %v628, 2
        %v630 = vadd.f32 %v628, %v629
        %v631 = vrot.slane %v630, 1
        %v632 = vadd.f32 %v630, %v631
        %vm633 = vcmp.eq.f32.partialorder %v625, 0.0
        %vm634 = vcmp.eq.f32.partialorder %v632, 0.0
        %v635 = vsel %vm633, %v603, 0.0
        %v636 = vsel %vm634, %v604, 0.0
        %vm637 = vcmp.eq.f32.partialorder %v611, 0.0
        %vm638 = vcmp.eq.f32.partialorder %v618, 0.0
        %v639 = vsel %vm637, %v603, 0.0
        %v640 = vsel %vm638, %v604, 0.0
        %v641 = vld [vmem:[%s428] sm:$0xff]
        %v642 = vld [vmem:[%s428 + $0x8] sm:$0xff]
        %v643 = vmul.f32 %v641, %v595
        %v644 = vmul.f32 %v642, %v596
        %v645 = vsel %vm498, %v643, 0.0
        %v646 = vsel %vm498, %v644, 0.0
        %v647 = vadd.f32 %v645, %v646
        %648 = vadd.xlane.f32.xlu0 %v647
        %v649 = vpop.xlane.xlu0 %648
        %v650 = vrot.slane %v649, 4
        %v651 = vadd.f32 %v649, %v650
        %v652 = vrot.slane %v651, 2
        %v653 = vadd.f32 %v651, %v652
        %v654 = vrot.slane %v653, 1
        %v655 = vadd.f32 %v653, %v654
        %s656 = vtos %v655
        %v659 = vrot.slane %v635, 6
        %v660 = vrot.slane %v636, 6
        %v663 = vmul.f32 %v603, %v659
        %v664 = vmul.f32 %v604, %v660
        %v667 = vrot.slane %v663, 2
        %v668 = vrot.slane %v664, 2
        %vm671 = vcmask 57344
        %v672 = vsel %vm671, %v667, 0.0
        %v673 = vsel %vm671, %v668, 0.0
        %v674 = vadd.f32 %v672, %v673
        %675 = vadd.xlane.f32.xlu0 %v674
        %v676 = vpop.xlane.xlu0 %675
        %v677 = vrot.slane %v676, 4
        %v678 = vadd.f32 %v676, %v677
        %v679 = vrot.slane %v678, 2
        %v680 = vadd.f32 %v678, %v679
        %v681 = vrot.slane %v680, 1
        %v682 = vadd.f32 %v680, %v681
        %s683 = vtos %v682
        %s684 = sadd.f32 %s656, %s683
        %v687 = vrot.slane %v639, 6
        %v688 = vrot.slane %v640, 6
        %v691 = vmul.f32 %v603, %v687
        %v692 = vmul.f32 %v604, %v688
        %v695 = vrot.slane %v691, 3
        %v696 = vrot.slane %v692, 3
        %v699 = vsel %vm671, %v695, 0.0
        %v700 = vsel %vm671, %v696, 0.0
        %v701 = vadd.f32 %v699, %v700
        %702 = vadd.xlane.f32.xlu0 %v701
        %v703 = vpop.xlane.xlu0 %702
        %v704 = vrot.slane %v703, 4
        %v705 = vadd.f32 %v703, %v704
        %v706 = vrot.slane %v705, 2
        %v707 = vadd.f32 %v705, %v706
        %v708 = vrot.slane %v707, 1
        %v709 = vadd.f32 %v707, %v708
        %s710 = vtos %v709
        %s711 = sadd.f32 %s684, %s710
        %v712 = vsel %vm671, %v611, 0.0
        %v713 = vsel %vm671, %v618, 0.0
        %v714 = vadd.f32 %v712, %v713
        %715 = vadd.xlane.f32.xlu0 %v714
        %v716 = vpop.xlane.xlu0 %715
        %v717 = vrot.slane %v716, 4
        %v718 = vadd.f32 %v716, %v717
        %v719 = vrot.slane %v718, 2
        %v720 = vadd.f32 %v718, %v719
        %v721 = vrot.slane %v720, 1
        %v722 = vadd.f32 %v720, %v721
        %s723 = vtos %v722
        %v724 = vsel %vm671, %v635, 0.0
        %v725 = vsel %vm671, %v636, 0.0
        %v726 = vadd.f32 %v724, %v725
        %727 = vadd.xlane.f32.xlu0 %v726
        %v728 = vpop.xlane.xlu0 %727
        %v729 = vrot.slane %v728, 4
        %v730 = vadd.f32 %v728, %v729
        %v731 = vrot.slane %v730, 2
        %v732 = vadd.f32 %v730, %v731
        %v733 = vrot.slane %v732, 1
        %v734 = vadd.f32 %v732, %v733
        %s735 = vtos %v734
        %s736 = sadd.f32 %s723, %s735
        %v737 = vrot.slane %v639, 1
        %v738 = vrot.slane %v640, 1
        %v741 = vsel %vm671, %v737, 0.0
        %v742 = vsel %vm671, %v738, 0.0
        %v743 = vadd.f32 %v741, %v742
        %744 = vadd.xlane.f32.xlu0 %v743
        %v745 = vpop.xlane.xlu0 %744
        %v746 = vrot.slane %v745, 4
        %v747 = vadd.f32 %v745, %v746
        %v748 = vrot.slane %v747, 2
        %v749 = vadd.f32 %v747, %v748
        %v750 = vrot.slane %v749, 1
        %v751 = vadd.f32 %v749, %v750
        %s752 = vtos %v751
        %s753 = sadd.f32 %s736, %s752
        %s754 = sld [smem:[#allocation2]]
        %s755 = sadd.f32 %s754, %s711
        %s756 = scalar_lea.smem [#allocation2], 0
        %757 = sst [smem:[%s756]] %s755
        %s758 = sld [smem:[#allocation2 + $0x1]]
        %s759 = sadd.f32 %s758, %s753
        %s760 = scalar_lea.smem [#allocation2], 1
        %761 = sst [smem:[%s760]] %s759
        %p762 = scmp.eq.s32.totalorder %s28, 1
        // Predicated region
        $region85: #{tpu_custom_call.1} parent=51 // pred_check
          %p763 = pneg %p762
        $region86: #{tpu_custom_call.1} parent=51 // pred_check_branch
          %765 = sbr.rel (%p763) target = $region88
        $region87: #{tpu_custom_call.1} parent=51 // pred_region
          %s766 = sld [smem:[#allocation2]]
          %s767 = sld [smem:[#allocation2 + $0x1]]
          %v768 = vstv %s767
          %v769 = vrcp.pop %v768
          %v770 = vmul.f32 %v768, %v769
          %v771 = vsub.f32 1.0, %v770
          %v772 = vmul.f32 %v769, %v771
          %v773 = vadd.f32 %v769, %v772
          %vm774 = vweird.f32 %v768
          %vm775 = vweird.f32 %v769
          %vm776 = vmor %vm774, %vm775
          %v777 = vsel %vm776, %v769, %v773
          %v778 = vand.u32 2147483647, %v768
          %vm779 = vcmp.eq.f32.partialorder %v778, 8.507059e+37
          %v780 = vand.u32 %v768, 2147483648
          %v781 = vor.u32 1.1754944e-38, %v780
          %v782 = vsel %vm779, %v781, %v777
          %s783 = vtos %v782
          %s784 = smul.f32 %s766, %s783
          %s785 = ssub.f32 0.0, %s784
          %s786 = scalar_lea.smem [#allocation15], 1
          %787 = sst [smem:[%s786]] %s785
        $region88: #{tpu_custom_call.1} parent=51 // pred_fallthru
          _
        // Predicated region
        $region89: #{tpu_custom_call.1} parent=51 // pred_check
          %p788 = pneg %p486
        $region90: #{tpu_custom_call.1} parent=51 // pred_check_branch
          %790 = sbr.rel (%p788) target = $region92
        $region91: #{tpu_custom_call.1} parent=51 // pred_region
          %v791 = vld [vmem:[#allocation3] sm:$0xff]
          %v792 = vld [vmem:[#allocation3 + $0x8] sm:$0xff]
          %v793 = vld [vmem:[#allocation3 + $0x10] sm:$0xff]
          %v794 = vld [vmem:[#allocation3 + $0x18] sm:$0xff]
          %v795 = vld [vmem:[#allocation3 + $0x20] sm:$0xff]
          %v796 = vld [vmem:[#allocation3 + $0x28] sm:$0xff]
          %v797 = vld [vmem:[#allocation3 + $0x30] sm:$0xff]
          %v798 = vld [vmem:[#allocation3 + $0x38] sm:$0xff]
          %v799 = vld [vmem:[#allocation6] sm:$0xff]
          %v800 = vld [vmem:[#allocation6 + $0x8] sm:$0xff]
          %v801 = vld [vmem:[#allocation6 + $0x10] sm:$0xff]
          %v802 = vld [vmem:[#allocation6 + $0x18] sm:$0xff]
          %v803 = vld [vmem:[#allocation6 + $0x20] sm:$0xff]
          %v804 = vld [vmem:[#allocation6 + $0x28] sm:$0xff]
          %v805 = vld [vmem:[#allocation6 + $0x30] sm:$0xff]
          %v806 = vld [vmem:[#allocation6 + $0x38] sm:$0xff]
          %v807 = vld [vmem:[#allocation6 + $0x40] sm:$0xff]
          %v808 = vld [vmem:[#allocation6 + $0x48] sm:$0xff]
          %v809 = vld [vmem:[#allocation6 + $0x50] sm:$0xff]
          %v810 = vld [vmem:[#allocation6 + $0x58] sm:$0xff]
          %v811 = vld [vmem:[#allocation6 + $0x60] sm:$0xff]
          %v812 = vld [vmem:[#allocation6 + $0x68] sm:$0xff]
          %v813 = vld [vmem:[#allocation6 + $0x70] sm:$0xff]
          %v814 = vld [vmem:[#allocation6 + $0x78] sm:$0xff]
          %815 = vmatpush.xpose.msra.mxu0 %v814
          %816 = vmatpush.xpose.msra.mxu0 %v813
          %817 = vmatpush.xpose.msra.mxu0 %v812
          %818 = vmatpush.xpose.msra.mxu0 %v811
          %819 = vmatpush.xpose.msra.mxu0 %v810
          %820 = vmatpush.xpose.msra.mxu0 %v809
          %821 = vmatpush.xpose.msra.mxu0 %v808
          %822 = vmatpush.xpose.msra.mxu0 %v807
          %823 = vmatpush.xpose.msra.mxu0 %v806
          %824 = vmatpush.xpose.msra.mxu0 %v805
          %825 = vmatpush.xpose.msra.mxu0 %v804
          %826 = vmatpush.xpose.msra.mxu0 %v803
          %827 = vmatpush.xpose.msra.mxu0 %v802
          %828 = vmatpush.xpose.msra.mxu0 %v801
          %829 = vmatpush.xpose.msra.mxu0 %v800
          %830 = vmatpush.xpose.msra.mxu0 %v799
          %831 = vmatmul.f32.gmra.mxu0 %v791
          %v832 = vpop.f32.mrf.mxu0
          %v833 = vadd.f32 1.0, %v832
          %834 = vmatmul.f32.gmra.mxu0 %v792
          %v835 = vpop.f32.mrf.mxu0
          %v836 = vadd.f32 1.0, %v835
          %837 = vmatmul.f32.gmra.mxu0 %v793
          %v838 = vpop.f32.mrf.mxu0
          %v839 = vadd.f32 1.0, %v838
          %840 = vmatmul.f32.gmra.mxu0 %v794
          %v841 = vpop.f32.mrf.mxu0
          %v842 = vadd.f32 1.0, %v841
          %843 = vmatmul.f32.gmra.mxu0 %v795
          %v844 = vpop.f32.mrf.mxu0
          %v845 = vadd.f32 1.0, %v844
          %846 = vmatmul.f32.gmra.mxu0 %v796
          %v847 = vpop.f32.mrf.mxu0
          %v848 = vadd.f32 1.0, %v847
          %849 = vmatmul.f32.gmra.mxu0 %v797
          %v850 = vpop.f32.mrf.mxu0
          %v851 = vadd.f32 1.0, %v850
          %852 = vmatmul.f32.gmra.mxu0 %v798
          %v853 = vpop.f32.mrf.mxu0
          %v854 = vadd.f32 1.0, %v853
          %855 = vdwg.mxu0
          %v856 = vmax.f32 %v833, 0.0
          %v857 = vmax.f32 %v836, 0.0
          %v858 = vmax.f32 %v839, 0.0
          %v859 = vmax.f32 %v842, 0.0
          %v860 = vmax.f32 %v845, 0.0
          %v861 = vmax.f32 %v848, 0.0
          %v862 = vmax.f32 %v851, 0.0
          %v863 = vmax.f32 %v854, 0.0
          %v864 = vrsqrt.pop %v856
          %v865 = vmul.f32 %v864, %v856
          %v866 = vmul.f32 %v865, %v864
          %v867 = vmul.f32 0.5, %v866
          %v868 = vsub.f32 1.5, %v867
          %v869 = vmul.f32 %v864, %v868
          %v870 = vmul.f32 %v856, %v869
          %vm871 = vcmp.eq.f32.partialorder %v856, inf
          %v872 = vsel %vm871, %v856, %v870
          %vm873 = vcmp.eq.f32.partialorder %v856, 0.0
          %v874 = vand.u32 %v856, 2147483648
          %v875 = vsel %vm873, %v874, %v872
          %v876 = vrsqrt.pop %v857
          %v877 = vmul.f32 %v876, %v857
          %v878 = vmul.f32 %v877, %v876
          %v879 = vmul.f32 0.5, %v878
          %v880 = vsub.f32 1.5, %v879
          %v881 = vmul.f32 %v876, %v880
          %v882 = vmul.f32 %v857, %v881
          %vm883 = vcmp.eq.f32.partialorder %v857, inf
          %v884 = vsel %vm883, %v857, %v882
          %vm885 = vcmp.eq.f32.partialorder %v857, 0.0
          %v886 = vand.u32 %v857, 2147483648
          %v887 = vsel %vm885, %v886, %v884
          %v888 = vrsqrt.pop %v858
          %v889 = vmul.f32 %v888, %v858
          %v890 = vmul.f32 %v889, %v888
          %v891 = vmul.f32 0.5, %v890
          %v892 = vsub.f32 1.5, %v891
          %v893 = vmul.f32 %v888, %v892
          %v894 = vmul.f32 %v858, %v893
          %vm895 = vcmp.eq.f32.partialorder %v858, inf
          %v896 = vsel %vm895, %v858, %v894
          %vm897 = vcmp.eq.f32.partialorder %v858, 0.0
          %v898 = vand.u32 %v858, 2147483648
          %v899 = vsel %vm897, %v898, %v896
          %v900 = vrsqrt.pop %v859
          %v901 = vmul.f32 %v900, %v859
          %v902 = vmul.f32 %v901, %v900
          %v903 = vmul.f32 0.5, %v902
          %v904 = vsub.f32 1.5, %v903
          %v905 = vmul.f32 %v900, %v904
          %v906 = vmul.f32 %v859, %v905
          %vm907 = vcmp.eq.f32.partialorder %v859, inf
          %v908 = vsel %vm907, %v859, %v906
          %vm909 = vcmp.eq.f32.partialorder %v859, 0.0
          %v910 = vand.u32 %v859, 2147483648
          %v911 = vsel %vm909, %v910, %v908
          %v912 = vrsqrt.pop %v860
          %v913 = vmul.f32 %v912, %v860
          %v914 = vmul.f32 %v913, %v912
          %v915 = vmul.f32 0.5, %v914
          %v916 = vsub.f32 1.5, %v915
          %v917 = vmul.f32 %v912, %v916
          %v918 = vmul.f32 %v860, %v917
          %vm919 = vcmp.eq.f32.partialorder %v860, inf
          %v920 = vsel %vm919, %v860, %v918
          %vm921 = vcmp.eq.f32.partialorder %v860, 0.0
          %v922 = vand.u32 %v860, 2147483648
          %v923 = vsel %vm921, %v922, %v920
          %v924 = vrsqrt.pop %v861
          %v925 = vmul.f32 %v924, %v861
          %v926 = vmul.f32 %v925, %v924
          %v927 = vmul.f32 0.5, %v926
          %v928 = vsub.f32 1.5, %v927
          %v929 = vmul.f32 %v924, %v928
          %v930 = vmul.f32 %v861, %v929
          %vm931 = vcmp.eq.f32.partialorder %v861, inf
          %v932 = vsel %vm931, %v861, %v930
          %vm933 = vcmp.eq.f32.partialorder %v861, 0.0
          %v934 = vand.u32 %v861, 2147483648
          %v935 = vsel %vm933, %v934, %v932
          %v936 = vrsqrt.pop %v862
          %v937 = vmul.f32 %v936, %v862
          %v938 = vmul.f32 %v937, %v936
          %v939 = vmul.f32 0.5, %v938
          %v940 = vsub.f32 1.5, %v939
          %v941 = vmul.f32 %v936, %v940
          %v942 = vmul.f32 %v862, %v941
          %vm943 = vcmp.eq.f32.partialorder %v862, inf
          %v944 = vsel %vm943, %v862, %v942
          %vm945 = vcmp.eq.f32.partialorder %v862, 0.0
          %v946 = vand.u32 %v862, 2147483648
          %v947 = vsel %vm945, %v946, %v944
          %v948 = vrsqrt.pop %v863
          %v949 = vmul.f32 %v948, %v863
          %v950 = vmul.f32 %v949, %v948
          %v951 = vmul.f32 0.5, %v950
          %v952 = vsub.f32 1.5, %v951
          %v953 = vmul.f32 %v948, %v952
          %v954 = vmul.f32 %v863, %v953
          %vm955 = vcmp.eq.f32.partialorder %v863, inf
          %v956 = vsel %vm955, %v863, %v954
          %vm957 = vcmp.eq.f32.partialorder %v863, 0.0
          %v958 = vand.u32 %v863, 2147483648
          %v959 = vsel %vm957, %v958, %v956
          %v960 = vld [vmem:[#allocation8] sm:$0x3]
          %v961 = vlaneseq
          %v962 = vshrl.u32 %v961, 7
          %v963 = vadd.s32 %v962, 8
          %v964 = vadd.s32 %v962, 16
          %v965 = vadd.s32 %v962, 24
          %v966 = vadd.s32 %v962, 32
          %v967 = vadd.s32 %v962, 40
          %v968 = vadd.s32 %v962, 48
          %v969 = vadd.s32 %v962, 56
          %v970 = vadd.s32 %v962, 64
          %v971 = vadd.s32 %v962, 72
          %v972 = vadd.s32 %v962, 80
          %v973 = vadd.s32 %v962, 88
          %v974 = vadd.s32 %v962, 96
          %v975 = vadd.s32 %v962, 104
          %v976 = vadd.s32 %v962, 112
          %v977 = vadd.s32 %v962, 120
          %v978 = vperm.slane %v960, 0
          %vm979 = vcmp.eq.s32.totalorder %v962, %v978
          %vm980 = vcmp.eq.s32.totalorder %v963, %v978
          %vm981 = vcmp.eq.s32.totalorder %v964, %v978
          %vm982 = vcmp.eq.s32.totalorder %v965, %v978
          %vm983 = vcmp.eq.s32.totalorder %v966, %v978
          %vm984 = vcmp.eq.s32.totalorder %v967, %v978
          %vm985 = vcmp.eq.s32.totalorder %v968, %v978
          %vm986 = vcmp.eq.s32.totalorder %v969, %v978
          %v987 = vld [vmem:[%s3] sm:$0x1]
          %v989 = vperm.slane %v987, 0
          %v991 = vsel %vm979, %v989, 0.0
          %v992 = vsel %vm980, %v989, 0.0
          %v993 = vsel %vm981, %v989, 0.0
          %v994 = vsel %vm982, %v989, 0.0
          %v995 = vsel %vm983, %v989, 0.0
          %v996 = vsel %vm984, %v989, 0.0
          %v997 = vsel %vm985, %v989, 0.0
          %v998 = vsel %vm986, %v989, 0.0
          %v999 = vperm.slane %v960, 1
          %vm1000 = vcmp.eq.s32.totalorder %v962, %v999
          %vm1001 = vcmp.eq.s32.totalorder %v963, %v999
          %vm1002 = vcmp.eq.s32.totalorder %v964, %v999
          %vm1003 = vcmp.eq.s32.totalorder %v965, %v999
          %vm1004 = vcmp.eq.s32.totalorder %v966, %v999
          %vm1005 = vcmp.eq.s32.totalorder %v967, %v999
          %vm1006 = vcmp.eq.s32.totalorder %v968, %v999
          %vm1007 = vcmp.eq.s32.totalorder %v969, %v999
          %vm1008 = vcmp.eq.s32.totalorder %v970, %v999
          %vm1009 = vcmp.eq.s32.totalorder %v971, %v999
          %vm1010 = vcmp.eq.s32.totalorder %v972, %v999
          %vm1011 = vcmp.eq.s32.totalorder %v973, %v999
          %vm1012 = vcmp.eq.s32.totalorder %v974, %v999
          %vm1013 = vcmp.eq.s32.totalorder %v975, %v999
          %vm1014 = vcmp.eq.s32.totalorder %v976, %v999
          %vm1015 = vcmp.eq.s32.totalorder %v977, %v999
          %v1016 = vsel %vm1000, 1, 0
          %v1017 = vsel %vm1001, 1, 0
          %v1018 = vsel %vm1002, 1, 0
          %v1019 = vsel %vm1003, 1, 0
          %v1020 = vsel %vm1004, 1, 0
          %v1021 = vsel %vm1005, 1, 0
          %v1022 = vsel %vm1006, 1, 0
          %v1023 = vsel %vm1007, 1, 0
          %v1024 = vsel %vm1008, 1, 0
          %v1025 = vsel %vm1009, 1, 0
          %v1026 = vsel %vm1010, 1, 0
          %v1027 = vsel %vm1011, 1, 0
          %v1028 = vsel %vm1012, 1, 0
          %v1029 = vsel %vm1013, 1, 0
          %v1030 = vsel %vm1014, 1, 0
          %v1031 = vsel %vm1015, 1, 0
          %v1032 = vcvt.s32.f32 %v1016
          %v1033 = vcvt.s32.f32 %v1017
          %v1034 = vcvt.s32.f32 %v1018
          %v1035 = vcvt.s32.f32 %v1019
          %v1036 = vcvt.s32.f32 %v1020
          %v1037 = vcvt.s32.f32 %v1021
          %v1038 = vcvt.s32.f32 %v1022
          %v1039 = vcvt.s32.f32 %v1023
          %v1040 = vcvt.s32.f32 %v1024
          %v1041 = vcvt.s32.f32 %v1025
          %v1042 = vcvt.s32.f32 %v1026
          %v1043 = vcvt.s32.f32 %v1027
          %v1044 = vcvt.s32.f32 %v1028
          %v1045 = vcvt.s32.f32 %v1029
          %v1046 = vcvt.s32.f32 %v1030
          %v1047 = vcvt.s32.f32 %v1031
          %v1048 = vand.u32 %v1047, 4294901760
          %1049 = vmatpush.xpose.msra.mxu0 %v1048
          %v1050 = vand.u32 %v1046, 4294901760
          %1051 = vmatpush.xpose.msra.mxu0 %v1050
          %v1052 = vand.u32 %v1045, 4294901760
          %1053 = vmatpush.xpose.msra.mxu0 %v1052
          %v1054 = vand.u32 %v1044, 4294901760
          %1055 = vmatpush.xpose.msra.mxu0 %v1054
          %v1056 = vand.u32 %v1043, 4294901760
          %1057 = vmatpush.xpose.msra.mxu0 %v1056
          %v1058 = vand.u32 %v1042, 4294901760
          %1059 = vmatpush.xpose.msra.mxu0 %v1058
          %v1060 = vand.u32 %v1041, 4294901760
          %1061 = vmatpush.xpose.msra.mxu0 %v1060
          %v1062 = vand.u32 %v1040, 4294901760
          %1063 = vmatpush.xpose.msra.mxu0 %v1062
          %v1064 = vand.u32 %v1039, 4294901760
          %1065 = vmatpush.xpose.msra.mxu0 %v1064
          %v1066 = vand.u32 %v1038, 4294901760
          %1067 = vmatpush.xpose.msra.mxu0 %v1066
          %v1068 = vand.u32 %v1037, 4294901760
          %1069 = vmatpush.xpose.msra.mxu0 %v1068
          %v1070 = vand.u32 %v1036, 4294901760
          %1071 = vmatpush.xpose.msra.mxu0 %v1070
          %v1072 = vand.u32 %v1035, 4294901760
          %1073 = vmatpush.xpose.msra.mxu0 %v1072
          %v1074 = vand.u32 %v1034, 4294901760
          %1075 = vmatpush.xpose.msra.mxu0 %v1074
          %v1076 = vand.u32 %v1033, 4294901760
          %1077 = vmatpush.xpose.msra.mxu0 %v1076
          %v1078 = vand.u32 %v1032, 4294901760
          %1079 = vmatpush.xpose.msra.mxu0 %v1078
          %v1080 = vand.u32 %v991, 4294901760
          %v1081 = vsub.f32 %v991, %v1080
          %v1082 = vand.u32 %v1081, 4294901760
          %v1083 = vsub.f32 %v1081, %v1082
          %v1084 = vand.u32 %v1083, 4294901760
          %1085 = vmatmul.f32.gmra.mxu0 %v1084
          %v1086 = vpop.f32.mrf.mxu0
          %v1087 = vadd.f32 0.0, %v1086
          %v1088 = vand.u32 %v992, 4294901760
          %v1089 = vsub.f32 %v992, %v1088
          %v1090 = vand.u32 %v1089, 4294901760
          %v1091 = vsub.f32 %v1089, %v1090
          %v1092 = vand.u32 %v1091, 4294901760
          %1093 = vmatmul.f32.gmra.mxu0 %v1092
          %v1094 = vpop.f32.mrf.mxu0
          %v1095 = vadd.f32 0.0, %v1094
          %v1096 = vand.u32 %v993, 4294901760
          %v1097 = vsub.f32 %v993, %v1096
          %v1098 = vand.u32 %v1097, 4294901760
          %v1099 = vsub.f32 %v1097, %v1098
          %v1100 = vand.u32 %v1099, 4294901760
          %1101 = vmatmul.f32.gmra.mxu0 %v1100
          %v1102 = vpop.f32.mrf.mxu0
          %v1103 = vadd.f32 0.0, %v1102
          %v1104 = vand.u32 %v994, 4294901760
          %v1105 = vsub.f32 %v994, %v1104
          %v1106 = vand.u32 %v1105, 4294901760
          %v1107 = vsub.f32 %v1105, %v1106
          %v1108 = vand.u32 %v1107, 4294901760
          %1109 = vmatmul.f32.gmra.mxu0 %v1108
          %v1110 = vpop.f32.mrf.mxu0
          %v1111 = vadd.f32 0.0, %v1110
          %v1112 = vand.u32 %v995, 4294901760
          %v1113 = vsub.f32 %v995, %v1112
          %v1114 = vand.u32 %v1113, 4294901760
          %v1115 = vsub.f32 %v1113, %v1114
          %v1116 = vand.u32 %v1115, 4294901760
          %1117 = vmatmul.f32.gmra.mxu0 %v1116
          %v1118 = vpop.f32.mrf.mxu0
          %v1119 = vadd.f32 0.0, %v1118
          %v1120 = vand.u32 %v996, 4294901760
          %v1121 = vsub.f32 %v996, %v1120
          %v1122 = vand.u32 %v1121, 4294901760
          %v1123 = vsub.f32 %v1121, %v1122
          %v1124 = vand.u32 %v1123, 4294901760
          %1125 = vmatmul.f32.gmra.mxu0 %v1124
          %v1126 = vpop.f32.mrf.mxu0
          %v1127 = vadd.f32 0.0, %v1126
          %v1128 = vand.u32 %v997, 4294901760
          %v1129 = vsub.f32 %v997, %v1128
          %v1130 = vand.u32 %v1129, 4294901760
          %v1131 = vsub.f32 %v1129, %v1130
          %v1132 = vand.u32 %v1131, 4294901760
          %1133 = vmatmul.f32.gmra.mxu0 %v1132
          %v1134 = vpop.f32.mrf.mxu0
          %v1135 = vadd.f32 0.0, %v1134
          %v1136 = vand.u32 %v998, 4294901760
          %v1137 = vsub.f32 %v998, %v1136
          %v1138 = vand.u32 %v1137, 4294901760
          %v1139 = vsub.f32 %v1137, %v1138
          %v1140 = vand.u32 %v1139, 4294901760
          %1141 = vmatmul.f32.gmra.mxu0 %v1140
          %v1142 = vpop.f32.mrf.mxu0
          %v1143 = vadd.f32 0.0, %v1142
          %1144 = vdwg.mxu0
          %v1145 = vand.u32 %v1047, 4294901760
          %v1146 = vsub.f32 %v1047, %v1145
          %v1147 = vand.u32 %v1146, 4294901760
          %v1148 = vsub.f32 %v1146, %v1147
          %v1149 = vand.u32 %v1148, 4294901760
          %1150 = vmatpush.xpose.msra.mxu0 %v1149
          %v1151 = vand.u32 %v1046, 4294901760
          %v1152 = vsub.f32 %v1046, %v1151
          %v1153 = vand.u32 %v1152, 4294901760
          %v1154 = vsub.f32 %v1152, %v1153
          %v1155 = vand.u32 %v1154, 4294901760
          %1156 = vmatpush.xpose.msra.mxu0 %v1155
          %v1157 = vand.u32 %v1045, 4294901760
          %v1158 = vsub.f32 %v1045, %v1157
          %v1159 = vand.u32 %v1158, 4294901760
          %v1160 = vsub.f32 %v1158, %v1159
          %v1161 = vand.u32 %v1160, 4294901760
          %1162 = vmatpush.xpose.msra.mxu0 %v1161
          %v1163 = vand.u32 %v1044, 4294901760
          %v1164 = vsub.f32 %v1044, %v1163
          %v1165 = vand.u32 %v1164, 4294901760
          %v1166 = vsub.f32 %v1164, %v1165
          %v1167 = vand.u32 %v1166, 4294901760
          %1168 = vmatpush.xpose.msra.mxu0 %v1167
          %v1169 = vand.u32 %v1043, 4294901760
          %v1170 = vsub.f32 %v1043, %v1169
          %v1171 = vand.u32 %v1170, 4294901760
          %v1172 = vsub.f32 %v1170, %v1171
          %v1173 = vand.u32 %v1172, 4294901760
          %1174 = vmatpush.xpose.msra.mxu0 %v1173
          %v1175 = vand.u32 %v1042, 4294901760
          %v1176 = vsub.f32 %v1042, %v1175
          %v1177 = vand.u32 %v1176, 4294901760
          %v1178 = vsub.f32 %v1176, %v1177
          %v1179 = vand.u32 %v1178, 4294901760
          %1180 = vmatpush.xpose.msra.mxu0 %v1179
          %v1181 = vand.u32 %v1041, 4294901760
          %v1182 = vsub.f32 %v1041, %v1181
          %v1183 = vand.u32 %v1182, 4294901760
          %v1184 = vsub.f32 %v1182, %v1183
          %v1185 = vand.u32 %v1184, 4294901760
          %1186 = vmatpush.xpose.msra.mxu0 %v1185
          %v1187 = vand.u32 %v1040, 4294901760
          %v1188 = vsub.f32 %v1040, %v1187
          %v1189 = vand.u32 %v1188, 4294901760
          %v1190 = vsub.f32 %v1188, %v1189
          %v1191 = vand.u32 %v1190, 4294901760
          %1192 = vmatpush.xpose.msra.mxu0 %v1191
          %v1193 = vand.u32 %v1039, 4294901760
          %v1194 = vsub.f32 %v1039, %v1193
          %v1195 = vand.u32 %v1194, 4294901760
          %v1196 = vsub.f32 %v1194, %v1195
          %v1197 = vand.u32 %v1196, 4294901760
          %1198 = vmatpush.xpose.msra.mxu0 %v1197
          %v1199 = vand.u32 %v1038, 4294901760
          %v1200 = vsub.f32 %v1038, %v1199
          %v1201 = vand.u32 %v1200, 4294901760
          %v1202 = vsub.f32 %v1200, %v1201
          %v1203 = vand.u32 %v1202, 4294901760
          %1204 = vmatpush.xpose.msra.mxu0 %v1203
          %v1205 = vand.u32 %v1037, 4294901760
          %v1206 = vsub.f32 %v1037, %v1205
          %v1207 = vand.u32 %v1206, 4294901760
          %v1208 = vsub.f32 %v1206, %v1207
          %v1209 = vand.u32 %v1208, 4294901760
          %1210 = vmatpush.xpose.msra.mxu0 %v1209
          %v1211 = vand.u32 %v1036, 4294901760
          %v1212 = vsub.f32 %v1036, %v1211
          %v1213 = vand.u32 %v1212, 4294901760
          %v1214 = vsub.f32 %v1212, %v1213
          %v1215 = vand.u32 %v1214, 4294901760
          %1216 = vmatpush.xpose.msra.mxu0 %v1215
          %v1217 = vand.u32 %v1035, 4294901760
          %v1218 = vsub.f32 %v1035, %v1217
          %v1219 = vand.u32 %v1218, 4294901760
          %v1220 = vsub.f32 %v1218, %v1219
          %v1221 = vand.u32 %v1220, 4294901760
          %1222 = vmatpush.xpose.msra.mxu0 %v1221
          %v1223 = vand.u32 %v1034, 4294901760
          %v1224 = vsub.f32 %v1034, %v1223
          %v1225 = vand.u32 %v1224, 4294901760
          %v1226 = vsub.f32 %v1224, %v1225
          %v1227 = vand.u32 %v1226, 4294901760
          %1228 = vmatpush.xpose.msra.mxu0 %v1227
          %v1229 = vand.u32 %v1033, 4294901760
          %v1230 = vsub.f32 %v1033, %v1229
          %v1231 = vand.u32 %v1230, 4294901760
          %v1232 = vsub.f32 %v1230, %v1231
          %v1233 = vand.u32 %v1232, 4294901760
          %1234 = vmatpush.xpose.msra.mxu0 %v1233
          %v1235 = vand.u32 %v1032, 4294901760
          %v1236 = vsub.f32 %v1032, %v1235
          %v1237 = vand.u32 %v1236, 4294901760
          %v1238 = vsub.f32 %v1236, %v1237
          %v1239 = vand.u32 %v1238, 4294901760
          %1240 = vmatpush.xpose.msra.mxu0 %v1239
          %v1241 = vand.u32 %v991, 4294901760
          %1242 = vmatmul.f32.gmra.mxu0 %v1241
          %v1243 = vpop.f32.mrf.mxu0
          %v1244 = vadd.f32 %v1087, %v1243
          %v1245 = vand.u32 %v992, 4294901760
          %1246 = vmatmul.f32.gmra.mxu0 %v1245
          %v1247 = vpop.f32.mrf.mxu0
          %v1248 = vadd.f32 %v1095, %v1247
          %v1249 = vand.u32 %v993, 4294901760
          %1250 = vmatmul.f32.gmra.mxu0 %v1249
          %v1251 = vpop.f32.mrf.mxu0
          %v1252 = vadd.f32 %v1103, %v1251
          %v1253 = vand.u32 %v994, 4294901760
          %1254 = vmatmul.f32.gmra.mxu0 %v1253
          %v1255 = vpop.f32.mrf.mxu0
          %v1256 = vadd.f32 %v1111, %v1255
          %v1257 = vand.u32 %v995, 4294901760
          %1258 = vmatmul.f32.gmra.mxu0 %v1257
          %v1259 = vpop.f32.mrf.mxu0
          %v1260 = vadd.f32 %v1119, %v1259
          %v1261 = vand.u32 %v996, 4294901760
          %1262 = vmatmul.f32.gmra.mxu0 %v1261
          %v1263 = vpop.f32.mrf.mxu0
          %v1264 = vadd.f32 %v1127, %v1263
          %v1265 = vand.u32 %v997, 4294901760
          %1266 = vmatmul.f32.gmra.mxu0 %v1265
          %v1267 = vpop.f32.mrf.mxu0
          %v1268 = vadd.f32 %v1135, %v1267
          %v1269 = vand.u32 %v998, 4294901760
          %1270 = vmatmul.f32.gmra.mxu0 %v1269
          %v1271 = vpop.f32.mrf.mxu0
          %v1272 = vadd.f32 %v1143, %v1271
          %1273 = vdwg.mxu0
          %v1274 = vand.u32 %v1047, 4294901760
          %v1275 = vsub.f32 %v1047, %v1274
          %1276 = vmatpush.xpose.msra.mxu0 %v1275
          %v1277 = vand.u32 %v1046, 4294901760
          %v1278 = vsub.f32 %v1046, %v1277
          %1279 = vmatpush.xpose.msra.mxu0 %v1278
          %v1280 = vand.u32 %v1045, 4294901760
          %v1281 = vsub.f32 %v1045, %v1280
          %1282 = vmatpush.xpose.msra.mxu0 %v1281
          %v1283 = vand.u32 %v1044, 4294901760
          %v1284 = vsub.f32 %v1044, %v1283
          %1285 = vmatpush.xpose.msra.mxu0 %v1284
          %v1286 = vand.u32 %v1043, 4294901760
          %v1287 = vsub.f32 %v1043, %v1286
          %1288 = vmatpush.xpose.msra.mxu0 %v1287
          %v1289 = vand.u32 %v1042, 4294901760
          %v1290 = vsub.f32 %v1042, %v1289
          %1291 = vmatpush.xpose.msra.mxu0 %v1290
          %v1292 = vand.u32 %v1041, 4294901760
          %v1293 = vsub.f32 %v1041, %v1292
          %1294 = vmatpush.xpose.msra.mxu0 %v1293
          %v1295 = vand.u32 %v1040, 4294901760
          %v1296 = vsub.f32 %v1040, %v1295
          %1297 = vmatpush.xpose.msra.mxu0 %v1296
          %v1298 = vand.u32 %v1039, 4294901760
          %v1299 = vsub.f32 %v1039, %v1298
          %1300 = vmatpush.xpose.msra.mxu0 %v1299
          %v1301 = vand.u32 %v1038, 4294901760
          %v1302 = vsub.f32 %v1038, %v1301
          %1303 = vmatpush.xpose.msra.mxu0 %v1302
          %v1304 = vand.u32 %v1037, 4294901760
          %v1305 = vsub.f32 %v1037, %v1304
          %1306 = vmatpush.xpose.msra.mxu0 %v1305
          %v1307 = vand.u32 %v1036, 4294901760
          %v1308 = vsub.f32 %v1036, %v1307
          %1309 = vmatpush.xpose.msra.mxu0 %v1308
          %v1310 = vand.u32 %v1035, 4294901760
          %v1311 = vsub.f32 %v1035, %v1310
          %1312 = vmatpush.xpose.msra.mxu0 %v1311
          %v1313 = vand.u32 %v1034, 4294901760
          %v1314 = vsub.f32 %v1034, %v1313
          %1315 = vmatpush.xpose.msra.mxu0 %v1314
          %v1316 = vand.u32 %v1033, 4294901760
          %v1317 = vsub.f32 %v1033, %v1316
          %1318 = vmatpush.xpose.msra.mxu0 %v1317
          %v1319 = vand.u32 %v1032, 4294901760
          %v1320 = vsub.f32 %v1032, %v1319
          %1321 = vmatpush.xpose.msra.mxu0 %v1320
          %v1322 = vand.u32 %v991, 4294901760
          %v1323 = vsub.f32 %v991, %v1322
          %1324 = vmatmul.f32.gmra.mxu0 %v1323
          %v1325 = vpop.f32.mrf.mxu0
          %v1326 = vadd.f32 %v1244, %v1325
          %v1327 = vand.u32 %v992, 4294901760
          %v1328 = vsub.f32 %v992, %v1327
          %1329 = vmatmul.f32.gmra.mxu0 %v1328
          %v1330 = vpop.f32.mrf.mxu0
          %v1331 = vadd.f32 %v1248, %v1330
          %v1332 = vand.u32 %v993, 4294901760
          %v1333 = vsub.f32 %v993, %v1332
          %1334 = vmatmul.f32.gmra.mxu0 %v1333
          %v1335 = vpop.f32.mrf.mxu0
          %v1336 = vadd.f32 %v1252, %v1335
          %v1337 = vand.u32 %v994, 4294901760
          %v1338 = vsub.f32 %v994, %v1337
          %1339 = vmatmul.f32.gmra.mxu0 %v1338
          %v1340 = vpop.f32.mrf.mxu0
          %v1341 = vadd.f32 %v1256, %v1340
          %v1342 = vand.u32 %v995, 4294901760
          %v1343 = vsub.f32 %v995, %v1342
          %1344 = vmatmul.f32.gmra.mxu0 %v1343
          %v1345 = vpop.f32.mrf.mxu0
          %v1346 = vadd.f32 %v1260, %v1345
          %v1347 = vand.u32 %v996, 4294901760
          %v1348 = vsub.f32 %v996, %v1347
          %1349 = vmatmul.f32.gmra.mxu0 %v1348
          %v1350 = vpop.f32.mrf.mxu0
          %v1351 = vadd.f32 %v1264, %v1350
          %v1352 = vand.u32 %v997, 4294901760
          %v1353 = vsub.f32 %v997, %v1352
          %1354 = vmatmul.f32.gmra.mxu0 %v1353
          %v1355 = vpop.f32.mrf.mxu0
          %v1356 = vadd.f32 %v1268, %v1355
          %v1357 = vand.u32 %v998, 4294901760
          %v1358 = vsub.f32 %v998, %v1357
          %1359 = vmatmul.f32.gmra.mxu0 %v1358
          %v1360 = vpop.f32.mrf.mxu0
          %v1361 = vadd.f32 %v1272, %v1360
          %1362 = vdwg.mxu0
          %v1363 = vand.u32 %v1047, 4294901760
          %1364 = vmatpush.xpose.msra.mxu0 %v1363
          %v1365 = vand.u32 %v1046, 4294901760
          %1366 = vmatpush.xpose.msra.mxu0 %v1365
          %v1367 = vand.u32 %v1045, 4294901760
          %1368 = vmatpush.xpose.msra.mxu0 %v1367
          %v1369 = vand.u32 %v1044, 4294901760
          %1370 = vmatpush.xpose.msra.mxu0 %v1369
          %v1371 = vand.u32 %v1043, 4294901760
          %1372 = vmatpush.xpose.msra.mxu0 %v1371
          %v1373 = vand.u32 %v1042, 4294901760
          %1374 = vmatpush.xpose.msra.mxu0 %v1373
          %v1375 = vand.u32 %v1041, 4294901760
          %1376 = vmatpush.xpose.msra.mxu0 %v1375
          %v1377 = vand.u32 %v1040, 4294901760
          %1378 = vmatpush.xpose.msra.mxu0 %v1377
          %v1379 = vand.u32 %v1039, 4294901760
          %1380 = vmatpush.xpose.msra.mxu0 %v1379
          %v1381 = vand.u32 %v1038, 4294901760
          %1382 = vmatpush.xpose.msra.mxu0 %v1381
          %v1383 = vand.u32 %v1037, 4294901760
          %1384 = vmatpush.xpose.msra.mxu0 %v1383
          %v1385 = vand.u32 %v1036, 4294901760
          %1386 = vmatpush.xpose.msra.mxu0 %v1385
          %v1387 = vand.u32 %v1035, 4294901760
          %1388 = vmatpush.xpose.msra.mxu0 %v1387
          %v1389 = vand.u32 %v1034, 4294901760
          %1390 = vmatpush.xpose.msra.mxu0 %v1389
          %v1391 = vand.u32 %v1033, 4294901760
          %1392 = vmatpush.xpose.msra.mxu0 %v1391
          %v1393 = vand.u32 %v1032, 4294901760
          %1394 = vmatpush.xpose.msra.mxu0 %v1393
          %v1395 = vand.u32 %v991, 4294901760
          %v1396 = vsub.f32 %v991, %v1395
          %v1397 = vand.u32 %v1396, 4294901760
          %1398 = vmatmul.f32.gmra.mxu0 %v1397
          %v1399 = vpop.f32.mrf.mxu0
          %v1400 = vadd.f32 %v1326, %v1399
          %v1401 = vand.u32 %v992, 4294901760
          %v1402 = vsub.f32 %v992, %v1401
          %v1403 = vand.u32 %v1402, 4294901760
          %1404 = vmatmul.f32.gmra.mxu0 %v1403
          %v1405 = vpop.f32.mrf.mxu0
          %v1406 = vadd.f32 %v1331, %v1405
          %v1407 = vand.u32 %v993, 4294901760
          %v1408 = vsub.f32 %v993, %v1407
          %v1409 = vand.u32 %v1408, 4294901760
          %1410 = vmatmul.f32.gmra.mxu0 %v1409
          %v1411 = vpop.f32.mrf.mxu0
          %v1412 = vadd.f32 %v1336, %v1411
          %v1413 = vand.u32 %v994, 4294901760
          %v1414 = vsub.f32 %v994, %v1413
          %v1415 = vand.u32 %v1414, 4294901760
          %1416 = vmatmul.f32.gmra.mxu0 %v1415
          %v1417 = vpop.f32.mrf.mxu0
          %v1418 = vadd.f32 %v1341, %v1417
          %v1419 = vand.u32 %v995, 4294901760
          %v1420 = vsub.f32 %v995, %v1419
          %v1421 = vand.u32 %v1420, 4294901760
          %1422 = vmatmul.f32.gmra.mxu0 %v1421
          %v1423 = vpop.f32.mrf.mxu0
          %v1424 = vadd.f32 %v1346, %v1423
          %v1425 = vand.u32 %v996, 4294901760
          %v1426 = vsub.f32 %v996, %v1425
          %v1427 = vand.u32 %v1426, 4294901760
          %1428 = vmatmul.f32.gmra.mxu0 %v1427
          %v1429 = vpop.f32.mrf.mxu0
          %v1430 = vadd.f32 %v1351, %v1429
          %v1431 = vand.u32 %v997, 4294901760
          %v1432 = vsub.f32 %v997, %v1431
          %v1433 = vand.u32 %v1432, 4294901760
          %1434 = vmatmul.f32.gmra.mxu0 %v1433
          %v1435 = vpop.f32.mrf.mxu0
          %v1436 = vadd.f32 %v1356, %v1435
          %v1437 = vand.u32 %v998, 4294901760
          %v1438 = vsub.f32 %v998, %v1437
          %v1439 = vand.u32 %v1438, 4294901760
          %1440 = vmatmul.f32.gmra.mxu0 %v1439
          %v1441 = vpop.f32.mrf.mxu0
          %v1442 = vadd.f32 %v1361, %v1441
          %1443 = vdwg.mxu0
          %v1444 = vand.u32 %v1047, 4294901760
          %v1445 = vsub.f32 %v1047, %v1444
          %v1446 = vand.u32 %v1445, 4294901760
          %1447 = vmatpush.xpose.msra.mxu0 %v1446
          %v1448 = vand.u32 %v1046, 4294901760
          %v1449 = vsub.f32 %v1046, %v1448
          %v1450 = vand.u32 %v1449, 4294901760
          %1451 = vmatpush.xpose.msra.mxu0 %v1450
          %v1452 = vand.u32 %v1045, 4294901760
          %v1453 = vsub.f32 %v1045, %v1452
          %v1454 = vand.u32 %v1453, 4294901760
          %1455 = vmatpush.xpose.msra.mxu0 %v1454
          %v1456 = vand.u32 %v1044, 4294901760
          %v1457 = vsub.f32 %v1044, %v1456
          %v1458 = vand.u32 %v1457, 4294901760
          %1459 = vmatpush.xpose.msra.mxu0 %v1458
          %v1460 = vand.u32 %v1043, 4294901760
          %v1461 = vsub.f32 %v1043, %v1460
          %v1462 = vand.u32 %v1461, 4294901760
          %1463 = vmatpush.xpose.msra.mxu0 %v1462
          %v1464 = vand.u32 %v1042, 4294901760
          %v1465 = vsub.f32 %v1042, %v1464
          %v1466 = vand.u32 %v1465, 4294901760
          %1467 = vmatpush.xpose.msra.mxu0 %v1466
          %v1468 = vand.u32 %v1041, 4294901760
          %v1469 = vsub.f32 %v1041, %v1468
          %v1470 = vand.u32 %v1469, 4294901760
          %1471 = vmatpush.xpose.msra.mxu0 %v1470
          %v1472 = vand.u32 %v1040, 4294901760
          %v1473 = vsub.f32 %v1040, %v1472
          %v1474 = vand.u32 %v1473, 4294901760
          %1475 = vmatpush.xpose.msra.mxu0 %v1474
          %v1476 = vand.u32 %v1039, 4294901760
          %v1477 = vsub.f32 %v1039, %v1476
          %v1478 = vand.u32 %v1477, 4294901760
          %1479 = vmatpush.xpose.msra.mxu0 %v1478
          %v1480 = vand.u32 %v1038, 4294901760
          %v1481 = vsub.f32 %v1038, %v1480
          %v1482 = vand.u32 %v1481, 4294901760
          %1483 = vmatpush.xpose.msra.mxu0 %v1482
          %v1484 = vand.u32 %v1037, 4294901760
          %v1485 = vsub.f32 %v1037, %v1484
          %v1486 = vand.u32 %v1485, 4294901760
          %1487 = vmatpush.xpose.msra.mxu0 %v1486
          %v1488 = vand.u32 %v1036, 4294901760
          %v1489 = vsub.f32 %v1036, %v1488
          %v1490 = vand.u32 %v1489, 4294901760
          %1491 = vmatpush.xpose.msra.mxu0 %v1490
          %v1492 = vand.u32 %v1035, 4294901760
          %v1493 = vsub.f32 %v1035, %v1492
          %v1494 = vand.u32 %v1493, 4294901760
          %1495 = vmatpush.xpose.msra.mxu0 %v1494
          %v1496 = vand.u32 %v1034, 4294901760
          %v1497 = vsub.f32 %v1034, %v1496
          %v1498 = vand.u32 %v1497, 4294901760
          %1499 = vmatpush.xpose.msra.mxu0 %v1498
          %v1500 = vand.u32 %v1033, 4294901760
          %v1501 = vsub.f32 %v1033, %v1500
          %v1502 = vand.u32 %v1501, 4294901760
          %1503 = vmatpush.xpose.msra.mxu0 %v1502
          %v1504 = vand.u32 %v1032, 4294901760
          %v1505 = vsub.f32 %v1032, %v1504
          %v1506 = vand.u32 %v1505, 4294901760
          %1507 = vmatpush.xpose.msra.mxu0 %v1506
          %v1508 = vand.u32 %v991, 4294901760
          %1509 = vmatmul.f32.gmra.mxu0 %v1508
          %v1510 = vpop.f32.mrf.mxu0
          %v1511 = vadd.f32 %v1400, %v1510
          %v1512 = vand.u32 %v992, 4294901760
          %1513 = vmatmul.f32.gmra.mxu0 %v1512
          %v1514 = vpop.f32.mrf.mxu0
          %v1515 = vadd.f32 %v1406, %v1514
          %v1516 = vand.u32 %v993, 4294901760
          %1517 = vmatmul.f32.gmra.mxu0 %v1516
          %v1518 = vpop.f32.mrf.mxu0
          %v1519 = vadd.f32 %v1412, %v1518
          %v1520 = vand.u32 %v994, 4294901760
          %1521 = vmatmul.f32.gmra.mxu0 %v1520
          %v1522 = vpop.f32.mrf.mxu0
          %v1523 = vadd.f32 %v1418, %v1522
          %v1524 = vand.u32 %v995, 4294901760
          %1525 = vmatmul.f32.gmra.mxu0 %v1524
          %v1526 = vpop.f32.mrf.mxu0
          %v1527 = vadd.f32 %v1424, %v1526
          %v1528 = vand.u32 %v996, 4294901760
          %1529 = vmatmul.f32.gmra.mxu0 %v1528
          %v1530 = vpop.f32.mrf.mxu0
          %v1531 = vadd.f32 %v1430, %v1530
          %v1532 = vand.u32 %v997, 4294901760
          %1533 = vmatmul.f32.gmra.mxu0 %v1532
          %v1534 = vpop.f32.mrf.mxu0
          %v1535 = vadd.f32 %v1436, %v1534
          %v1536 = vand.u32 %v998, 4294901760
          %1537 = vmatmul.f32.gmra.mxu0 %v1536
          %v1538 = vpop.f32.mrf.mxu0
          %v1539 = vadd.f32 %v1442, %v1538
          %1540 = vdwg.mxu0
          %v1541 = vand.u32 %v1047, 4294901760
          %1542 = vmatpush.xpose.msra.mxu0 %v1541
          %v1543 = vand.u32 %v1046, 4294901760
          %1544 = vmatpush.xpose.msra.mxu0 %v1543
          %v1545 = vand.u32 %v1045, 4294901760
          %1546 = vmatpush.xpose.msra.mxu0 %v1545
          %v1547 = vand.u32 %v1044, 4294901760
          %1548 = vmatpush.xpose.msra.mxu0 %v1547
          %v1549 = vand.u32 %v1043, 4294901760
          %1550 = vmatpush.xpose.msra.mxu0 %v1549
          %v1551 = vand.u32 %v1042, 4294901760
          %1552 = vmatpush.xpose.msra.mxu0 %v1551
          %v1553 = vand.u32 %v1041, 4294901760
          %1554 = vmatpush.xpose.msra.mxu0 %v1553
          %v1555 = vand.u32 %v1040, 4294901760
          %1556 = vmatpush.xpose.msra.mxu0 %v1555
          %v1557 = vand.u32 %v1039, 4294901760
          %1558 = vmatpush.xpose.msra.mxu0 %v1557
          %v1559 = vand.u32 %v1038, 4294901760
          %1560 = vmatpush.xpose.msra.mxu0 %v1559
          %v1561 = vand.u32 %v1037, 4294901760
          %1562 = vmatpush.xpose.msra.mxu0 %v1561
          %v1563 = vand.u32 %v1036, 4294901760
          %1564 = vmatpush.xpose.msra.mxu0 %v1563
          %v1565 = vand.u32 %v1035, 4294901760
          %1566 = vmatpush.xpose.msra.mxu0 %v1565
          %v1567 = vand.u32 %v1034, 4294901760
          %1568 = vmatpush.xpose.msra.mxu0 %v1567
          %v1569 = vand.u32 %v1033, 4294901760
          %1570 = vmatpush.xpose.msra.mxu0 %v1569
          %v1571 = vand.u32 %v1032, 4294901760
          %1572 = vmatpush.xpose.msra.mxu0 %v1571
          %v1573 = vand.u32 %v991, 4294901760
          %1574 = vmatmul.f32.gmra.mxu0 %v1573
          %v1575 = vpop.f32.mrf.mxu0
          %v1576 = vadd.f32 %v1511, %v1575
          %v1577 = vand.u32 %v992, 4294901760
          %1578 = vmatmul.f32.gmra.mxu0 %v1577
          %v1579 = vpop.f32.mrf.mxu0
          %v1580 = vadd.f32 %v1515, %v1579
          %v1581 = vand.u32 %v993, 4294901760
          %1582 = vmatmul.f32.gmra.mxu0 %v1581
          %v1583 = vpop.f32.mrf.mxu0
          %v1584 = vadd.f32 %v1519, %v1583
          %v1585 = vand.u32 %v994, 4294901760
          %1586 = vmatmul.f32.gmra.mxu0 %v1585
          %v1587 = vpop.f32.mrf.mxu0
          %v1588 = vadd.f32 %v1523, %v1587
          %v1589 = vand.u32 %v995, 4294901760
          %1590 = vmatmul.f32.gmra.mxu0 %v1589
          %v1591 = vpop.f32.mrf.mxu0
          %v1592 = vadd.f32 %v1527, %v1591
          %v1593 = vand.u32 %v996, 4294901760
          %1594 = vmatmul.f32.gmra.mxu0 %v1593
          %v1595 = vpop.f32.mrf.mxu0
          %v1596 = vadd.f32 %v1531, %v1595
          %v1597 = vand.u32 %v997, 4294901760
          %1598 = vmatmul.f32.gmra.mxu0 %v1597
          %v1599 = vpop.f32.mrf.mxu0
          %v1600 = vadd.f32 %v1535, %v1599
          %v1601 = vand.u32 %v998, 4294901760
          %1602 = vmatmul.f32.gmra.mxu0 %v1601
          %v1603 = vpop.f32.mrf.mxu0
          %v1604 = vadd.f32 %v1539, %v1603
          %1605 = vdwg.mxu0
          %vm1606 = vcmp.lt.s32.totalorder %v962, 64
          %vm1607 = vcmp.lt.s32.totalorder %v963, 64
          %vm1608 = vcmp.lt.s32.totalorder %v964, 64
          %vm1609 = vcmp.lt.s32.totalorder %v965, 64
          %vm1610 = vcmp.lt.s32.totalorder %v966, 64
          %vm1611 = vcmp.lt.s32.totalorder %v967, 64
          %vm1612 = vcmp.lt.s32.totalorder %v968, 64
          %vm1613 = vcmp.lt.s32.totalorder %v969, 64
          %v1614 = vlaneseq
          %v1615 = vand.u32 %v1614, 127
          %vm1616 = vcmp.lt.s32.totalorder %v1615, 48
          %vm1617 = vmand %vm1606, %vm1616
          %vm1618 = vmand %vm1607, %vm1616
          %vm1619 = vmand %vm1608, %vm1616
          %vm1620 = vmand %vm1609, %vm1616
          %vm1621 = vmand %vm1610, %vm1616
          %vm1622 = vmand %vm1611, %vm1616
          %vm1623 = vmand %vm1612, %vm1616
          %vm1624 = vmand %vm1613, %vm1616
          %vm1625 = vcmp.gt.f32.partialorder %v1576, 0.1
          %vm1626 = vcmp.gt.f32.partialorder %v1580, 0.1
          %vm1627 = vcmp.gt.f32.partialorder %v1584, 0.1
          %vm1628 = vcmp.gt.f32.partialorder %v1588, 0.1
          %vm1629 = vcmp.gt.f32.partialorder %v1592, 0.1
          %vm1630 = vcmp.gt.f32.partialorder %v1596, 0.1
          %vm1631 = vcmp.gt.f32.partialorder %v1600, 0.1
          %vm1632 = vcmp.gt.f32.partialorder %v1604, 0.1
          %vm1633 = vcmp.eq.f32.partialorder %v1576, 0.0
          %vm1634 = vcmp.eq.f32.partialorder %v1580, 0.0
          %vm1635 = vcmp.eq.f32.partialorder %v1584, 0.0
          %vm1636 = vcmp.eq.f32.partialorder %v1588, 0.0
          %vm1637 = vcmp.eq.f32.partialorder %v1592, 0.0
          %vm1638 = vcmp.eq.f32.partialorder %v1596, 0.0
          %vm1639 = vcmp.eq.f32.partialorder %v1600, 0.0
          %vm1640 = vcmp.eq.f32.partialorder %v1604, 0.0
          %vm1641 = vmand %vm1633, %vm1617
          %vm1642 = vmand %vm1634, %vm1618
          %vm1643 = vmand %vm1635, %vm1619
          %vm1644 = vmand %vm1636, %vm1620
          %vm1645 = vmand %vm1637, %vm1621
          %vm1646 = vmand %vm1638, %vm1622
          %vm1647 = vmand %vm1639, %vm1623
          %vm1648 = vmand %vm1640, %vm1624
          %v1649 = vsel %vm1625, 1, 0
          %v1650 = vsel %vm1626, 1, 0
          %v1651 = vsel %vm1627, 1, 0
          %v1652 = vsel %vm1628, 1, 0
          %v1653 = vsel %vm1629, 1, 0
          %v1654 = vsel %vm1630, 1, 0
          %v1655 = vsel %vm1631, 1, 0
          %v1656 = vsel %vm1632, 1, 0
          %v1657 = vcvt.s32.f32 %v1649
          %v1658 = vcvt.s32.f32 %v1650
          %v1659 = vcvt.s32.f32 %v1651
          %v1660 = vcvt.s32.f32 %v1652
          %v1661 = vcvt.s32.f32 %v1653
          %v1662 = vcvt.s32.f32 %v1654
          %v1663 = vcvt.s32.f32 %v1655
          %v1664 = vcvt.s32.f32 %v1656
          %v1665 = vsel %vm1641, 1, 0
          %v1666 = vsel %vm1642, 1, 0
          %v1667 = vsel %vm1643, 1, 0
          %v1668 = vsel %vm1644, 1, 0
          %v1669 = vsel %vm1645, 1, 0
          %v1670 = vsel %vm1646, 1, 0
          %v1671 = vsel %vm1647, 1, 0
          %v1672 = vsel %vm1648, 1, 0
          %v1673 = vcvt.s32.f32 %v1665
          %v1674 = vcvt.s32.f32 %v1666
          %v1675 = vcvt.s32.f32 %v1667
          %v1676 = vcvt.s32.f32 %v1668
          %v1677 = vcvt.s32.f32 %v1669
          %v1678 = vcvt.s32.f32 %v1670
          %v1679 = vcvt.s32.f32 %v1671
          %v1680 = vcvt.s32.f32 %v1672
          %1681 = vadd.xlane.f32.xlu0 %v1657
          %v1682 = vpop.xlane.xlu0 %1681
          %1683 = vadd.xlane.f32.xlu0 %v1658
          %v1684 = vpop.xlane.xlu0 %1683
          %1685 = vadd.xlane.f32.xlu0 %v1659
          %v1686 = vpop.xlane.xlu0 %1685
          %1687 = vadd.xlane.f32.xlu0 %v1660
          %v1688 = vpop.xlane.xlu0 %1687
          %1689 = vadd.xlane.f32.xlu0 %v1661
          %v1690 = vpop.xlane.xlu0 %1689
          %1691 = vadd.xlane.f32.xlu0 %v1662
          %v1692 = vpop.xlane.xlu0 %1691
          %1693 = vadd.xlane.f32.xlu0 %v1663
          %v1694 = vpop.xlane.xlu0 %1693
          %1695 = vadd.xlane.f32.xlu0 %v1664
          %v1696 = vpop.xlane.xlu0 %1695
          %vm1697 = vcmp.gt.f32.partialorder %v1682, 0.0
          %vm1698 = vcmp.gt.f32.partialorder %v1684, 0.0
          %vm1699 = vcmp.gt.f32.partialorder %v1686, 0.0
          %vm1700 = vcmp.gt.f32.partialorder %v1688, 0.0
          %vm1701 = vcmp.gt.f32.partialorder %v1690, 0.0
          %vm1702 = vcmp.gt.f32.partialorder %v1692, 0.0
          %vm1703 = vcmp.gt.f32.partialorder %v1694, 0.0
          %vm1704 = vcmp.gt.f32.partialorder %v1696, 0.0
          %1705 = vadd.xlane.f32.xlu0 %v1673
          %v1706 = vpop.xlane.xlu0 %1705
          %1707 = vadd.xlane.f32.xlu0 %v1674
          %v1708 = vpop.xlane.xlu0 %1707
          %1709 = vadd.xlane.f32.xlu0 %v1675
          %v1710 = vpop.xlane.xlu0 %1709
          %1711 = vadd.xlane.f32.xlu0 %v1676
          %v1712 = vpop.xlane.xlu0 %1711
          %1713 = vadd.xlane.f32.xlu0 %v1677
          %v1714 = vpop.xlane.xlu0 %1713
          %1715 = vadd.xlane.f32.xlu0 %v1678
          %v1716 = vpop.xlane.xlu0 %1715
          %1717 = vadd.xlane.f32.xlu0 %v1679
          %v1718 = vpop.xlane.xlu0 %1717
          %1719 = vadd.xlane.f32.xlu0 %v1680
          %v1720 = vpop.xlane.xlu0 %1719
          %vm1721 = vcmp.gt.f32.partialorder %v1706, 0.0
          %vm1722 = vcmp.gt.f32.partialorder %v1708, 0.0
          %vm1723 = vcmp.gt.f32.partialorder %v1710, 0.0
          %vm1724 = vcmp.gt.f32.partialorder %v1712, 0.0
          %vm1725 = vcmp.gt.f32.partialorder %v1714, 0.0
          %vm1726 = vcmp.gt.f32.partialorder %v1716, 0.0
          %vm1727 = vcmp.gt.f32.partialorder %v1718, 0.0
          %vm1728 = vcmp.gt.f32.partialorder %v1720, 0.0
          %vm1729 = vmand %vm1697, %vm1721
          %vm1730 = vmand %vm1698, %vm1722
          %vm1731 = vmand %vm1699, %vm1723
          %vm1732 = vmand %vm1700, %vm1724
          %vm1733 = vmand %vm1701, %vm1725
          %vm1734 = vmand %vm1702, %vm1726
          %vm1735 = vmand %vm1703, %vm1727
          %vm1736 = vmand %vm1704, %vm1728
          %v1737 = vsel %vm1729, 1, 0
          %v1738 = vsel %vm1730, 1, 0
          %v1739 = vsel %vm1731, 1, 0
          %v1740 = vsel %vm1732, 1, 0
          %v1741 = vsel %vm1733, 1, 0
          %v1742 = vsel %vm1734, 1, 0
          %v1743 = vsel %vm1735, 1, 0
          %v1744 = vsel %vm1736, 1, 0
          %v1745 = vcvt.s32.f32 %v1737
          %v1746 = vcvt.s32.f32 %v1738
          %v1747 = vcvt.s32.f32 %v1739
          %v1748 = vcvt.s32.f32 %v1740
          %v1749 = vcvt.s32.f32 %v1741
          %v1750 = vcvt.s32.f32 %v1742
          %v1751 = vcvt.s32.f32 %v1743
          %v1752 = vcvt.s32.f32 %v1744
          %v1753 = vadd.f32 %v1657, %v1658
          %v1754 = vadd.f32 %v1753, %v1659
          %v1755 = vadd.f32 %v1754, %v1660
          %v1756 = vadd.f32 %v1755, %v1661
          %v1757 = vadd.f32 %v1756, %v1662
          %v1758 = vadd.f32 %v1757, %v1663
          %v1759 = vadd.f32 %v1758, %v1664
          %v1760 = vrot.slane %v1759, 4
          %v1761 = vadd.f32 %v1759, %v1760
          %v1762 = vrot.slane %v1761, 2
          %v1763 = vadd.f32 %v1761, %v1762
          %v1764 = vrot.slane %v1763, 1
          %v1765 = vadd.f32 %v1763, %v1764
          %vm1766 = vcmp.gt.f32.partialorder %v1765, 0.0
          %v1767 = vadd.f32 %v1673, %v1674
          %v1768 = vadd.f32 %v1767, %v1675
          %v1769 = vadd.f32 %v1768, %v1676
          %v1770 = vadd.f32 %v1769, %v1677
          %v1771 = vadd.f32 %v1770, %v1678
          %v1772 = vadd.f32 %v1771, %v1679
          %v1773 = vadd.f32 %v1772, %v1680
          %v1774 = vrot.slane %v1773, 4
          %v1775 = vadd.f32 %v1773, %v1774
          %v1776 = vrot.slane %v1775, 2
          %v1777 = vadd.f32 %v1775, %v1776
          %v1778 = vrot.slane %v1777, 1
          %v1779 = vadd.f32 %v1777, %v1778
          %vm1780 = vcmp.gt.f32.partialorder %v1779, 0.0
          %vm1781 = vmand %vm1766, %vm1780
          %v1782 = vsel %vm1781, 1, 0
          %v1783 = vcvt.s32.f32 %v1782
          %v1784 = vsub.f32 %v875, 0.1
          %v1785 = vsub.f32 %v887, 0.1
          %v1786 = vsub.f32 %v899, 0.1
          %v1787 = vsub.f32 %v911, 0.1
          %v1788 = vsub.f32 %v923, 0.1
          %v1789 = vsub.f32 %v935, 0.1
          %v1790 = vsub.f32 %v947, 0.1
          %v1791 = vsub.f32 %v959, 0.1
          %v1792 = vmax.f32 %v1784, 0.0
          %v1793 = vmax.f32 %v1785, 0.0
          %v1794 = vmax.f32 %v1786, 0.0
          %v1795 = vmax.f32 %v1787, 0.0
          %v1796 = vmax.f32 %v1788, 0.0
          %v1797 = vmax.f32 %v1789, 0.0
          %v1798 = vmax.f32 %v1790, 0.0
          %v1799 = vmax.f32 %v1791, 0.0
          %v1800 = vmul.f32 %v1657, %v1792
          %v1801 = vmul.f32 %v1658, %v1793
          %v1802 = vmul.f32 %v1659, %v1794
          %v1803 = vmul.f32 %v1660, %v1795
          %v1804 = vmul.f32 %v1661, %v1796
          %v1805 = vmul.f32 %v1662, %v1797
          %v1806 = vmul.f32 %v1663, %v1798
          %v1807 = vmul.f32 %v1664, %v1799
          %v1808 = vmax.f32 %v1576, 0.0
          %v1809 = vmax.f32 %v1580, 0.0
          %v1810 = vmax.f32 %v1584, 0.0
          %v1811 = vmax.f32 %v1588, 0.0
          %v1812 = vmax.f32 %v1592, 0.0
          %v1813 = vmax.f32 %v1596, 0.0
          %v1814 = vmax.f32 %v1600, 0.0
          %v1815 = vmax.f32 %v1604, 0.0
          %v1816 = vrsqrt.pop %v1808
          %v1817 = vmul.f32 %v1816, %v1808
          %v1818 = vmul.f32 %v1817, %v1816
          %v1819 = vmul.f32 0.5, %v1818
          %v1820 = vsub.f32 1.5, %v1819
          %v1821 = vmul.f32 %v1816, %v1820
          %v1822 = vmul.f32 %v1808, %v1821
          %vm1823 = vcmp.eq.f32.partialorder %v1808, inf
          %v1824 = vsel %vm1823, %v1808, %v1822
          %vm1825 = vcmp.eq.f32.partialorder %v1808, 0.0
          %v1826 = vand.u32 %v1808, 2147483648
          %v1827 = vsel %vm1825, %v1826, %v1824
          %v1828 = vrsqrt.pop %v1809
          %v1829 = vmul.f32 %v1828, %v1809
          %v1830 = vmul.f32 %v1829, %v1828
          %v1831 = vmul.f32 0.5, %v1830
          %v1832 = vsub.f32 1.5, %v1831
          %v1833 = vmul.f32 %v1828, %v1832
          %v1834 = vmul.f32 %v1809, %v1833
          %vm1835 = vcmp.eq.f32.partialorder %v1809, inf
          %v1836 = vsel %vm1835, %v1809, %v1834
          %vm1837 = vcmp.eq.f32.partialorder %v1809, 0.0
          %v1838 = vand.u32 %v1809, 2147483648
          %v1839 = vsel %vm1837, %v1838, %v1836
          %v1840 = vrsqrt.pop %v1810
          %v1841 = vmul.f32 %v1840, %v1810
          %v1842 = vmul.f32 %v1841, %v1840
          %v1843 = vmul.f32 0.5, %v1842
          %v1844 = vsub.f32 1.5, %v1843
          %v1845 = vmul.f32 %v1840, %v1844
          %v1846 = vmul.f32 %v1810, %v1845
          %vm1847 = vcmp.eq.f32.partialorder %v1810, inf
          %v1848 = vsel %vm1847, %v1810, %v1846
          %vm1849 = vcmp.eq.f32.partialorder %v1810, 0.0
          %v1850 = vand.u32 %v1810, 2147483648
          %v1851 = vsel %vm1849, %v1850, %v1848
          %v1852 = vrsqrt.pop %v1811
          %v1853 = vmul.f32 %v1852, %v1811
          %v1854 = vmul.f32 %v1853, %v1852
          %v1855 = vmul.f32 0.5, %v1854
          %v1856 = vsub.f32 1.5, %v1855
          %v1857 = vmul.f32 %v1852, %v1856
          %v1858 = vmul.f32 %v1811, %v1857
          %vm1859 = vcmp.eq.f32.partialorder %v1811, inf
          %v1860 = vsel %vm1859, %v1811, %v1858
          %vm1861 = vcmp.eq.f32.partialorder %v1811, 0.0
          %v1862 = vand.u32 %v1811, 2147483648
          %v1863 = vsel %vm1861, %v1862, %v1860
          %v1864 = vrsqrt.pop %v1812
          %v1865 = vmul.f32 %v1864, %v1812
          %v1866 = vmul.f32 %v1865, %v1864
          %v1867 = vmul.f32 0.5, %v1866
          %v1868 = vsub.f32 1.5, %v1867
          %v1869 = vmul.f32 %v1864, %v1868
          %v1870 = vmul.f32 %v1812, %v1869
          %vm1871 = vcmp.eq.f32.partialorder %v1812, inf
          %v1872 = vsel %vm1871, %v1812, %v1870
          %vm1873 = vcmp.eq.f32.partialorder %v1812, 0.0
          %v1874 = vand.u32 %v1812, 2147483648
          %v1875 = vsel %vm1873, %v1874, %v1872
          %v1876 = vrsqrt.pop %v1813
          %v1877 = vmul.f32 %v1876, %v1813
          %v1878 = vmul.f32 %v1877, %v1876
          %v1879 = vmul.f32 0.5, %v1878
          %v1880 = vsub.f32 1.5, %v1879
          %v1881 = vmul.f32 %v1876, %v1880
          %v1882 = vmul.f32 %v1813, %v1881
          %vm1883 = vcmp.eq.f32.partialorder %v1813, inf
          %v1884 = vsel %vm1883, %v1813, %v1882
          %vm1885 = vcmp.eq.f32.partialorder %v1813, 0.0
          %v1886 = vand.u32 %v1813, 2147483648
          %v1887 = vsel %vm1885, %v1886, %v1884
          %v1888 = vrsqrt.pop %v1814
          %v1889 = vmul.f32 %v1888, %v1814
          %v1890 = vmul.f32 %v1889, %v1888
          %v1891 = vmul.f32 0.5, %v1890
          %v1892 = vsub.f32 1.5, %v1891
          %v1893 = vmul.f32 %v1888, %v1892
          %v1894 = vmul.f32 %v1814, %v1893
          %vm1895 = vcmp.eq.f32.partialorder %v1814, inf
          %v1896 = vsel %vm1895, %v1814, %v1894
          %vm1897 = vcmp.eq.f32.partialorder %v1814, 0.0
          %v1898 = vand.u32 %v1814, 2147483648
          %v1899 = vsel %vm1897, %v1898, %v1896
          %v1900 = vrsqrt.pop %v1815
          %v1901 = vmul.f32 %v1900, %v1815
          %v1902 = vmul.f32 %v1901, %v1900
          %v1903 = vmul.f32 0.5, %v1902
          %v1904 = vsub.f32 1.5, %v1903
          %v1905 = vmul.f32 %v1900, %v1904
          %v1906 = vmul.f32 %v1815, %v1905
          %vm1907 = vcmp.eq.f32.partialorder %v1815, inf
          %v1908 = vsel %vm1907, %v1815, %v1906
          %vm1909 = vcmp.eq.f32.partialorder %v1815, 0.0
          %v1910 = vand.u32 %v1815, 2147483648
          %v1911 = vsel %vm1909, %v1910, %v1908
          %v1912 = vmul.f32 %v1800, %v1827
          %v1913 = vmul.f32 %v1801, %v1839
          %v1914 = vmul.f32 %v1802, %v1851
          %v1915 = vmul.f32 %v1803, %v1863
          %v1916 = vmul.f32 %v1804, %v1875
          %v1917 = vmul.f32 %v1805, %v1887
          %v1918 = vmul.f32 %v1806, %v1899
          %v1919 = vmul.f32 %v1807, %v1911
          %v1920 = vmul.f32 %v1784, 24.0
          %v1921 = vmul.f32 %v1785, 24.0
          %v1922 = vmul.f32 %v1786, 24.0
          %v1923 = vmul.f32 %v1787, 24.0
          %v1924 = vmul.f32 %v1788, 24.0
          %v1925 = vmul.f32 %v1789, 24.0
          %v1926 = vmul.f32 %v1790, 24.0
          %v1927 = vmul.f32 %v1791, 24.0
          %v1928 = vmul.f32 %v1920, %v1912
          %v1929 = vmul.f32 %v1921, %v1913
          %v1930 = vmul.f32 %v1922, %v1914
          %v1931 = vmul.f32 %v1923, %v1915
          %v1932 = vmul.f32 %v1924, %v1916
          %v1933 = vmul.f32 %v1925, %v1917
          %v1934 = vmul.f32 %v1926, %v1918
          %v1935 = vmul.f32 %v1927, %v1919
          %v1936 = vsel %vm1617, %v1928, -1e+09
          %v1937 = vsel %vm1618, %v1929, -1e+09
          %v1938 = vsel %vm1619, %v1930, -1e+09
          %v1939 = vsel %vm1620, %v1931, -1e+09
          %v1940 = vsel %vm1621, %v1932, -1e+09
          %v1941 = vsel %vm1622, %v1933, -1e+09
          %v1942 = vsel %vm1623, %v1934, -1e+09
          %v1943 = vsel %vm1624, %v1935, -1e+09
          %v1944 = vmax.f32 %v1936, %v1940
          %v1945 = vmax.f32 %v1937, %v1941
          %v1946 = vmax.f32 %v1938, %v1942
          %v1947 = vmax.f32 %v1939, %v1943
          %v1948 = vmax.f32 %v1944, %v1945
          %v1949 = vmax.f32 %v1946, %v1947
          %v1950 = vmax.f32 %v1948, %v1949
          %1951 = vmax.xlane.f32.xlu0 %v1950
          %v1952 = vpop.xlane.xlu0 %1951
          %v1953 = vrot.slane %v1952, 4
          %v1954 = vmax.f32 %v1952, %v1953
          %v1955 = vrot.slane %v1954, 2
          %v1956 = vmax.f32 %v1954, %v1955
          %v1957 = vrot.slane %v1956, 1
          %v1958 = vmax.f32 %v1956, %v1957
          %s1959 = vtos %v1958
          %s1960 = smax.f32 %s1959, 0.0
          %v1961 = vstv %s1960
          %v1962 = vsub.f32 %v1936, %v1961
          %v1963 = vsub.f32 %v1937, %v1961
          %v1964 = vsub.f32 %v1938, %v1961
          %v1965 = vsub.f32 %v1939, %v1961
          %v1966 = vsub.f32 %v1940, %v1961
          %v1967 = vsub.f32 %v1941, %v1961
          %v1968 = vsub.f32 %v1942, %v1961
          %v1969 = vsub.f32 %v1943, %v1961
          %v1970 = vmul.f32 %v1962, 1.442695
          %v1971 = vpow.pop %v1970
          %v1972 = vmul.f32 %v1963, 1.442695
          %v1973 = vpow.pop %v1972
          %v1974 = vmul.f32 %v1964, 1.442695
          %v1975 = vpow.pop %v1974
          %v1976 = vmul.f32 %v1965, 1.442695
          %v1977 = vpow.pop %v1976
          %v1978 = vmul.f32 %v1966, 1.442695
          %v1979 = vpow.pop %v1978
          %v1980 = vmul.f32 %v1967, 1.442695
          %v1981 = vpow.pop %v1980
          %v1982 = vmul.f32 %v1968, 1.442695
          %v1983 = vpow.pop %v1982
          %v1984 = vmul.f32 %v1969, 1.442695
          %v1985 = vpow.pop %v1984
          %1986 = vadd.xlane.f32.xlu0 %v1971
          %v1987 = vpop.xlane.xlu0 %1986
          %1988 = vadd.xlane.f32.xlu0 %v1973
          %v1989 = vpop.xlane.xlu0 %1988
          %1990 = vadd.xlane.f32.xlu0 %v1975
          %v1991 = vpop.xlane.xlu0 %1990
          %1992 = vadd.xlane.f32.xlu0 %v1977
          %v1993 = vpop.xlane.xlu0 %1992
          %1994 = vadd.xlane.f32.xlu0 %v1979
          %v1995 = vpop.xlane.xlu0 %1994
          %1996 = vadd.xlane.f32.xlu0 %v1981
          %v1997 = vpop.xlane.xlu0 %1996
          %1998 = vadd.xlane.f32.xlu0 %v1983
          %v1999 = vpop.xlane.xlu0 %1998
          %2000 = vadd.xlane.f32.xlu0 %v1985
          %v2001 = vpop.xlane.xlu0 %2000
          %v2002 = vlog2.pop %v1987
          %v2003 = vmul.f32 %v2002, 0.6931472
          %v2004 = vlog2.pop %v1989
          %v2005 = vmul.f32 %v2004, 0.6931472
          %v2006 = vlog2.pop %v1991
          %v2007 = vmul.f32 %v2006, 0.6931472
          %v2008 = vlog2.pop %v1993
          %v2009 = vmul.f32 %v2008, 0.6931472
          %v2010 = vlog2.pop %v1995
          %v2011 = vmul.f32 %v2010, 0.6931472
          %v2012 = vlog2.pop %v1997
          %v2013 = vmul.f32 %v2012, 0.6931472
          %v2014 = vlog2.pop %v1999
          %v2015 = vmul.f32 %v2014, 0.6931472
          %v2016 = vlog2.pop %v2001
          %v2017 = vmul.f32 %v2016, 0.6931472
          %v2018 = vadd.f32 %v1961, %v2003
          %v2019 = vadd.f32 %v1961, %v2005
          %v2020 = vadd.f32 %v1961, %v2007
          %v2021 = vadd.f32 %v1961, %v2009
          %v2022 = vadd.f32 %v1961, %v2011
          %v2023 = vadd.f32 %v1961, %v2013
          %v2024 = vadd.f32 %v1961, %v2015
          %v2025 = vadd.f32 %v1961, %v2017
          %v2026 = vadd.f32 %v1971, %v1973
          %v2027 = vadd.f32 %v2026, %v1975
          %v2028 = vadd.f32 %v2027, %v1977
          %v2029 = vadd.f32 %v2028, %v1979
          %v2030 = vadd.f32 %v2029, %v1981
          %v2031 = vadd.f32 %v2030, %v1983
          %v2032 = vadd.f32 %v2031, %v1985
          %v2033 = vrot.slane %v2032, 4
          %v2034 = vadd.f32 %v2032, %v2033
          %v2035 = vrot.slane %v2034, 2
          %v2036 = vadd.f32 %v2034, %v2035
          %v2037 = vrot.slane %v2036, 1
          %v2038 = vadd.f32 %v2036, %v2037
          %v2039 = vlog2.pop %v2038
          %v2040 = vmul.f32 %v2039, 0.6931472
          %v2041 = vadd.f32 %v1961, %v2040
          %v2042 = vsub.f32 1.4, %v875
          %v2043 = vsub.f32 1.4, %v887
          %v2044 = vsub.f32 1.4, %v899
          %v2045 = vsub.f32 1.4, %v911
          %v2046 = vsub.f32 1.4, %v923
          %v2047 = vsub.f32 1.4, %v935
          %v2048 = vsub.f32 1.4, %v947
          %v2049 = vsub.f32 1.4, %v959
          %v2050 = vmax.f32 %v2042, 0.0
          %v2051 = vmax.f32 %v2043, 0.0
          %v2052 = vmax.f32 %v2044, 0.0
          %v2053 = vmax.f32 %v2045, 0.0
          %v2054 = vmax.f32 %v2046, 0.0
          %v2055 = vmax.f32 %v2047, 0.0
          %v2056 = vmax.f32 %v2048, 0.0
          %v2057 = vmax.f32 %v2049, 0.0
          %v2058 = vmul.f32 %v1673, %v2050
          %v2059 = vmul.f32 %v1674, %v2051
          %v2060 = vmul.f32 %v1675, %v2052
          %v2061 = vmul.f32 %v1676, %v2053
          %v2062 = vmul.f32 %v1677, %v2054
          %v2063 = vmul.f32 %v1678, %v2055
          %v2064 = vmul.f32 %v1679, %v2056
          %v2065 = vmul.f32 %v1680, %v2057
          %v2066 = vmul.f32 %v2042, 24.0
          %v2067 = vmul.f32 %v2043, 24.0
          %v2068 = vmul.f32 %v2044, 24.0
          %v2069 = vmul.f32 %v2045, 24.0
          %v2070 = vmul.f32 %v2046, 24.0
          %v2071 = vmul.f32 %v2047, 24.0
          %v2072 = vmul.f32 %v2048, 24.0
          %v2073 = vmul.f32 %v2049, 24.0
          %v2074 = vmul.f32 %v2066, %v2058
          %v2075 = vmul.f32 %v2067, %v2059
          %v2076 = vmul.f32 %v2068, %v2060
          %v2077 = vmul.f32 %v2069, %v2061
          %v2078 = vmul.f32 %v2070, %v2062
          %v2079 = vmul.f32 %v2071, %v2063
          %v2080 = vmul.f32 %v2072, %v2064
          %v2081 = vmul.f32 %v2073, %v2065
          %v2082 = vsel %vm1617, %v2074, -1e+09
          %v2083 = vsel %vm1618, %v2075, -1e+09
          %v2084 = vsel %vm1619, %v2076, -1e+09
          %v2085 = vsel %vm1620, %v2077, -1e+09
          %v2086 = vsel %vm1621, %v2078, -1e+09
          %v2087 = vsel %vm1622, %v2079, -1e+09
          %v2088 = vsel %vm1623, %v2080, -1e+09
          %v2089 = vsel %vm1624, %v2081, -1e+09
          %v2090 = vmax.f32 %v2082, %v2086
          %v2091 = vmax.f32 %v2083, %v2087
          %v2092 = vmax.f32 %v2084, %v2088
          %v2093 = vmax.f32 %v2085, %v2089
          %v2094 = vmax.f32 %v2090, %v2091
          %v2095 = vmax.f32 %v2092, %v2093
          %v2096 = vmax.f32 %v2094, %v2095
          %2097 = vmax.xlane.f32.xlu0 %v2096
          %v2098 = vpop.xlane.xlu0 %2097
          %v2099 = vrot.slane %v2098, 4
          %v2100 = vmax.f32 %v2098, %v2099
          %v2101 = vrot.slane %v2100, 2
          %v2102 = vmax.f32 %v2100, %v2101
          %v2103 = vrot.slane %v2102, 1
          %v2104 = vmax.f32 %v2102, %v2103
          %s2105 = vtos %v2104
          %s2106 = smax.f32 %s2105, 0.0
          %v2107 = vstv %s2106
          %v2108 = vsub.f32 %v2082, %v2107
          %v2109 = vsub.f32 %v2083, %v2107
          %v2110 = vsub.f32 %v2084, %v2107
          %v2111 = vsub.f32 %v2085, %v2107
          %v2112 = vsub.f32 %v2086, %v2107
          %v2113 = vsub.f32 %v2087, %v2107
          %v2114 = vsub.f32 %v2088, %v2107
          %v2115 = vsub.f32 %v2089, %v2107
          %v2116 = vmul.f32 %v2108, 1.442695
          %v2117 = vpow.pop %v2116
          %v2118 = vmul.f32 %v2109, 1.442695
          %v2119 = vpow.pop %v2118
          %v2120 = vmul.f32 %v2110, 1.442695
          %v2121 = vpow.pop %v2120
          %v2122 = vmul.f32 %v2111, 1.442695
          %v2123 = vpow.pop %v2122
          %v2124 = vmul.f32 %v2112, 1.442695
          %v2125 = vpow.pop %v2124
          %v2126 = vmul.f32 %v2113, 1.442695
          %v2127 = vpow.pop %v2126
          %v2128 = vmul.f32 %v2114, 1.442695
          %v2129 = vpow.pop %v2128
          %v2130 = vmul.f32 %v2115, 1.442695
          %v2131 = vpow.pop %v2130
          %2132 = vadd.xlane.f32.xlu0 %v2117
          %v2133 = vpop.xlane.xlu0 %2132
          %2134 = vadd.xlane.f32.xlu0 %v2119
          %v2135 = vpop.xlane.xlu0 %2134
          %2136 = vadd.xlane.f32.xlu0 %v2121
          %v2137 = vpop.xlane.xlu0 %2136
          %2138 = vadd.xlane.f32.xlu0 %v2123
          %v2139 = vpop.xlane.xlu0 %2138
          %2140 = vadd.xlane.f32.xlu0 %v2125
          %v2141 = vpop.xlane.xlu0 %2140
          %2142 = vadd.xlane.f32.xlu0 %v2127
          %v2143 = vpop.xlane.xlu0 %2142
          %2144 = vadd.xlane.f32.xlu0 %v2129
          %v2145 = vpop.xlane.xlu0 %2144
          %2146 = vadd.xlane.f32.xlu0 %v2131
          %v2147 = vpop.xlane.xlu0 %2146
          %v2148 = vlog2.pop %v2133
          %v2149 = vmul.f32 %v2148, 0.6931472
          %v2150 = vlog2.pop %v2135
          %v2151 = vmul.f32 %v2150, 0.6931472
          %v2152 = vlog2.pop %v2137
          %v2153 = vmul.f32 %v2152, 0.6931472
          %v2154 = vlog2.pop %v2139
          %v2155 = vmul.f32 %v2154, 0.6931472
          %v2156 = vlog2.pop %v2141
          %v2157 = vmul.f32 %v2156, 0.6931472
          %v2158 = vlog2.pop %v2143
          %v2159 = vmul.f32 %v2158, 0.6931472
          %v2160 = vlog2.pop %v2145
          %v2161 = vmul.f32 %v2160, 0.6931472
          %v2162 = vlog2.pop %v2147
          %v2163 = vmul.f32 %v2162, 0.6931472
          %v2164 = vadd.f32 %v2107, %v2149
          %v2165 = vadd.f32 %v2107, %v2151
          %v2166 = vadd.f32 %v2107, %v2153
          %v2167 = vadd.f32 %v2107, %v2155
          %v2168 = vadd.f32 %v2107, %v2157
          %v2169 = vadd.f32 %v2107, %v2159
          %v2170 = vadd.f32 %v2107, %v2161
          %v2171 = vadd.f32 %v2107, %v2163
          %v2172 = vadd.f32 %v2117, %v2119
          %v2173 = vadd.f32 %v2172, %v2121
          %v2174 = vadd.f32 %v2173, %v2123
          %v2175 = vadd.f32 %v2174, %v2125
          %v2176 = vadd.f32 %v2175, %v2127
          %v2177 = vadd.f32 %v2176, %v2129
          %v2178 = vadd.f32 %v2177, %v2131
          %v2179 = vrot.slane %v2178, 4
          %v2180 = vadd.f32 %v2178, %v2179
          %v2181 = vrot.slane %v2180, 2
          %v2182 = vadd.f32 %v2180, %v2181
          %v2183 = vrot.slane %v2182, 1
          %v2184 = vadd.f32 %v2182, %v2183
          %v2185 = vlog2.pop %v2184
          %v2186 = vmul.f32 %v2185, 0.6931472
          %v2187 = vadd.f32 %v2107, %v2186
          %v2188 = vadd.f32 %v2018, %v2164
          %v2189 = vadd.f32 %v2019, %v2165
          %v2190 = vadd.f32 %v2020, %v2166
          %v2191 = vadd.f32 %v2021, %v2167
          %v2192 = vadd.f32 %v2022, %v2168
          %v2193 = vadd.f32 %v2023, %v2169
          %v2194 = vadd.f32 %v2024, %v2170
          %v2195 = vadd.f32 %v2025, %v2171
          %v2196 = vmax.f32 %v2188, 0.0
          %v2197 = vmax.f32 %v2189, 0.0
          %v2198 = vmax.f32 %v2190, 0.0
          %v2199 = vmax.f32 %v2191, 0.0
          %v2200 = vmax.f32 %v2192, 0.0
          %v2201 = vmax.f32 %v2193, 0.0
          %v2202 = vmax.f32 %v2194, 0.0
          %v2203 = vmax.f32 %v2195, 0.0
          %v2204 = vand.u32 2147483647, %v2188
          %v2205 = vand.u32 2147483647, %v2189
          %v2206 = vand.u32 2147483647, %v2190
          %v2207 = vand.u32 2147483647, %v2191
          %v2208 = vand.u32 2147483647, %v2192
          %v2209 = vand.u32 2147483647, %v2193
          %v2210 = vand.u32 2147483647, %v2194
          %v2211 = vand.u32 2147483647, %v2195
          %v2212 = vsub.f32 0.0, %v2204
          %v2213 = vsub.f32 0.0, %v2205
          %v2214 = vsub.f32 0.0, %v2206
          %v2215 = vsub.f32 0.0, %v2207
          %v2216 = vsub.f32 0.0, %v2208
          %v2217 = vsub.f32 0.0, %v2209
          %v2218 = vsub.f32 0.0, %v2210
          %v2219 = vsub.f32 0.0, %v2211
          %v2220 = vmul.f32 %v2212, 1.442695
          %v2221 = vpow.pop %v2220
          %v2222 = vmul.f32 %v2213, 1.442695
          %v2223 = vpow.pop %v2222
          %v2224 = vmul.f32 %v2214, 1.442695
          %v2225 = vpow.pop %v2224
          %v2226 = vmul.f32 %v2215, 1.442695
          %v2227 = vpow.pop %v2226
          %v2228 = vmul.f32 %v2216, 1.442695
          %v2229 = vpow.pop %v2228
          %v2230 = vmul.f32 %v2217, 1.442695
          %v2231 = vpow.pop %v2230
          %v2232 = vmul.f32 %v2218, 1.442695
          %v2233 = vpow.pop %v2232
          %v2234 = vmul.f32 %v2219, 1.442695
          %v2235 = vpow.pop %v2234
          %v2236 = vadd.f32 %v2221, 1.0
          %v2237 = vadd.f32 %v2223, 1.0
          %v2238 = vadd.f32 %v2225, 1.0
          %v2239 = vadd.f32 %v2227, 1.0
          %v2240 = vadd.f32 %v2229, 1.0
          %v2241 = vadd.f32 %v2231, 1.0
          %v2242 = vadd.f32 %v2233, 1.0
          %v2243 = vadd.f32 %v2235, 1.0
          %v2244 = vlog2.pop %v2236
          %v2245 = vmul.f32 %v2244, 0.6931472
          %v2246 = vlog2.pop %v2237
          %v2247 = vmul.f32 %v2246, 0.6931472
          %v2248 = vlog2.pop %v2238
          %v2249 = vmul.f32 %v2248, 0.6931472
          %v2250 = vlog2.pop %v2239
          %v2251 = vmul.f32 %v2250, 0.6931472
          %v2252 = vlog2.pop %v2240
          %v2253 = vmul.f32 %v2252, 0.6931472
          %v2254 = vlog2.pop %v2241
          %v2255 = vmul.f32 %v2254, 0.6931472
          %v2256 = vlog2.pop %v2242
          %v2257 = vmul.f32 %v2256, 0.6931472
          %v2258 = vlog2.pop %v2243
          %v2259 = vmul.f32 %v2258, 0.6931472
          %v2260 = vadd.f32 %v2196, %v2245
          %v2261 = vadd.f32 %v2197, %v2247
          %v2262 = vadd.f32 %v2198, %v2249
          %v2263 = vadd.f32 %v2199, %v2251
          %v2264 = vadd.f32 %v2200, %v2253
          %v2265 = vadd.f32 %v2201, %v2255
          %v2266 = vadd.f32 %v2202, %v2257
          %v2267 = vadd.f32 %v2203, %v2259
          %v2268 = vmul.f32 %v2260, 0.041666668
          %v2269 = vmul.f32 %v2261, 0.041666668
          %v2270 = vmul.f32 %v2262, 0.041666668
          %v2271 = vmul.f32 %v2263, 0.041666668
          %v2272 = vmul.f32 %v2264, 0.041666668
          %v2273 = vmul.f32 %v2265, 0.041666668
          %v2274 = vmul.f32 %v2266, 0.041666668
          %v2275 = vmul.f32 %v2267, 0.041666668
          %v2276 = vadd.f32 %v2041, %v2187
          %v2277 = vmax.f32 %v2276, 0.0
          %v2278 = vand.u32 2147483647, %v2276
          %v2279 = vsub.f32 0.0, %v2278
          %v2280 = vmul.f32 %v2279, 1.442695
          %v2281 = vpow.pop %v2280
          %v2282 = vadd.f32 %v2281, 1.0
          %v2283 = vlog2.pop %v2282
          %v2284 = vmul.f32 %v2283, 0.6931472
          %v2285 = vadd.f32 %v2277, %v2284
          %v2286 = vmul.f32 %v2285, 0.041666668
          %v2287 = vmul.f32 %v2268, %v1745
          %v2288 = vmul.f32 %v2269, %v1746
          %v2289 = vmul.f32 %v2270, %v1747
          %v2290 = vmul.f32 %v2271, %v1748
          %v2291 = vmul.f32 %v2272, %v1749
          %v2292 = vmul.f32 %v2273, %v1750
          %v2293 = vmul.f32 %v2274, %v1751
          %v2294 = vmul.f32 %v2275, %v1752
          %vm2295 = vcmask 7168
          %v2296 = vsel %vm2295, %v2287, 0.0
          %v2297 = vsel %vm2295, %v2288, 0.0
          %v2298 = vadd.f32 %v2296, %v2297
          %v2299 = vsel %vm2295, %v2289, 0.0
          %v2300 = vadd.f32 %v2298, %v2299
          %v2301 = vsel %vm2295, %v2290, 0.0
          %v2302 = vadd.f32 %v2300, %v2301
          %v2303 = vsel %vm2295, %v2291, 0.0
          %v2304 = vadd.f32 %v2302, %v2303
          %v2305 = vsel %vm2295, %v2292, 0.0
          %v2306 = vadd.f32 %v2304, %v2305
          %v2307 = vsel %vm2295, %v2293, 0.0
          %v2308 = vadd.f32 %v2306, %v2307
          %v2309 = vsel %vm2295, %v2294, 0.0
          %v2310 = vadd.f32 %v2308, %v2309
          %2311 = vadd.xlane.f32.xlu0 %v2310
          %v2312 = vpop.xlane.xlu0 %2311
          %v2313 = vrot.slane %v2312, 4
          %v2314 = vadd.f32 %v2312, %v2313
          %v2315 = vrot.slane %v2314, 2
          %v2316 = vadd.f32 %v2314, %v2315
          %v2317 = vrot.slane %v2316, 1
          %v2318 = vadd.f32 %v2316, %v2317
          %s2319 = vtos %v2318
          %v2320 = vsel %vm2295, %v1745, 0.0
          %v2321 = vsel %vm2295, %v1746, 0.0
          %v2322 = vadd.f32 %v2320, %v2321
          %v2323 = vsel %vm2295, %v1747, 0.0
          %v2324 = vadd.f32 %v2322, %v2323
          %v2325 = vsel %vm2295, %v1748, 0.0
          %v2326 = vadd.f32 %v2324, %v2325
          %v2327 = vsel %vm2295, %v1749, 0.0
          %v2328 = vadd.f32 %v2326, %v2327
          %v2329 = vsel %vm2295, %v1750, 0.0
          %v2330 = vadd.f32 %v2328, %v2329
          %v2331 = vsel %vm2295, %v1751, 0.0
          %v2332 = vadd.f32 %v2330, %v2331
          %v2333 = vsel %vm2295, %v1752, 0.0
          %v2334 = vadd.f32 %v2332, %v2333
          %2335 = vadd.xlane.f32.xlu0 %v2334
          %v2336 = vpop.xlane.xlu0 %2335
          %v2337 = vrot.slane %v2336, 4
          %v2338 = vadd.f32 %v2336, %v2337
          %v2339 = vrot.slane %v2338, 2
          %v2340 = vadd.f32 %v2338, %v2339
          %v2341 = vrot.slane %v2340, 1
          %v2342 = vadd.f32 %v2340, %v2341
          %s2343 = vtos %v2342
          %v2344 = vstv %s2343
          %v2345 = vrcp.pop %v2344
          %v2346 = vmul.f32 %v2344, %v2345
          %v2347 = vsub.f32 1.0, %v2346
          %v2348 = vmul.f32 %v2345, %v2347
          %v2349 = vadd.f32 %v2345, %v2348
          %vm2350 = vweird.f32 %v2344
          %vm2351 = vweird.f32 %v2345
          %vm2352 = vmor %vm2350, %vm2351
          %v2353 = vsel %vm2352, %v2345, %v2349
          %v2354 = vand.u32 2147483647, %v2344
          %vm2355 = vcmp.eq.f32.partialorder %v2354, 8.507059e+37
          %v2356 = vand.u32 %v2344, 2147483648
          %v2357 = vor.u32 1.1754944e-38, %v2356
          %v2358 = vsel %vm2355, %v2357, %v2353
          %s2359 = vtos %v2358
          %s2360 = smul.f32 %s2319, %s2359
          %v2361 = vmul.f32 %v2286, %v1783
          %vm2362 = vcmask 1040384
          %v2363 = vsel %vm2362, %v2361, 0.0
          %2364 = vadd.xlane.f32.xlu0 %v2363
          %v2365 = vpop.xlane.xlu0 %2364
          %v2366 = vrot.slane %v2365, 4
          %v2367 = vadd.f32 %v2365, %v2366
          %v2368 = vrot.slane %v2367, 2
          %v2369 = vadd.f32 %v2367, %v2368
          %v2370 = vrot.slane %v2369, 1
          %v2371 = vadd.f32 %v2369, %v2370
          %s2372 = vtos %v2371
          %v2373 = vsel %vm2362, %v1783, 0.0
          %2374 = vadd.xlane.f32.xlu0 %v2373
          %v2375 = vpop.xlane.xlu0 %2374
          %v2376 = vrot.slane %v2375, 4
          %v2377 = vadd.f32 %v2375, %v2376
          %v2378 = vrot.slane %v2377, 2
          %v2379 = vadd.f32 %v2377, %v2378
          %v2380 = vrot.slane %v2379, 1
          %v2381 = vadd.f32 %v2379, %v2380
          %s2382 = vtos %v2381
          %v2383 = vstv %s2382
          %v2384 = vrcp.pop %v2383
          %v2385 = vmul.f32 %v2383, %v2384
          %v2386 = vsub.f32 1.0, %v2385
          %v2387 = vmul.f32 %v2384, %v2386
          %v2388 = vadd.f32 %v2384, %v2387
          %vm2389 = vweird.f32 %v2383
          %vm2390 = vweird.f32 %v2384
          %vm2391 = vmor %vm2389, %vm2390
          %v2392 = vsel %vm2391, %v2384, %v2388
          %v2393 = vand.u32 2147483647, %v2383
          %vm2394 = vcmp.eq.f32.partialorder %v2393, 8.507059e+37
          %v2395 = vand.u32 %v2383, 2147483648
          %v2396 = vor.u32 1.1754944e-38, %v2395
          %v2397 = vsel %vm2394, %v2396, %v2392
          %s2398 = vtos %v2397
          %s2399 = smul.f32 %s2372, %s2398
          %s2400 = sadd.f32 %s2360, %s2399
          %s2401 = smul.f32 %s2400, 0.5
          %s2402 = scalar_lea.smem [#allocation15], 0
          %2403 = sst [smem:[%s2402]] %s2401
        $region92: #{tpu_custom_call.1} parent=51 // pred_fallthru
          _
        // Predicated region
        $region93: #{tpu_custom_call.1} parent=51 // pred_check
          %p2404 = pneg %p229
        $region94: #{tpu_custom_call.1} parent=51 // pred_check_branch
          %2406 = sbr.rel (%p2404) target = $region96
        $region95: #{tpu_custom_call.1} parent=51 // pred_region
          %2408 = vsyncadd [#allocation5], 0
          %s2410 = sshll.u32 %s8, 4
          %s2411 = int_to_ptr.hbm [resolvable:$true] %s2410
          %2413 = dma.smem_to_hbm [#allocation15], 16, %s2411, [#allocation5]
        $region96: #{tpu_custom_call.1} parent=51 // pred_fallthru
          _
        // Predicated region
        $region97: #{tpu_custom_call.1} parent=51 // pred_check
          %p2414 = pneg %p229
        $region98: #{tpu_custom_call.1} parent=51 // pred_check_branch
          %2416 = sbr.rel (%p2414) target = $region100
        $region99: #{tpu_custom_call.1} parent=51 // pred_region
          %2418 = dma.done [#allocation5], 16
        $region100: #{tpu_custom_call.1} parent=51 // pred_fallthru
          _
        %2419 = sfence
      $region52: #{tpu_custom_call.1} parent=5 // pred_fallthru
        _
      %p2420 = scmp.le.s32.totalorder 2, %s23
      // Predicated region
      $region101: #{tpu_custom_call.1} parent=5 // pred_check
        %p2421 = pneg %p2420
      $region102: #{tpu_custom_call.1} parent=5 // pred_check_branch
        %2423 = sbr.rel (%p2421) target = $region104
      $region103: #{tpu_custom_call.1} parent=5 // pred_region
        %s2424 = ssub.s32 %s23, 2
      $region104: #{tpu_custom_call.1} parent=5 // pred_fallthru
        _
    $region6: #{tpu_custom_call.1} parent=1 // loop_footer
      %s27 = sadd.s32 1, %s23
    $region7: #{tpu_custom_call.1} parent=1 // loop_footer_branch
      %22 = sbr.rel target = $region3
    $region8: #{tpu_custom_call.1} parent=1 // loop_exit
      _
    %2425 = vsyncpa [#allocation4], 1
    %s2426 = scalar_lea.sflag [#allocation4], 1
    %2427 = vsyncpa %s2426, 1
    %2428 = vsyncpa [#allocation7], 1
    %2429 = vsyncpa [#allocation10], 1
    %s2430 = scalar_lea.sflag [#allocation10], 1
    %2431 = vsyncpa %s2430, 1
    %2432 = vsyncpa [#allocation13], 1
    %s2433 = scalar_lea.sflag [#allocation13], 1
    %2434 = vsyncpa %s2433, 1
    %2435 = vsyncpa [#allocation5], 1
    %s2436 = scalar_lea.sflag [#allocation5], 1
    %2437 = vsyncpa %s2436, 1

</llo_original>
